<compile_context>
chip_gen: v6e
topology: v6e:2x2x1
jax: 0.10.0
libtpu: 0.0.40
codegen_flags: <defaults>
</compile_context>

<pallas_src>
import jax
import jax.numpy as jnp
from jax.experimental import pallas as pl
from jax.experimental.pallas import tpu as pltpu

# ---------------- configuration (small shapes consistent with ConformerBlock) ---
B = 2            # batch
N = 16           # sequence length
BN = B * N       # folded batch*sequence rows
DIM = 32         # model dim
HEADS = 4
DIM_QK = 8
DIM_V = 8        # HEADS * DIM_V == DIM so the conv-module residual is shape-valid
FF_MULT = 4
HID = DIM * FF_MULT
LORDER = 7
RORDER = 7
KSIZE = LORDER + RORDER + 1
MAX_POS_EMB = 10
CONV_DIM = HEADS * DIM_V
DV = DIM // HEADS            # per-head value dim used by Attention.to_v
SCALE = DIM_QK ** -0.5
EPS = 1e-5
NEG_INF = -1e30

assert CONV_DIM == DIM, "conv-module residual requires heads * dim_v == dim"

# ---------------- packed-parameter layout ----------------------------------------
LANE = 128


def _ceil_lanes(w):
    return ((w + LANE - 1) // LANE) * LANE


QKV_W = 2 * HEADS * DIM_QK + DIM          # fused [q | k | v] projection width (96)

# column offsets inside the (DIM, W_IN_COLS) slab; every segment starts on a
# 128-lane tile boundary so in-kernel slices never straddle a lane tile.
O_FF1_W1 = 0
O_FF2_W1 = O_FF1_W1 + _ceil_lanes(HID)          # 128
O_QKV = O_FF2_W1 + _ceil_lanes(HID)             # 256
O_AT_WO = O_QKV + _ceil_lanes(QKV_W)            # 384
O_CV_WIN = O_AT_WO + _ceil_lanes(DIM)           # 512
O_CV_WOUT = O_CV_WIN + _ceil_lanes(2 * CONV_DIM)  # 640
W_IN_COLS = O_CV_WOUT + _ceil_lanes(CONV_DIM)   # 768

O_FF1_W2 = 0
O_FF2_W2 = _ceil_lanes(DIM)                     # 128
W_HID_COLS = O_FF2_W2 + _ceil_lanes(DIM)        # 256

VEC_W = _ceil_lanes(HID)                        # 128 (widest bias row)
VEC_ROWS = (
    "ff1_lng", "ff1_lnb", "ff1_b1", "ff1_b2",
    "at_lng", "at_lnb", "at_bo",
    "cv_ln1g", "cv_ln1b", "cv_bin", "cv_dwb", "cv_ln2g", "cv_ln2b", "cv_bout",
    "ff2_lng", "ff2_lnb", "ff2_b1", "ff2_b2",
    "pn_g", "pn_b",
)
(V_FF1_LNG, V_FF1_LNB, V_FF1_B1, V_FF1_B2,
 V_AT_LNG, V_AT_LNB, V_AT_BO,
 V_CV_LN1G, V_CV_LN1B, V_CV_BIN, V_CV_DWB, V_CV_LN2G, V_CV_LN2B, V_CV_BOUT,
 V_FF2_LNG, V_FF2_LNB, V_FF2_B1, V_FF2_B2,
 V_PN_G, V_PN_B) = range(len(VEC_ROWS))


# ---------------- in-kernel helpers ---------------------------------------------
def _layernorm(x, g, b):
    mu = jnp.mean(x, axis=-1, keepdims=True)
    xc = x - mu
    var = jnp.mean(xc * xc, axis=-1, keepdims=True)
    return xc * jax.lax.rsqrt(var + EPS) * g + b


def _swish(x):
    return x * jax.nn.sigmoid(x)


def _bf(x):
    # MXU operands go in as bf16; accumulation stays f32 via preferred_element_type.
    return x.astype(jnp.bfloat16)


# ---------------- the fused Conformer block kernel --------------------------------
def conformer_kernel(x_ref, w_in_ref, w_hid_ref, vecs_ref, dww_ref, bias_ref, o_ref):
    def vec(row, width=DIM):
        # one packed bias/gain row (1, width); each is read from VMEM exactly once.
        return vecs_ref[row:row + 1, :width]

    def ff_block(xin, lng, lnb, w1_off, b1, w2_off, b2):
        h = _layernorm(xin, vec(lng), vec(lnb))
        h = jnp.dot(_bf(h), w_in_ref[:, w1_off:w1_off + HID],
                    preferred_element_type=jnp.float32) + vec(b1, HID)
        h = _swish(h)
        return jnp.dot(_bf(h), w_hid_ref[:, w2_off:w2_off + DIM],
                       preferred_element_type=jnp.float32) + vec(b2)

    x = x_ref[...]                                            # (BN, DIM), f32

    # --- x = 0.5 * FF1(LN(x)) + x
    x = x + 0.5 * ff_block(x, V_FF1_LNG, V_FF1_LNB, O_FF1_W1, V_FF1_B1,
                           O_FF1_W2, V_FF1_B2)

    # --- x = Attention(LN(x)) + x  (heads kept register-resident)
    xn = _layernorm(x, vec(V_AT_LNG), vec(V_AT_LNB))
    qkv = jnp.dot(_bf(xn), w_in_ref[:, O_QKV:O_QKV + QKV_W],
                  preferred_element_type=jnp.float32)         # (BN, 96) = [q | k | v]
    koff = HEADS * DIM_QK
    voff = 2 * HEADS * DIM_QK
    # transpose the packed K block ONCE; per-head slices are aligned 8-row
    # sublane slices of the transposed block.
    kT = jnp.transpose(qkv[:, koff:voff])                     # (H*DQK, BN) f32
    out_heads = []
    for hd in range(HEADS):
        qh = _bf(qkv[:, hd * DIM_QK:(hd + 1) * DIM_QK])                 # (BN, DQK)
        kTh = _bf(kT[hd * DIM_QK:(hd + 1) * DIM_QK, :])                 # (DQK, BN)
        vh = _bf(qkv[:, voff + hd * DV:voff + (hd + 1) * DV])           # (BN, DV)
        dots = jnp.dot(qh, kTh, preferred_element_type=jnp.float32) * SCALE
        # rel-pos bias + (-1e30) batch block mask, pre-merged host-side
        dots = dots + bias_ref[hd]
        m = jnp.max(dots, axis=-1, keepdims=True)
        e = jnp.exp(dots - m)
        attn = e * pl.reciprocal(jnp.sum(e, axis=-1, keepdims=True), approx=True)
        out_heads.append(jnp.dot(_bf(attn), vh,
                                 preferred_element_type=jnp.float32))   # (BN, DV)
    # merge the head outputs and hit the full Wo with ONE K=32 matmul.
    out_cat = jnp.concatenate(out_heads, axis=1)                        # (BN, DIM)
    aout = jnp.dot(_bf(out_cat), w_in_ref[:, O_AT_WO:O_AT_WO + DIM],
                   preferred_element_type=jnp.float32) + vec(V_AT_BO)
    x = x + aout

    # --- x = ConformerConvModule(x) + x
    xn = _layernorm(x, vec(V_CV_LN1G), vec(V_CV_LN1B))
    proj = jnp.dot(_bf(xn), w_in_ref[:, O_CV_WIN:O_CV_WIN + 2 * CONV_DIM],
                   preferred_element_type=jnp.float32) + vec(V_CV_BIN, 2 * CONV_DIM)
    glu = proj[:, :CONV_DIM] * jax.nn.sigmoid(proj[:, CONV_DIM:])        # (BN, C)
    # depthwise conv along the folded (batch*seq) axis: each tap's window is a
    # cyclic sublane roll on the XLU; the zero-padding / batch-isolation mask is
    # pre-folded into dww_ref host-side, so wrapped rows contribute 0.
    taps = []
    for k in range(KSIZE):
        if k == LORDER:                                    # zero shift: identity
            shifted = glu
        else:
            shifted = pltpu.roll(glu, shift=(LORDER - k) % BN, axis=0)
        taps.append(shifted * dww_ref[k])
    # two independent accumulators break the 15-deep dependent add chain.
    acc0 = taps[0]
    acc1 = taps[1]
    for k in range(2, KSIZE, 2):
        acc0 = acc0 + taps[k]
    for k in range(3, KSIZE, 2):
        acc1 = acc1 + taps[k]
    conv = acc0 + acc1 + vec(V_CV_DWB, CONV_DIM)
    y = _swish(_layernorm(conv, vec(V_CV_LN2G, CONV_DIM), vec(V_CV_LN2B, CONV_DIM)))
    x = x + jnp.dot(_bf(y), w_in_ref[:, O_CV_WOUT:O_CV_WOUT + CONV_DIM],
                    preferred_element_type=jnp.float32) + vec(V_CV_BOUT, CONV_DIM)

    # --- x = 0.5 * FF2(LN(x)) + x
    x = x + 0.5 * ff_block(x, V_FF2_LNG, V_FF2_LNB, O_FF2_W1, V_FF2_B1,
                           O_FF2_W2, V_FF2_B2)

    # --- post norm
    o_ref[...] = _layernorm(x, vec(V_PN_G), vec(V_PN_B))


# ---------------- host-side parameter packing (data-independent glue) --------------
def pack_params(p):
    def pad_lanes(w):
        cols = w.shape[-1]
        return jnp.pad(w, ((0, 0), (0, _ceil_lanes(cols) - cols)))

    # weight slabs in bf16 (MXU-native); segments 128-lane aligned, order must
    # match the O_* offsets.
    w_in = jnp.concatenate([
        pad_lanes(p["ff1_w1"]),
        pad_lanes(p["ff2_w1"]),
        pad_lanes(jnp.concatenate([p["at_wqk"], p["at_wv"]], axis=1)),
        pad_lanes(p["at_wo"]),
        pad_lanes(p["cv_win"]),
        pad_lanes(p["cv_wout"]),
    ], axis=1).astype(jnp.bfloat16)                                  # (DIM, 768)
    w_hid = jnp.concatenate(
        [pad_lanes(p["ff1_w2"]), pad_lanes(p["ff2_w2"])], axis=1
    ).astype(jnp.bfloat16)                                           # (HID, 256)

    # all 1-row gains / biases (added post-accumulation, kept f32)
    rows = []
    for name in VEC_ROWS:
        v = p[name].reshape(1, -1)
        rows.append(jnp.pad(v, ((0, 0), (0, VEC_W - v.shape[1]))))
    vecs = jnp.concatenate(rows, axis=0).astype(jnp.float32)         # (20, 128)

    # pre-broadcast depthwise-conv taps with the padding / batch-boundary
    # validity mask folded in: dww_b[k, i, c] = w[k, c] * valid[k, i].
    idx = jnp.arange(BN)
    batch = idx // N
    offs = jnp.arange(KSIZE) - LORDER
    src = idx[None, :] + offs[:, None]                               # (K, BN)
    in_range = (src >= 0) & (src < BN)
    src_b = batch[jnp.clip(src, 0, BN - 1)]
    valid = (in_range & (src_b == batch[None, :])).astype(jnp.float32)  # (K, BN)
    dww_b = (p["cv_dww"][:, None, :] * valid[:, :, None]).astype(jnp.float32)  # (K,BN,C)

    # relative-position bias tiled over the folded batch, merged with the
    # cross-batch block mask so the kernel only does one add per head.
    rel_tiled = jnp.tile(p["rel_bias"], (1, B, B))                   # (H, BN, BN)
    same = batch[:, None] == batch[None, :]
    attn_bias = jnp.where(same[None], rel_tiled,
                          jnp.float32(NEG_INF)).astype(jnp.float32)  # (H, BN, BN)

    return w_in, w_hid, vecs, dww_b, attn_bias


# ---------------- wrapper ----------------------------------------------------------
def conformer_block(x, params):
    w_in, w_hid, vecs, dww_b, attn_bias = pack_params(params)
    x2d = x.reshape(BN, DIM).astype(jnp.float32)
    out2d = pl.pallas_call(
        conformer_kernel,
        out_shape=jax.ShapeDtypeStruct((BN, DIM), jnp.float32),
    )(x2d, w_in, w_hid, vecs, dww_b, attn_bias)
    return out2d.reshape(B, N, DIM)


# ---------------- pure-JAX reference (for validation only) -------------------------
def reference_forward(x, p):
    def ln(v, gk, bk):
        mu = jnp.mean(v, -1, keepdims=True)
        var = jnp.mean((v - mu) ** 2, -1, keepdims=True)
        return (v - mu) * jax.lax.rsqrt(var + EPS) * p[gk] + p[bk]

    def ff(v, pre):
        h = ln(v, pre + "_lng", pre + "_lnb")
        h = h @ p[pre + "_w1"] + p[pre + "_b1"]
        h = h * jax.nn.sigmoid(h)
        return h @ p[pre + "_w2"] + p[pre + "_b2"]

    x = x + 0.5 * ff(x, "ff1")
    xn = ln(x, "at_lng", "at_lnb")
    qk = xn @ p["at_wqk"]
    q, k = qk[..., :HEADS * DIM_QK], qk[..., HEADS * DIM_QK:]
    v = xn @ p["at_wv"]
    split = lambda t, d: t.reshape(B, N, HEADS, d).transpose(0, 2, 1, 3)
    q, k, vv = split(q, DIM_QK), split(k, DIM_QK), split(v, DV)
    dots = jnp.einsum("bhid,bhjd->bhij", q, k) * SCALE + p["rel_bias"][None]
    attn = jax.nn.softmax(dots, -1)
    out = jnp.einsum("bhij,bhjd->bhid", attn, vv)
    out = out.transpose(0, 2, 1, 3).reshape(B, N, DIM)
    x = x + (out @ p["at_wo"] + p["at_bo"])

    xn = ln(x, "cv_ln1g", "cv_ln1b")
    proj = xn @ p["cv_win"] + p["cv_bin"]
    glu = proj[..., :CONV_DIM] * jax.nn.sigmoid(proj[..., CONV_DIM:])
    padg = jnp.pad(glu, ((0, 0), (LORDER, RORDER), (0, 0)))
    conv = sum(padg[:, k:k + N, :] * p["cv_dww"][k] for k in range(KSIZE)) + p["cv_dwb"]
    y = ln(conv, "cv_ln2g", "cv_ln2b")
    y = y * jax.nn.sigmoid(y)
    x = x + (y @ p["cv_wout"] + p["cv_bout"])

    x = x + 0.5 * ff(x, "ff2")
    return ln(x, "pn_g", "pn_b")


# ---------------- deterministic parameter init -------------------------------------
def make_params():
    key = [jax.random.PRNGKey(0)]

    def rand(shape, scale=0.05):
        key[0], sub = jax.random.split(key[0])
        return (scale * jax.random.normal(sub, shape)).astype(jnp.float32)

    ones = lambda s: jnp.ones(s, jnp.float32)
    zeros = lambda s: jnp.zeros(s, jnp.float32)

    p = {}
    for pre in ("ff1", "ff2"):
        p[pre + "_lng"] = ones((1, DIM))
        p[pre + "_lnb"] = zeros((1, DIM))
        p[pre + "_w1"] = rand((DIM, DIM * FF_MULT))
        p[pre + "_b1"] = rand((1, DIM * FF_MULT), 0.02)
        p[pre + "_w2"] = rand((DIM * FF_MULT, DIM))
        p[pre + "_b2"] = rand((1, DIM), 0.02)
    # attention (PreNorm)
    p["at_lng"] = ones((1, DIM))
    p["at_lnb"] = zeros((1, DIM))
    p["at_wqk"] = rand((DIM, 2 * HEADS * DIM_QK))   # to_qk (bias=False)
    p["at_wv"] = rand((DIM, DIM))                   # to_v  (bias=False)
    p["at_wo"] = rand((DIM, DIM))                   # to_out
    p["at_bo"] = rand((1, DIM), 0.02)
    # relative-position table; the PyTorch __init__ zeros it — we use small random
    # values so the gather path is actually exercised (still deterministic).
    conv_table = rand((HEADS, 2 * MAX_POS_EMB + 1), 0.05)
    seq = jnp.arange(N)
    dist = jnp.clip(seq[None, :] - seq[:, None], -MAX_POS_EMB, MAX_POS_EMB) + MAX_POS_EMB
    p["rel_bias"] = conv_table[:, dist]             # (H, N, N), computed in JAX glue
    # conv module
    p["cv_ln1g"] = ones((1, DIM))
    p["cv_ln1b"] = zeros((1, DIM))
    p["cv_win"] = rand((DIM, 2 * CONV_DIM))
    p["cv_bin"] = rand((1, 2 * CONV_DIM), 0.02)
    p["cv_dww"] = rand((KSIZE, CONV_DIM), 0.1)      # depthwise Conv1d weight (K, C)
    p["cv_dwb"] = rand((1, CONV_DIM), 0.02)
    p["cv_ln2g"] = ones((1, CONV_DIM))
    p["cv_ln2b"] = zeros((1, CONV_DIM))
    p["cv_wout"] = rand((CONV_DIM, CONV_DIM))
    p["cv_bout"] = rand((1, CONV_DIM), 0.02)
    # post norm
    p["pn_g"] = ones((1, DIM))
    p["pn_b"] = zeros((1, DIM))
    return p


if __name__ == "__main__":
    params = make_params()
    x = jax.random.normal(jax.random.PRNGKey(0), (B, N, DIM), dtype=jnp.float32)

    out = jax.block_until_ready(conformer_block(x, params))
    ref = reference_forward(x, params)

    err = float(jnp.max(jnp.abs(out - ref)))
    assert out.shape == (B, N, DIM)
    # bf16 MXU operands (per perf review) widen the kernel-vs-f32-reference gap
    # to a few 1e-3 max-abs on O(1) activations; 1e-2 keeps comfortable margin.
    assert err < 1e-2, f"mismatch vs reference: {err}"
    print("KERNEL_OK")
</pallas_src>

<mosaic_0001>
module attributes {stable_mosaic.version = 11 : i64} {
  func.func @conformer_kernel(%arg0: memref<32x32xf32, #tpu.memory_space<vmem>>, %arg1: memref<32x768xbf16, #tpu.memory_space<vmem>>, %arg2: memref<128x256xbf16, #tpu.memory_space<vmem>>, %arg3: memref<20x128xf32, #tpu.memory_space<vmem>>, %arg4: memref<15x32x32xf32, #tpu.memory_space<vmem>>, %arg5: memref<4x32x32xf32, #tpu.memory_space<vmem>>, %arg6: memref<32x32xf32, #tpu.memory_space<vmem>>) attributes {dimension_semantics = [], scalar_prefetch = 0 : i64, scratch_operands = 0 : i64, tpu.core_type = #tpu.core_type<tc>} {
    %c0 = arith.constant 0 : index
    %c0_0 = arith.constant 0 : index
    %0 = vector.load %arg0[%c0, %c0_0] : memref<32x32xf32, #tpu.memory_space<vmem>>, vector<32x32xf32>
    %c0_1 = arith.constant 0 : index
    %c0_2 = arith.constant 0 : index
    %1 = vector.load %arg3[%c0_1, %c0_2] : memref<20x128xf32, #tpu.memory_space<vmem>>, vector<1x32xf32>
    %c1 = arith.constant 1 : index
    %c0_3 = arith.constant 0 : index
    %2 = vector.load %arg3[%c1, %c0_3] : memref<20x128xf32, #tpu.memory_space<vmem>>, vector<1x32xf32>
    %cst = arith.constant dense<0.000000e+00> : vector<32xf32>
    %3 = vector.multi_reduction <add>, %0, %cst [1] : vector<32x32xf32> to vector<32xf32>
    %4 = vector.shape_cast %3 : vector<32xf32> to vector<32x1xf32>
    %cst_4 = arith.constant 3.200000e+01 : f32
    %5 = vector.broadcast %cst_4 : f32 to vector<32x1xf32>
    %6 = arith.divf %4, %5 : vector<32x1xf32>
    %7 = vector.broadcast %6 : vector<32x1xf32> to vector<32x32xf32>
    %8 = arith.subf %0, %7 : vector<32x32xf32>
    %9 = arith.mulf %8, %8 : vector<32x32xf32>
    %cst_5 = arith.constant dense<0.000000e+00> : vector<32xf32>
    %10 = vector.multi_reduction <add>, %9, %cst_5 [1] : vector<32x32xf32> to vector<32xf32>
    %11 = vector.shape_cast %10 : vector<32xf32> to vector<32x1xf32>
    %cst_6 = arith.constant 3.200000e+01 : f32
    %12 = vector.broadcast %cst_6 : f32 to vector<32x1xf32>
    %13 = arith.divf %11, %12 : vector<32x1xf32>
    %cst_7 = arith.constant 9.99999974E-6 : f32
    %14 = vector.broadcast %cst_7 : f32 to vector<32x1xf32>
    %15 = arith.addf %13, %14 : vector<32x1xf32>
    %16 = math.rsqrt %15 : vector<32x1xf32>
    %17 = vector.broadcast %16 : vector<32x1xf32> to vector<32x32xf32>
    %18 = arith.mulf %8, %17 : vector<32x32xf32>
    %19 = vector.broadcast %1 : vector<1x32xf32> to vector<32x32xf32>
    %20 = arith.mulf %18, %19 : vector<32x32xf32>
    %21 = vector.broadcast %2 : vector<1x32xf32> to vector<32x32xf32>
    %22 = arith.addf %20, %21 : vector<32x32xf32>
    %23 = arith.truncf %22 : vector<32x32xf32> to vector<32x32xbf16>
    %c0_8 = arith.constant 0 : index
    %c0_9 = arith.constant 0 : index
    %24 = vector.load %arg1[%c0_8, %c0_9] : memref<32x768xbf16, #tpu.memory_space<vmem>>, vector<32x128xbf16>
    %cst_10 = arith.constant dense<0.000000e+00> : vector<32x128xf32>
    %25 = tpu.matmul %23, %24, %cst_10 {dimension_numbers = #tpu.dot_dimension_numbers<[1], [0], [0], [1], [0, 0, 1, 1], [], []>} : vector<32x32xbf16>, vector<32x128xbf16>, vector<32x128xf32> -> vector<32x128xf32>
    %c2 = arith.constant 2 : index
    %c0_11 = arith.constant 0 : index
    %26 = vector.load %arg3[%c2, %c0_11] : memref<20x128xf32, #tpu.memory_space<vmem>>, vector<1x128xf32>
    %27 = vector.broadcast %26 : vector<1x128xf32> to vector<32x128xf32>
    %28 = arith.addf %25, %27 : vector<32x128xf32>
    %29 = arith.negf %28 : vector<32x128xf32>
    %30 = math.exp %29 : vector<32x128xf32>
    %cst_12 = arith.constant 1.000000e+00 : f32
    %31 = vector.broadcast %cst_12 : f32 to vector<32x128xf32>
    %32 = arith.addf %31, %30 : vector<32x128xf32>
    %33 = arith.divf %31, %32 : vector<32x128xf32>
    %34 = arith.mulf %28, %33 : vector<32x128xf32>
    %35 = arith.truncf %34 : vector<32x128xf32> to vector<32x128xbf16>
    %c0_13 = arith.constant 0 : index
    %c0_14 = arith.constant 0 : index
    %36 = vector.load %arg2[%c0_13, %c0_14] : memref<128x256xbf16, #tpu.memory_space<vmem>>, vector<128x32xbf16>
    %cst_15 = arith.constant dense<0.000000e+00> : vector<32x32xf32>
    %37 = tpu.matmul %35, %36, %cst_15 {dimension_numbers = #tpu.dot_dimension_numbers<[1], [0], [0], [1], [0, 0, 1, 1], [], []>} : vector<32x128xbf16>, vector<128x32xbf16>, vector<32x32xf32> -> vector<32x32xf32>
    %c3 = arith.constant 3 : index
    %c0_16 = arith.constant 0 : index
    %38 = vector.load %arg3[%c3, %c0_16] : memref<20x128xf32, #tpu.memory_space<vmem>>, vector<1x32xf32>
    %39 = vector.broadcast %38 : vector<1x32xf32> to vector<32x32xf32>
    %40 = arith.addf %37, %39 : vector<32x32xf32>
    %cst_17 = arith.constant 5.000000e-01 : f32
    %41 = vector.broadcast %cst_17 : f32 to vector<32x32xf32>
    %42 = arith.mulf %41, %40 : vector<32x32xf32>
    %43 = arith.addf %0, %42 : vector<32x32xf32>
    %c4 = arith.constant 4 : index
    %c0_18 = arith.constant 0 : index
    %44 = vector.load %arg3[%c4, %c0_18] : memref<20x128xf32, #tpu.memory_space<vmem>>, vector<1x32xf32>
    %c5 = arith.constant 5 : index
    %c0_19 = arith.constant 0 : index
    %45 = vector.load %arg3[%c5, %c0_19] : memref<20x128xf32, #tpu.memory_space<vmem>>, vector<1x32xf32>
    %cst_20 = arith.constant dense<0.000000e+00> : vector<32xf32>
    %46 = vector.multi_reduction <add>, %43, %cst_20 [1] : vector<32x32xf32> to vector<32xf32>
    %47 = vector.shape_cast %46 : vector<32xf32> to vector<32x1xf32>
    %cst_21 = arith.constant 3.200000e+01 : f32
    %48 = vector.broadcast %cst_21 : f32 to vector<32x1xf32>
    %49 = arith.divf %47, %48 : vector<32x1xf32>
    %50 = vector.broadcast %49 : vector<32x1xf32> to vector<32x32xf32>
    %51 = arith.subf %43, %50 : vector<32x32xf32>
    %52 = arith.mulf %51, %51 : vector<32x32xf32>
    %cst_22 = arith.constant dense<0.000000e+00> : vector<32xf32>
    %53 = vector.multi_reduction <add>, %52, %cst_22 [1] : vector<32x32xf32> to vector<32xf32>
    %54 = vector.shape_cast %53 : vector<32xf32> to vector<32x1xf32>
    %cst_23 = arith.constant 3.200000e+01 : f32
    %55 = vector.broadcast %cst_23 : f32 to vector<32x1xf32>
    %56 = arith.divf %54, %55 : vector<32x1xf32>
    %cst_24 = arith.constant 9.99999974E-6 : f32
    %57 = vector.broadcast %cst_24 : f32 to vector<32x1xf32>
    %58 = arith.addf %56, %57 : vector<32x1xf32>
    %59 = math.rsqrt %58 : vector<32x1xf32>
    %60 = vector.broadcast %59 : vector<32x1xf32> to vector<32x32xf32>
    %61 = arith.mulf %51, %60 : vector<32x32xf32>
    %62 = vector.broadcast %44 : vector<1x32xf32> to vector<32x32xf32>
    %63 = arith.mulf %61, %62 : vector<32x32xf32>
    %64 = vector.broadcast %45 : vector<1x32xf32> to vector<32x32xf32>
    %65 = arith.addf %63, %64 : vector<32x32xf32>
    %66 = arith.truncf %65 : vector<32x32xf32> to vector<32x32xbf16>
    %c0_25 = arith.constant 0 : index
    %c256 = arith.constant 256 : index
    %67 = vector.load %arg1[%c0_25, %c256] : memref<32x768xbf16, #tpu.memory_space<vmem>>, vector<32x96xbf16>
    %cst_26 = arith.constant dense<0.000000e+00> : vector<32x96xf32>
    %68 = tpu.matmul %66, %67, %cst_26 {dimension_numbers = #tpu.dot_dimension_numbers<[1], [0], [0], [1], [0, 0, 1, 1], [], []>} : vector<32x32xbf16>, vector<32x96xbf16>, vector<32x96xf32> -> vector<32x96xf32>
    %69 = vector.extract_strided_slice %68 {offsets = [0, 32], sizes = [32, 32], strides = [1, 1]} : vector<32x96xf32> to vector<32x32xf32>
    %70 = tpu.transpose %69, [1, 0] : vector<32x32xf32> -> vector<32x32xf32>
    %71 = vector.extract_strided_slice %68 {offsets = [0, 0], sizes = [32, 8], strides = [1, 1]} : vector<32x96xf32> to vector<32x8xf32>
    %72 = arith.truncf %71 : vector<32x8xf32> to vector<32x8xbf16>
    %73 = vector.extract_strided_slice %70 {offsets = [0, 0], sizes = [8, 32], strides = [1, 1]} : vector<32x32xf32> to vector<8x32xf32>
    %74 = arith.truncf %73 : vector<8x32xf32> to vector<8x32xbf16>
    %75 = vector.extract_strided_slice %68 {offsets = [0, 64], sizes = [32, 8], strides = [1, 1]} : vector<32x96xf32> to vector<32x8xf32>
    %76 = arith.truncf %75 : vector<32x8xf32> to vector<32x8xbf16>
    %cst_27 = arith.constant dense<0.000000e+00> : vector<32x32xf32>
    %77 = tpu.matmul %72, %74, %cst_27 {dimension_numbers = #tpu.dot_dimension_numbers<[1], [0], [0], [1], [0, 0, 1, 1], [], []>} : vector<32x8xbf16>, vector<8x32xbf16>, vector<32x32xf32> -> vector<32x32xf32>
    %cst_28 = arith.constant 0.353553385 : f32
    %78 = vector.broadcast %cst_28 : f32 to vector<32x32xf32>
    %79 = arith.mulf %77, %78 : vector<32x32xf32>
    %c0_29 = arith.constant 0 : index
    %c0_30 = arith.constant 0 : index
    %c0_31 = arith.constant 0 : index
    %80 = vector.load %arg5[%c0_29, %c0_30, %c0_31] : memref<4x32x32xf32, #tpu.memory_space<vmem>>, vector<1x32x32xf32>
    %81 = vector.shape_cast %80 : vector<1x32x32xf32> to vector<32x32xf32>
    %82 = arith.addf %79, %81 : vector<32x32xf32>
    %cst_32 = arith.constant dense<0xFF800000> : vector<32xf32>
    %83 = vector.multi_reduction <maximumf>, %82, %cst_32 [1] : vector<32x32xf32> to vector<32xf32>
    %84 = vector.shape_cast %83 : vector<32xf32> to vector<32x1xf32>
    %85 = vector.broadcast %84 : vector<32x1xf32> to vector<32x32xf32>
    %86 = arith.subf %82, %85 : vector<32x32xf32>
    %87 = math.exp %86 : vector<32x32xf32>
    %cst_33 = arith.constant dense<0.000000e+00> : vector<32xf32>
    %88 = vector.multi_reduction <add>, %87, %cst_33 [1] : vector<32x32xf32> to vector<32xf32>
    %89 = vector.shape_cast %88 : vector<32xf32> to vector<32x1xf32>
    %90 = tpu.reciprocal %89 {approx = true} : vector<32x1xf32> -> vector<32x1xf32>
    %91 = vector.broadcast %90 : vector<32x1xf32> to vector<32x32xf32>
    %92 = arith.mulf %87, %91 : vector<32x32xf32>
    %93 = arith.truncf %92 : vector<32x32xf32> to vector<32x32xbf16>
    %cst_34 = arith.constant dense<0.000000e+00> : vector<32x8xf32>
    %94 = tpu.matmul %93, %76, %cst_34 {dimension_numbers = #tpu.dot_dimension_numbers<[1], [0], [0], [1], [0, 0, 1, 1], [], []>} : vector<32x32xbf16>, vector<32x8xbf16>, vector<32x8xf32> -> vector<32x8xf32>
    %95 = vector.extract_strided_slice %68 {offsets = [0, 8], sizes = [32, 8], strides = [1, 1]} : vector<32x96xf32> to vector<32x8xf32>
    %96 = arith.truncf %95 : vector<32x8xf32> to vector<32x8xbf16>
    %97 = vector.extract_strided_slice %70 {offsets = [8, 0], sizes = [8, 32], strides = [1, 1]} : vector<32x32xf32> to vector<8x32xf32>
    %98 = arith.truncf %97 : vector<8x32xf32> to vector<8x32xbf16>
    %99 = vector.extract_strided_slice %68 {offsets = [0, 72], sizes = [32, 8], strides = [1, 1]} : vector<32x96xf32> to vector<32x8xf32>
    %100 = arith.truncf %99 : vector<32x8xf32> to vector<32x8xbf16>
    %cst_35 = arith.constant dense<0.000000e+00> : vector<32x32xf32>
    %101 = tpu.matmul %96, %98, %cst_35 {dimension_numbers = #tpu.dot_dimension_numbers<[1], [0], [0], [1], [0, 0, 1, 1], [], []>} : vector<32x8xbf16>, vector<8x32xbf16>, vector<32x32xf32> -> vector<32x32xf32>
    %cst_36 = arith.constant 0.353553385 : f32
    %102 = vector.broadcast %cst_36 : f32 to vector<32x32xf32>
    %103 = arith.mulf %101, %102 : vector<32x32xf32>
    %c1_37 = arith.constant 1 : index
    %c0_38 = arith.constant 0 : index
    %c0_39 = arith.constant 0 : index
    %104 = vector.load %arg5[%c1_37, %c0_38, %c0_39] : memref<4x32x32xf32, #tpu.memory_space<vmem>>, vector<1x32x32xf32>
    %105 = vector.shape_cast %104 : vector<1x32x32xf32> to vector<32x32xf32>
    %106 = arith.addf %103, %105 : vector<32x32xf32>
    %cst_40 = arith.constant dense<0xFF800000> : vector<32xf32>
    %107 = vector.multi_reduction <maximumf>, %106, %cst_40 [1] : vector<32x32xf32> to vector<32xf32>
    %108 = vector.shape_cast %107 : vector<32xf32> to vector<32x1xf32>
    %109 = vector.broadcast %108 : vector<32x1xf32> to vector<32x32xf32>
    %110 = arith.subf %106, %109 : vector<32x32xf32>
    %111 = math.exp %110 : vector<32x32xf32>
    %cst_41 = arith.constant dense<0.000000e+00> : vector<32xf32>
    %112 = vector.multi_reduction <add>, %111, %cst_41 [1] : vector<32x32xf32> to vector<32xf32>
    %113 = vector.shape_cast %112 : vector<32xf32> to vector<32x1xf32>
    %114 = tpu.reciprocal %113 {approx = true} : vector<32x1xf32> -> vector<32x1xf32>
    %115 = vector.broadcast %114 : vector<32x1xf32> to vector<32x32xf32>
    %116 = arith.mulf %111, %115 : vector<32x32xf32>
    %117 = arith.truncf %116 : vector<32x32xf32> to vector<32x32xbf16>
    %cst_42 = arith.constant dense<0.000000e+00> : vector<32x8xf32>
    %118 = tpu.matmul %117, %100, %cst_42 {dimension_numbers = #tpu.dot_dimension_numbers<[1], [0], [0], [1], [0, 0, 1, 1], [], []>} : vector<32x32xbf16>, vector<32x8xbf16>, vector<32x8xf32> -> vector<32x8xf32>
    %119 = vector.extract_strided_slice %68 {offsets = [0, 16], sizes = [32, 8], strides = [1, 1]} : vector<32x96xf32> to vector<32x8xf32>
    %120 = arith.truncf %119 : vector<32x8xf32> to vector<32x8xbf16>
    %121 = vector.extract_strided_slice %70 {offsets = [16, 0], sizes = [8, 32], strides = [1, 1]} : vector<32x32xf32> to vector<8x32xf32>
    %122 = arith.truncf %121 : vector<8x32xf32> to vector<8x32xbf16>
    %123 = vector.extract_strided_slice %68 {offsets = [0, 80], sizes = [32, 8], strides = [1, 1]} : vector<32x96xf32> to vector<32x8xf32>
    %124 = arith.truncf %123 : vector<32x8xf32> to vector<32x8xbf16>
    %cst_43 = arith.constant dense<0.000000e+00> : vector<32x32xf32>
    %125 = tpu.matmul %120, %122, %cst_43 {dimension_numbers = #tpu.dot_dimension_numbers<[1], [0], [0], [1], [0, 0, 1, 1], [], []>} : vector<32x8xbf16>, vector<8x32xbf16>, vector<32x32xf32> -> vector<32x32xf32>
    %cst_44 = arith.constant 0.353553385 : f32
    %126 = vector.broadcast %cst_44 : f32 to vector<32x32xf32>
    %127 = arith.mulf %125, %126 : vector<32x32xf32>
    %c2_45 = arith.constant 2 : index
    %c0_46 = arith.constant 0 : index
    %c0_47 = arith.constant 0 : index
    %128 = vector.load %arg5[%c2_45, %c0_46, %c0_47] : memref<4x32x32xf32, #tpu.memory_space<vmem>>, vector<1x32x32xf32>
    %129 = vector.shape_cast %128 : vector<1x32x32xf32> to vector<32x32xf32>
    %130 = arith.addf %127, %129 : vector<32x32xf32>
    %cst_48 = arith.constant dense<0xFF800000> : vector<32xf32>
    %131 = vector.multi_reduction <maximumf>, %130, %cst_48 [1] : vector<32x32xf32> to vector<32xf32>
    %132 = vector.shape_cast %131 : vector<32xf32> to vector<32x1xf32>
    %133 = vector.broadcast %132 : vector<32x1xf32> to vector<32x32xf32>
    %134 = arith.subf %130, %133 : vector<32x32xf32>
    %135 = math.exp %134 : vector<32x32xf32>
    %cst_49 = arith.constant dense<0.000000e+00> : vector<32xf32>
    %136 = vector.multi_reduction <add>, %135, %cst_49 [1] : vector<32x32xf32> to vector<32xf32>
    %137 = vector.shape_cast %136 : vector<32xf32> to vector<32x1xf32>
    %138 = tpu.reciprocal %137 {approx = true} : vector<32x1xf32> -> vector<32x1xf32>
    %139 = vector.broadcast %138 : vector<32x1xf32> to vector<32x32xf32>
    %140 = arith.mulf %135, %139 : vector<32x32xf32>
    %141 = arith.truncf %140 : vector<32x32xf32> to vector<32x32xbf16>
    %cst_50 = arith.constant dense<0.000000e+00> : vector<32x8xf32>
    %142 = tpu.matmul %141, %124, %cst_50 {dimension_numbers = #tpu.dot_dimension_numbers<[1], [0], [0], [1], [0, 0, 1, 1], [], []>} : vector<32x32xbf16>, vector<32x8xbf16>, vector<32x8xf32> -> vector<32x8xf32>
    %143 = vector.extract_strided_slice %68 {offsets = [0, 24], sizes = [32, 8], strides = [1, 1]} : vector<32x96xf32> to vector<32x8xf32>
    %144 = arith.truncf %143 : vector<32x8xf32> to vector<32x8xbf16>
    %145 = vector.extract_strided_slice %70 {offsets = [24, 0], sizes = [8, 32], strides = [1, 1]} : vector<32x32xf32> to vector<8x32xf32>
    %146 = arith.truncf %145 : vector<8x32xf32> to vector<8x32xbf16>
    %147 = vector.extract_strided_slice %68 {offsets = [0, 88], sizes = [32, 8], strides = [1, 1]} : vector<32x96xf32> to vector<32x8xf32>
    %148 = arith.truncf %147 : vector<32x8xf32> to vector<32x8xbf16>
    %cst_51 = arith.constant dense<0.000000e+00> : vector<32x32xf32>
    %149 = tpu.matmul %144, %146, %cst_51 {dimension_numbers = #tpu.dot_dimension_numbers<[1], [0], [0], [1], [0, 0, 1, 1], [], []>} : vector<32x8xbf16>, vector<8x32xbf16>, vector<32x32xf32> -> vector<32x32xf32>
    %cst_52 = arith.constant 0.353553385 : f32
    %150 = vector.broadcast %cst_52 : f32 to vector<32x32xf32>
    %151 = arith.mulf %149, %150 : vector<32x32xf32>
    %c3_53 = arith.constant 3 : index
    %c0_54 = arith.constant 0 : index
    %c0_55 = arith.constant 0 : index
    %152 = vector.load %arg5[%c3_53, %c0_54, %c0_55] : memref<4x32x32xf32, #tpu.memory_space<vmem>>, vector<1x32x32xf32>
    %153 = vector.shape_cast %152 : vector<1x32x32xf32> to vector<32x32xf32>
    %154 = arith.addf %151, %153 : vector<32x32xf32>
    %cst_56 = arith.constant dense<0xFF800000> : vector<32xf32>
    %155 = vector.multi_reduction <maximumf>, %154, %cst_56 [1] : vector<32x32xf32> to vector<32xf32>
    %156 = vector.shape_cast %155 : vector<32xf32> to vector<32x1xf32>
    %157 = vector.broadcast %156 : vector<32x1xf32> to vector<32x32xf32>
    %158 = arith.subf %154, %157 : vector<32x32xf32>
    %159 = math.exp %158 : vector<32x32xf32>
    %cst_57 = arith.constant dense<0.000000e+00> : vector<32xf32>
    %160 = vector.multi_reduction <add>, %159, %cst_57 [1] : vector<32x32xf32> to vector<32xf32>
    %161 = vector.shape_cast %160 : vector<32xf32> to vector<32x1xf32>
    %162 = tpu.reciprocal %161 {approx = true} : vector<32x1xf32> -> vector<32x1xf32>
    %163 = vector.broadcast %162 : vector<32x1xf32> to vector<32x32xf32>
    %164 = arith.mulf %159, %163 : vector<32x32xf32>
    %165 = arith.truncf %164 : vector<32x32xf32> to vector<32x32xbf16>
    %cst_58 = arith.constant dense<0.000000e+00> : vector<32x8xf32>
    %166 = tpu.matmul %165, %148, %cst_58 {dimension_numbers = #tpu.dot_dimension_numbers<[1], [0], [0], [1], [0, 0, 1, 1], [], []>} : vector<32x32xbf16>, vector<32x8xbf16>, vector<32x8xf32> -> vector<32x8xf32>
    %167 = tpu.concatenate %94, %118, %142, %166 in 1 : vector<32x8xf32>, vector<32x8xf32>, vector<32x8xf32>, vector<32x8xf32> -> vector<32x32xf32>
    %168 = arith.truncf %167 : vector<32x32xf32> to vector<32x32xbf16>
    %c0_59 = arith.constant 0 : index
    %c384 = arith.constant 384 : index
    %169 = vector.load %arg1[%c0_59, %c384] : memref<32x768xbf16, #tpu.memory_space<vmem>>, vector<32x32xbf16>
    %cst_60 = arith.constant dense<0.000000e+00> : vector<32x32xf32>
    %170 = tpu.matmul %168, %169, %cst_60 {dimension_numbers = #tpu.dot_dimension_numbers<[1], [0], [0], [1], [0, 0, 1, 1], [], []>} : vector<32x32xbf16>, vector<32x32xbf16>, vector<32x32xf32> -> vector<32x32xf32>
    %c6 = arith.constant 6 : index
    %c0_61 = arith.constant 0 : index
    %171 = vector.load %arg3[%c6, %c0_61] : memref<20x128xf32, #tpu.memory_space<vmem>>, vector<1x32xf32>
    %172 = vector.broadcast %171 : vector<1x32xf32> to vector<32x32xf32>
    %173 = arith.addf %170, %172 : vector<32x32xf32>
    %174 = arith.addf %43, %173 : vector<32x32xf32>
    %c7 = arith.constant 7 : index
    %c0_62 = arith.constant 0 : index
    %175 = vector.load %arg3[%c7, %c0_62] : memref<20x128xf32, #tpu.memory_space<vmem>>, vector<1x32xf32>
    %c8 = arith.constant 8 : index
    %c0_63 = arith.constant 0 : index
    %176 = vector.load %arg3[%c8, %c0_63] : memref<20x128xf32, #tpu.memory_space<vmem>>, vector<1x32xf32>
    %cst_64 = arith.constant dense<0.000000e+00> : vector<32xf32>
    %177 = vector.multi_reduction <add>, %174, %cst_64 [1] : vector<32x32xf32> to vector<32xf32>
    %178 = vector.shape_cast %177 : vector<32xf32> to vector<32x1xf32>
    %cst_65 = arith.constant 3.200000e+01 : f32
    %179 = vector.broadcast %cst_65 : f32 to vector<32x1xf32>
    %180 = arith.divf %178, %179 : vector<32x1xf32>
    %181 = vector.broadcast %180 : vector<32x1xf32> to vector<32x32xf32>
    %182 = arith.subf %174, %181 : vector<32x32xf32>
    %183 = arith.mulf %182, %182 : vector<32x32xf32>
    %cst_66 = arith.constant dense<0.000000e+00> : vector<32xf32>
    %184 = vector.multi_reduction <add>, %183, %cst_66 [1] : vector<32x32xf32> to vector<32xf32>
    %185 = vector.shape_cast %184 : vector<32xf32> to vector<32x1xf32>
    %cst_67 = arith.constant 3.200000e+01 : f32
    %186 = vector.broadcast %cst_67 : f32 to vector<32x1xf32>
    %187 = arith.divf %185, %186 : vector<32x1xf32>
    %cst_68 = arith.constant 9.99999974E-6 : f32
    %188 = vector.broadcast %cst_68 : f32 to vector<32x1xf32>
    %189 = arith.addf %187, %188 : vector<32x1xf32>
    %190 = math.rsqrt %189 : vector<32x1xf32>
    %191 = vector.broadcast %190 : vector<32x1xf32> to vector<32x32xf32>
    %192 = arith.mulf %182, %191 : vector<32x32xf32>
    %193 = vector.broadcast %175 : vector<1x32xf32> to vector<32x32xf32>
    %194 = arith.mulf %192, %193 : vector<32x32xf32>
    %195 = vector.broadcast %176 : vector<1x32xf32> to vector<32x32xf32>
    %196 = arith.addf %194, %195 : vector<32x32xf32>
    %197 = arith.truncf %196 : vector<32x32xf32> to vector<32x32xbf16>
    %c0_69 = arith.constant 0 : index
    %c512 = arith.constant 512 : index
    %198 = vector.load %arg1[%c0_69, %c512] : memref<32x768xbf16, #tpu.memory_space<vmem>>, vector<32x64xbf16>
    %cst_70 = arith.constant dense<0.000000e+00> : vector<32x64xf32>
    %199 = tpu.matmul %197, %198, %cst_70 {dimension_numbers = #tpu.dot_dimension_numbers<[1], [0], [0], [1], [0, 0, 1, 1], [], []>} : vector<32x32xbf16>, vector<32x64xbf16>, vector<32x64xf32> -> vector<32x64xf32>
    %c9 = arith.constant 9 : index
    %c0_71 = arith.constant 0 : index
    %200 = vector.load %arg3[%c9, %c0_71] : memref<20x128xf32, #tpu.memory_space<vmem>>, vector<1x64xf32>
    %201 = vector.broadcast %200 : vector<1x64xf32> to vector<32x64xf32>
    %202 = arith.addf %199, %201 : vector<32x64xf32>
    %203 = vector.extract_strided_slice %202 {offsets = [0, 0], sizes = [32, 32], strides = [1, 1]} : vector<32x64xf32> to vector<32x32xf32>
    %204 = vector.extract_strided_slice %202 {offsets = [0, 32], sizes = [32, 32], strides = [1, 1]} : vector<32x64xf32> to vector<32x32xf32>
    %205 = arith.negf %204 : vector<32x32xf32>
    %206 = math.exp %205 : vector<32x32xf32>
    %cst_72 = arith.constant 1.000000e+00 : f32
    %207 = vector.broadcast %cst_72 : f32 to vector<32x32xf32>
    %208 = arith.addf %207, %206 : vector<32x32xf32>
    %209 = arith.divf %207, %208 : vector<32x32xf32>
    %210 = arith.mulf %203, %209 : vector<32x32xf32>
    %c7_i32 = arith.constant 7 : i32
    %211 = tpu.dynamic_rotate %210 by %c7_i32 dim 0 : vector<32x32xf32>, i32 -> vector<32x32xf32>
    %c0_73 = arith.constant 0 : index
    %c0_74 = arith.constant 0 : index
    %c0_75 = arith.constant 0 : index
    %212 = vector.load %arg4[%c0_73, %c0_74, %c0_75] : memref<15x32x32xf32, #tpu.memory_space<vmem>>, vector<1x32x32xf32>
    %213 = vector.shape_cast %212 : vector<1x32x32xf32> to vector<32x32xf32>
    %214 = arith.mulf %211, %213 : vector<32x32xf32>
    %c6_i32 = arith.constant 6 : i32
    %215 = tpu.dynamic_rotate %210 by %c6_i32 dim 0 : vector<32x32xf32>, i32 -> vector<32x32xf32>
    %c1_76 = arith.constant 1 : index
    %c0_77 = arith.constant 0 : index
    %c0_78 = arith.constant 0 : index
    %216 = vector.load %arg4[%c1_76, %c0_77, %c0_78] : memref<15x32x32xf32, #tpu.memory_space<vmem>>, vector<1x32x32xf32>
    %217 = vector.shape_cast %216 : vector<1x32x32xf32> to vector<32x32xf32>
    %218 = arith.mulf %215, %217 : vector<32x32xf32>
    %c5_i32 = arith.constant 5 : i32
    %219 = tpu.dynamic_rotate %210 by %c5_i32 dim 0 : vector<32x32xf32>, i32 -> vector<32x32xf32>
    %c2_79 = arith.constant 2 : index
    %c0_80 = arith.constant 0 : index
    %c0_81 = arith.constant 0 : index
    %220 = vector.load %arg4[%c2_79, %c0_80, %c0_81] : memref<15x32x32xf32, #tpu.memory_space<vmem>>, vector<1x32x32xf32>
    %221 = vector.shape_cast %220 : vector<1x32x32xf32> to vector<32x32xf32>
    %222 = arith.mulf %219, %221 : vector<32x32xf32>
    %c4_i32 = arith.constant 4 : i32
    %223 = tpu.dynamic_rotate %210 by %c4_i32 dim 0 : vector<32x32xf32>, i32 -> vector<32x32xf32>
    %c3_82 = arith.constant 3 : index
    %c0_83 = arith.constant 0 : index
    %c0_84 = arith.constant 0 : index
    %224 = vector.load %arg4[%c3_82, %c0_83, %c0_84] : memref<15x32x32xf32, #tpu.memory_space<vmem>>, vector<1x32x32xf32>
    %225 = vector.shape_cast %224 : vector<1x32x32xf32> to vector<32x32xf32>
    %226 = arith.mulf %223, %225 : vector<32x32xf32>
    %c3_i32 = arith.constant 3 : i32
    %227 = tpu.dynamic_rotate %210 by %c3_i32 dim 0 : vector<32x32xf32>, i32 -> vector<32x32xf32>
    %c4_85 = arith.constant 4 : index
    %c0_86 = arith.constant 0 : index
    %c0_87 = arith.constant 0 : index
    %228 = vector.load %arg4[%c4_85, %c0_86, %c0_87] : memref<15x32x32xf32, #tpu.memory_space<vmem>>, vector<1x32x32xf32>
    %229 = vector.shape_cast %228 : vector<1x32x32xf32> to vector<32x32xf32>
    %230 = arith.mulf %227, %229 : vector<32x32xf32>
    %c2_i32 = arith.constant 2 : i32
    %231 = tpu.dynamic_rotate %210 by %c2_i32 dim 0 : vector<32x32xf32>, i32 -> vector<32x32xf32>
    %c5_88 = arith.constant 5 : index
    %c0_89 = arith.constant 0 : index
    %c0_90 = arith.constant 0 : index
    %232 = vector.load %arg4[%c5_88, %c0_89, %c0_90] : memref<15x32x32xf32, #tpu.memory_space<vmem>>, vector<1x32x32xf32>
    %233 = vector.shape_cast %232 : vector<1x32x32xf32> to vector<32x32xf32>
    %234 = arith.mulf %231, %233 : vector<32x32xf32>
    %c1_i32 = arith.constant 1 : i32
    %235 = tpu.dynamic_rotate %210 by %c1_i32 dim 0 : vector<32x32xf32>, i32 -> vector<32x32xf32>
    %c6_91 = arith.constant 6 : index
    %c0_92 = arith.constant 0 : index
    %c0_93 = arith.constant 0 : index
    %236 = vector.load %arg4[%c6_91, %c0_92, %c0_93] : memref<15x32x32xf32, #tpu.memory_space<vmem>>, vector<1x32x32xf32>
    %237 = vector.shape_cast %236 : vector<1x32x32xf32> to vector<32x32xf32>
    %238 = arith.mulf %235, %237 : vector<32x32xf32>
    %c7_94 = arith.constant 7 : index
    %c0_95 = arith.constant 0 : index
    %c0_96 = arith.constant 0 : index
    %239 = vector.load %arg4[%c7_94, %c0_95, %c0_96] : memref<15x32x32xf32, #tpu.memory_space<vmem>>, vector<1x32x32xf32>
    %240 = vector.shape_cast %239 : vector<1x32x32xf32> to vector<32x32xf32>
    %241 = arith.mulf %210, %240 : vector<32x32xf32>
    %c31_i32 = arith.constant 31 : i32
    %242 = tpu.dynamic_rotate %210 by %c31_i32 dim 0 : vector<32x32xf32>, i32 -> vector<32x32xf32>
    %c8_97 = arith.constant 8 : index
    %c0_98 = arith.constant 0 : index
    %c0_99 = arith.constant 0 : index
    %243 = vector.load %arg4[%c8_97, %c0_98, %c0_99] : memref<15x32x32xf32, #tpu.memory_space<vmem>>, vector<1x32x32xf32>
    %244 = vector.shape_cast %243 : vector<1x32x32xf32> to vector<32x32xf32>
    %245 = arith.mulf %242, %244 : vector<32x32xf32>
    %c30_i32 = arith.constant 30 : i32
    %246 = tpu.dynamic_rotate %210 by %c30_i32 dim 0 : vector<32x32xf32>, i32 -> vector<32x32xf32>
    %c9_100 = arith.constant 9 : index
    %c0_101 = arith.constant 0 : index
    %c0_102 = arith.constant 0 : index
    %247 = vector.load %arg4[%c9_100, %c0_101, %c0_102] : memref<15x32x32xf32, #tpu.memory_space<vmem>>, vector<1x32x32xf32>
    %248 = vector.shape_cast %247 : vector<1x32x32xf32> to vector<32x32xf32>
    %249 = arith.mulf %246, %248 : vector<32x32xf32>
    %c29_i32 = arith.constant 29 : i32
    %250 = tpu.dynamic_rotate %210 by %c29_i32 dim 0 : vector<32x32xf32>, i32 -> vector<32x32xf32>
    %c10 = arith.constant 10 : index
    %c0_103 = arith.constant 0 : index
    %c0_104 = arith.constant 0 : index
    %251 = vector.load %arg4[%c10, %c0_103, %c0_104] : memref<15x32x32xf32, #tpu.memory_space<vmem>>, vector<1x32x32xf32>
    %252 = vector.shape_cast %251 : vector<1x32x32xf32> to vector<32x32xf32>
    %253 = arith.mulf %250, %252 : vector<32x32xf32>
    %c28_i32 = arith.constant 28 : i32
    %254 = tpu.dynamic_rotate %210 by %c28_i32 dim 0 : vector<32x32xf32>, i32 -> vector<32x32xf32>
    %c11 = arith.constant 11 : index
    %c0_105 = arith.constant 0 : index
    %c0_106 = arith.constant 0 : index
    %255 = vector.load %arg4[%c11, %c0_105, %c0_106] : memref<15x32x32xf32, #tpu.memory_space<vmem>>, vector<1x32x32xf32>
    %256 = vector.shape_cast %255 : vector<1x32x32xf32> to vector<32x32xf32>
    %257 = arith.mulf %254, %256 : vector<32x32xf32>
    %c27_i32 = arith.constant 27 : i32
    %258 = tpu.dynamic_rotate %210 by %c27_i32 dim 0 : vector<32x32xf32>, i32 -> vector<32x32xf32>
    %c12 = arith.constant 12 : index
    %c0_107 = arith.constant 0 : index
    %c0_108 = arith.constant 0 : index
    %259 = vector.load %arg4[%c12, %c0_107, %c0_108] : memref<15x32x32xf32, #tpu.memory_space<vmem>>, vector<1x32x32xf32>
    %260 = vector.shape_cast %259 : vector<1x32x32xf32> to vector<32x32xf32>
    %261 = arith.mulf %258, %260 : vector<32x32xf32>
    %c26_i32 = arith.constant 26 : i32
    %262 = tpu.dynamic_rotate %210 by %c26_i32 dim 0 : vector<32x32xf32>, i32 -> vector<32x32xf32>
    %c13 = arith.constant 13 : index
    %c0_109 = arith.constant 0 : index
    %c0_110 = arith.constant 0 : index
    %263 = vector.load %arg4[%c13, %c0_109, %c0_110] : memref<15x32x32xf32, #tpu.memory_space<vmem>>, vector<1x32x32xf32>
    %264 = vector.shape_cast %263 : vector<1x32x32xf32> to vector<32x32xf32>
    %265 = arith.mulf %262, %264 : vector<32x32xf32>
    %c25_i32 = arith.constant 25 : i32
    %266 = tpu.dynamic_rotate %210 by %c25_i32 dim 0 : vector<32x32xf32>, i32 -> vector<32x32xf32>
    %c14 = arith.constant 14 : index
    %c0_111 = arith.constant 0 : index
    %c0_112 = arith.constant 0 : index
    %267 = vector.load %arg4[%c14, %c0_111, %c0_112] : memref<15x32x32xf32, #tpu.memory_space<vmem>>, vector<1x32x32xf32>
    %268 = vector.shape_cast %267 : vector<1x32x32xf32> to vector<32x32xf32>
    %269 = arith.mulf %266, %268 : vector<32x32xf32>
    %270 = arith.addf %214, %222 : vector<32x32xf32>
    %271 = arith.addf %270, %230 : vector<32x32xf32>
    %272 = arith.addf %271, %238 : vector<32x32xf32>
    %273 = arith.addf %272, %245 : vector<32x32xf32>
    %274 = arith.addf %273, %253 : vector<32x32xf32>
    %275 = arith.addf %274, %261 : vector<32x32xf32>
    %276 = arith.addf %275, %269 : vector<32x32xf32>
    %277 = arith.addf %218, %226 : vector<32x32xf32>
    %278 = arith.addf %277, %234 : vector<32x32xf32>
    %279 = arith.addf %278, %241 : vector<32x32xf32>
    %280 = arith.addf %279, %249 : vector<32x32xf32>
    %281 = arith.addf %280, %257 : vector<32x32xf32>
    %282 = arith.addf %281, %265 : vector<32x32xf32>
    %283 = arith.addf %276, %282 : vector<32x32xf32>
    %c10_113 = arith.constant 10 : index
    %c0_114 = arith.constant 0 : index
    %284 = vector.load %arg3[%c10_113, %c0_114] : memref<20x128xf32, #tpu.memory_space<vmem>>, vector<1x32xf32>
    %285 = vector.broadcast %284 : vector<1x32xf32> to vector<32x32xf32>
    %286 = arith.addf %283, %285 : vector<32x32xf32>
    %c11_115 = arith.constant 11 : index
    %c0_116 = arith.constant 0 : index
    %287 = vector.load %arg3[%c11_115, %c0_116] : memref<20x128xf32, #tpu.memory_space<vmem>>, vector<1x32xf32>
    %c12_117 = arith.constant 12 : index
    %c0_118 = arith.constant 0 : index
    %288 = vector.load %arg3[%c12_117, %c0_118] : memref<20x128xf32, #tpu.memory_space<vmem>>, vector<1x32xf32>
    %cst_119 = arith.constant dense<0.000000e+00> : vector<32xf32>
    %289 = vector.multi_reduction <add>, %286, %cst_119 [1] : vector<32x32xf32> to vector<32xf32>
    %290 = vector.shape_cast %289 : vector<32xf32> to vector<32x1xf32>
    %cst_120 = arith.constant 3.200000e+01 : f32
    %291 = vector.broadcast %cst_120 : f32 to vector<32x1xf32>
    %292 = arith.divf %290, %291 : vector<32x1xf32>
    %293 = vector.broadcast %292 : vector<32x1xf32> to vector<32x32xf32>
    %294 = arith.subf %286, %293 : vector<32x32xf32>
    %295 = arith.mulf %294, %294 : vector<32x32xf32>
    %cst_121 = arith.constant dense<0.000000e+00> : vector<32xf32>
    %296 = vector.multi_reduction <add>, %295, %cst_121 [1] : vector<32x32xf32> to vector<32xf32>
    %297 = vector.shape_cast %296 : vector<32xf32> to vector<32x1xf32>
    %cst_122 = arith.constant 3.200000e+01 : f32
    %298 = vector.broadcast %cst_122 : f32 to vector<32x1xf32>
    %299 = arith.divf %297, %298 : vector<32x1xf32>
    %cst_123 = arith.constant 9.99999974E-6 : f32
    %300 = vector.broadcast %cst_123 : f32 to vector<32x1xf32>
    %301 = arith.addf %299, %300 : vector<32x1xf32>
    %302 = math.rsqrt %301 : vector<32x1xf32>
    %303 = vector.broadcast %302 : vector<32x1xf32> to vector<32x32xf32>
    %304 = arith.mulf %294, %303 : vector<32x32xf32>
    %305 = vector.broadcast %287 : vector<1x32xf32> to vector<32x32xf32>
    %306 = arith.mulf %304, %305 : vector<32x32xf32>
    %307 = vector.broadcast %288 : vector<1x32xf32> to vector<32x32xf32>
    %308 = arith.addf %306, %307 : vector<32x32xf32>
    %309 = arith.negf %308 : vector<32x32xf32>
    %310 = math.exp %309 : vector<32x32xf32>
    %cst_124 = arith.constant 1.000000e+00 : f32
    %311 = vector.broadcast %cst_124 : f32 to vector<32x32xf32>
    %312 = arith.addf %311, %310 : vector<32x32xf32>
    %313 = arith.divf %311, %312 : vector<32x32xf32>
    %314 = arith.mulf %308, %313 : vector<32x32xf32>
    %315 = arith.truncf %314 : vector<32x32xf32> to vector<32x32xbf16>
    %c0_125 = arith.constant 0 : index
    %c640 = arith.constant 640 : index
    %316 = vector.load %arg1[%c0_125, %c640] : memref<32x768xbf16, #tpu.memory_space<vmem>>, vector<32x32xbf16>
    %cst_126 = arith.constant dense<0.000000e+00> : vector<32x32xf32>
    %317 = tpu.matmul %315, %316, %cst_126 {dimension_numbers = #tpu.dot_dimension_numbers<[1], [0], [0], [1], [0, 0, 1, 1], [], []>} : vector<32x32xbf16>, vector<32x32xbf16>, vector<32x32xf32> -> vector<32x32xf32>
    %318 = arith.addf %174, %317 : vector<32x32xf32>
    %c13_127 = arith.constant 13 : index
    %c0_128 = arith.constant 0 : index
    %319 = vector.load %arg3[%c13_127, %c0_128] : memref<20x128xf32, #tpu.memory_space<vmem>>, vector<1x32xf32>
    %320 = vector.broadcast %319 : vector<1x32xf32> to vector<32x32xf32>
    %321 = arith.addf %318, %320 : vector<32x32xf32>
    %c14_129 = arith.constant 14 : index
    %c0_130 = arith.constant 0 : index
    %322 = vector.load %arg3[%c14_129, %c0_130] : memref<20x128xf32, #tpu.memory_space<vmem>>, vector<1x32xf32>
    %c15 = arith.constant 15 : index
    %c0_131 = arith.constant 0 : index
    %323 = vector.load %arg3[%c15, %c0_131] : memref<20x128xf32, #tpu.memory_space<vmem>>, vector<1x32xf32>
    %cst_132 = arith.constant dense<0.000000e+00> : vector<32xf32>
    %324 = vector.multi_reduction <add>, %321, %cst_132 [1] : vector<32x32xf32> to vector<32xf32>
    %325 = vector.shape_cast %324 : vector<32xf32> to vector<32x1xf32>
    %cst_133 = arith.constant 3.200000e+01 : f32
    %326 = vector.broadcast %cst_133 : f32 to vector<32x1xf32>
    %327 = arith.divf %325, %326 : vector<32x1xf32>
    %328 = vector.broadcast %327 : vector<32x1xf32> to vector<32x32xf32>
    %329 = arith.subf %321, %328 : vector<32x32xf32>
    %330 = arith.mulf %329, %329 : vector<32x32xf32>
    %cst_134 = arith.constant dense<0.000000e+00> : vector<32xf32>
    %331 = vector.multi_reduction <add>, %330, %cst_134 [1] : vector<32x32xf32> to vector<32xf32>
    %332 = vector.shape_cast %331 : vector<32xf32> to vector<32x1xf32>
    %cst_135 = arith.constant 3.200000e+01 : f32
    %333 = vector.broadcast %cst_135 : f32 to vector<32x1xf32>
    %334 = arith.divf %332, %333 : vector<32x1xf32>
    %cst_136 = arith.constant 9.99999974E-6 : f32
    %335 = vector.broadcast %cst_136 : f32 to vector<32x1xf32>
    %336 = arith.addf %334, %335 : vector<32x1xf32>
    %337 = math.rsqrt %336 : vector<32x1xf32>
    %338 = vector.broadcast %337 : vector<32x1xf32> to vector<32x32xf32>
    %339 = arith.mulf %329, %338 : vector<32x32xf32>
    %340 = vector.broadcast %322 : vector<1x32xf32> to vector<32x32xf32>
    %341 = arith.mulf %339, %340 : vector<32x32xf32>
    %342 = vector.broadcast %323 : vector<1x32xf32> to vector<32x32xf32>
    %343 = arith.addf %341, %342 : vector<32x32xf32>
    %344 = arith.truncf %343 : vector<32x32xf32> to vector<32x32xbf16>
    %c0_137 = arith.constant 0 : index
    %c128 = arith.constant 128 : index
    %345 = vector.load %arg1[%c0_137, %c128] : memref<32x768xbf16, #tpu.memory_space<vmem>>, vector<32x128xbf16>
    %cst_138 = arith.constant dense<0.000000e+00> : vector<32x128xf32>
    %346 = tpu.matmul %344, %345, %cst_138 {dimension_numbers = #tpu.dot_dimension_numbers<[1], [0], [0], [1], [0, 0, 1, 1], [], []>} : vector<32x32xbf16>, vector<32x128xbf16>, vector<32x128xf32> -> vector<32x128xf32>
    %c16 = arith.constant 16 : index
    %c0_139 = arith.constant 0 : index
    %347 = vector.load %arg3[%c16, %c0_139] : memref<20x128xf32, #tpu.memory_space<vmem>>, vector<1x128xf32>
    %348 = vector.broadcast %347 : vector<1x128xf32> to vector<32x128xf32>
    %349 = arith.addf %346, %348 : vector<32x128xf32>
    %350 = arith.negf %349 : vector<32x128xf32>
    %351 = math.exp %350 : vector<32x128xf32>
    %cst_140 = arith.constant 1.000000e+00 : f32
    %352 = vector.broadcast %cst_140 : f32 to vector<32x128xf32>
    %353 = arith.addf %352, %351 : vector<32x128xf32>
    %354 = arith.divf %352, %353 : vector<32x128xf32>
    %355 = arith.mulf %349, %354 : vector<32x128xf32>
    %356 = arith.truncf %355 : vector<32x128xf32> to vector<32x128xbf16>
    %c0_141 = arith.constant 0 : index
    %c128_142 = arith.constant 128 : index
    %357 = vector.load %arg2[%c0_141, %c128_142] : memref<128x256xbf16, #tpu.memory_space<vmem>>, vector<128x32xbf16>
    %cst_143 = arith.constant dense<0.000000e+00> : vector<32x32xf32>
    %358 = tpu.matmul %356, %357, %cst_143 {dimension_numbers = #tpu.dot_dimension_numbers<[1], [0], [0], [1], [0, 0, 1, 1], [], []>} : vector<32x128xbf16>, vector<128x32xbf16>, vector<32x32xf32> -> vector<32x32xf32>
    %c17 = arith.constant 17 : index
    %c0_144 = arith.constant 0 : index
    %359 = vector.load %arg3[%c17, %c0_144] : memref<20x128xf32, #tpu.memory_space<vmem>>, vector<1x32xf32>
    %360 = vector.broadcast %359 : vector<1x32xf32> to vector<32x32xf32>
    %361 = arith.addf %358, %360 : vector<32x32xf32>
    %cst_145 = arith.constant 5.000000e-01 : f32
    %362 = vector.broadcast %cst_145 : f32 to vector<32x32xf32>
    %363 = arith.mulf %362, %361 : vector<32x32xf32>
    %364 = arith.addf %321, %363 : vector<32x32xf32>
    %c18 = arith.constant 18 : index
    %c0_146 = arith.constant 0 : index
    %365 = vector.load %arg3[%c18, %c0_146] : memref<20x128xf32, #tpu.memory_space<vmem>>, vector<1x32xf32>
    %c19 = arith.constant 19 : index
    %c0_147 = arith.constant 0 : index
    %366 = vector.load %arg3[%c19, %c0_147] : memref<20x128xf32, #tpu.memory_space<vmem>>, vector<1x32xf32>
    %cst_148 = arith.constant dense<0.000000e+00> : vector<32xf32>
    %367 = vector.multi_reduction <add>, %364, %cst_148 [1] : vector<32x32xf32> to vector<32xf32>
    %368 = vector.shape_cast %367 : vector<32xf32> to vector<32x1xf32>
    %cst_149 = arith.constant 3.200000e+01 : f32
    %369 = vector.broadcast %cst_149 : f32 to vector<32x1xf32>
    %370 = arith.divf %368, %369 : vector<32x1xf32>
    %371 = vector.broadcast %370 : vector<32x1xf32> to vector<32x32xf32>
    %372 = arith.subf %364, %371 : vector<32x32xf32>
    %373 = arith.mulf %372, %372 : vector<32x32xf32>
    %cst_150 = arith.constant dense<0.000000e+00> : vector<32xf32>
    %374 = vector.multi_reduction <add>, %373, %cst_150 [1] : vector<32x32xf32> to vector<32xf32>
    %375 = vector.shape_cast %374 : vector<32xf32> to vector<32x1xf32>
    %cst_151 = arith.constant 3.200000e+01 : f32
    %376 = vector.broadcast %cst_151 : f32 to vector<32x1xf32>
    %377 = arith.divf %375, %376 : vector<32x1xf32>
    %cst_152 = arith.constant 9.99999974E-6 : f32
    %378 = vector.broadcast %cst_152 : f32 to vector<32x1xf32>
    %379 = arith.addf %377, %378 : vector<32x1xf32>
    %380 = math.rsqrt %379 : vector<32x1xf32>
    %381 = vector.broadcast %380 : vector<32x1xf32> to vector<32x32xf32>
    %382 = arith.mulf %372, %381 : vector<32x32xf32>
    %383 = vector.broadcast %365 : vector<1x32xf32> to vector<32x32xf32>
    %384 = arith.mulf %382, %383 : vector<32x32xf32>
    %385 = vector.broadcast %366 : vector<1x32xf32> to vector<32x32xf32>
    %386 = arith.addf %384, %385 : vector<32x32xf32>
    %c0_153 = arith.constant 0 : index
    %c0_154 = arith.constant 0 : index
    %387 = vector.load %arg6[%c0_153, %c0_154] : memref<32x32xf32, #tpu.memory_space<vmem>>, vector<32x32xf32>
    tpu.vector_store %arg6[%c0_153, %c0_154], %386 {strides = array<i32>} : memref<32x32xf32, #tpu.memory_space<vmem>>, vector<32x32xf32>,
    return
  }
}

</mosaic_0001>

<llo_original>
// kernel: tpu_custom_call.1
$region0: #{tpu_custom_call.1}
  #allocation0 [shape = 'u32[]', space=smem, size = 0x4, offset = 0x4, fixed_abs, tag = 'smem constant byte address 0x4 - core index']
  #allocation1 [shape = 'u32[144,128]{1,0:T(1,128)}', space=vmem, size = 0x12000, scoped, tag = 'internal scratch']
  %s0 = inlined_call_operand.hbm [shape: f32[32,32], index: 0, kind: input, shape index: {}]
  %s1 = inlined_call_operand.hbm [shape: bf16[32,768], index: 1, kind: input, shape index: {}]
  %s2 = inlined_call_operand.hbm [shape: bf16[128,256], index: 2, kind: input, shape index: {}]
  %s3 = inlined_call_operand.hbm [shape: f32[20,128], index: 3, kind: input, shape index: {}]
  %s4 = inlined_call_operand.hbm [shape: f32[15,32,32], index: 4, kind: input, shape index: {}]
  %s5 = inlined_call_operand.hbm [shape: f32[4,32,32], index: 5, kind: input, shape index: {}]
  %s6 = inlined_call_operand.hbm [shape: f32[32,32], index: 6, kind: output, shape index: {}]
  %s7 = sld [smem:[#allocation0]]
  $region58: #{tpu_custom_call.1} parent=0
    _
  %s9 = ssub.s32 1, %s7
  %s10 = scalar_select 0, %s9, %s7
  $region1: #{tpu_custom_call.1} parent=0
    #allocation2 [shape = 'u8[16384]{0}', space=vmem, size = 0x4000, scoped, tag = 'input window, operand 0, single buffered']
    #allocation3 [shape = 's32[1]{0}', space=sflag, size = 0x4, scoped, tag = 'scoped memory for tpu_custom_call.1']
    #allocation4 [shape = 's32[1]{0}', space=sflag, size = 0x4, scoped, tag = 'scoped memory for tpu_custom_call.1']
    #allocation5 [shape = 'u8[49152]{0}', space=vmem, size = 0xc000, scoped, tag = 'input window, operand 1, single buffered']
    #allocation6 [shape = 's32[1]{0}', space=sflag, size = 0x4, scoped, tag = 'scoped memory for tpu_custom_call.1']
    #allocation7 [shape = 'u8[65536]{0}', space=vmem, size = 0x10000, scoped, tag = 'input window, operand 2, single buffered']
    #allocation8 [shape = 'u8[12288]{0}', space=vmem, size = 0x3000, scoped, tag = 'input window, operand 3, single buffered']
    #allocation9 [shape = 's32[1]{0}', space=sflag, size = 0x4, scoped, tag = 'scoped memory for tpu_custom_call.1']
    #allocation10 [shape = 'u8[245760]{0}', space=vmem, size = 0x3c000, scoped, tag = 'input window, operand 4, single buffered']
    #allocation11 [shape = 'u8[65536]{0}', space=vmem, size = 0x10000, scoped, tag = 'input window, operand 5, single buffered']
    #allocation12 [shape = 's32[1]{0}', space=sflag, size = 0x4, scoped, tag = 'scoped memory for tpu_custom_call.1']
    #allocation13 [shape = 'u8[16384]{0}', space=vmem, size = 0x4000, scoped, tag = 'output window, operand 0, single buffered']
    %11 = vsyncpa [#allocation3], 0
    %12 = vsyncpa [#allocation6], 0
    %13 = vsyncpa [#allocation9], 0
    %14 = vsyncpa [#allocation12], 0
    %15 = vsyncpa [#allocation4], 0
    // Predicated region
    $region2: #{tpu_custom_call.1} parent=1 // pred_check
      _
    $region3: #{tpu_custom_call.1} parent=1 // pred_check_branch
      %17 = sbr.rel (0) target = $region5
    $region4: #{tpu_custom_call.1} parent=1 // pred_region
      %s19 = ssub.s32 512, 512
      %20 = vsyncadd [#allocation3], %s19
      %s21 = sshll.u32 [#allocation2], 4
      %s22 = int_to_ptr.vmem [resolvable:$true] %s21
      %27 = dma.hbm_to_vmem [thread:$0]  %s0, 512, %s22, [#allocation3], 128, 128, 8
    $region5: #{tpu_custom_call.1} parent=1 // pred_fallthru
      _
    // Predicated region
    $region6: #{tpu_custom_call.1} parent=1 // pred_check
      _
    $region7: #{tpu_custom_call.1} parent=1 // pred_check_branch
      %29 = sbr.rel (0) target = $region9
    $region8: #{tpu_custom_call.1} parent=1 // pred_region
      %s31 = ssub.s32 1536, 1536
      %32 = vsyncadd [#allocation6], %s31
      %s33 = sshll.u32 [#allocation5], 4
      %s34 = int_to_ptr.vmem [resolvable:$true] %s33
      %39 = dma.hbm_to_vmem [thread:$0]  %s1, 1536, %s34, [#allocation6], 384, 384, 24
    $region9: #{tpu_custom_call.1} parent=1 // pred_fallthru
      _
    // Predicated region
    $region10: #{tpu_custom_call.1} parent=1 // pred_check
      _
    $region11: #{tpu_custom_call.1} parent=1 // pred_check_branch
      %41 = sbr.rel (0) target = $region13
    $region12: #{tpu_custom_call.1} parent=1 // pred_region
      %s43 = ssub.s32 2048, 2048
      %44 = vsyncadd [#allocation6], %s43
      %s45 = sshll.u32 [#allocation7], 4
      %s46 = int_to_ptr.vmem [resolvable:$true] %s45
      %51 = dma.hbm_to_vmem [thread:$0]  %s2, 2048, %s46, [#allocation6], 128, 128, 8
    $region13: #{tpu_custom_call.1} parent=1 // pred_fallthru
      _
    // Predicated region
    $region14: #{tpu_custom_call.1} parent=1 // pred_check
      _
    $region15: #{tpu_custom_call.1} parent=1 // pred_check_branch
      %53 = sbr.rel (0) target = $region17
    $region16: #{tpu_custom_call.1} parent=1 // pred_region
      %s55 = ssub.s32 384, 384
      %56 = vsyncadd [#allocation9], %s55
      %s57 = sshll.u32 [#allocation8], 4
      %s58 = int_to_ptr.vmem [resolvable:$true] %s57
      %63 = dma.hbm_to_vmem [thread:$0]  %s3, 384, %s58, [#allocation9], 128, 128, 8
    $region17: #{tpu_custom_call.1} parent=1 // pred_fallthru
      _
    // Predicated region
    $region18: #{tpu_custom_call.1} parent=1 // pred_check
      _
    $region19: #{tpu_custom_call.1} parent=1 // pred_check_branch
      %65 = sbr.rel (0) target = $region21
    $region20: #{tpu_custom_call.1} parent=1 // pred_region
      %s67 = ssub.s32 7680, 7680
      %68 = vsyncadd [#allocation9], %s67
      %s69 = sshll.u32 [#allocation10], 4
      %s70 = int_to_ptr.vmem [resolvable:$true] %s69
      %75 = dma.hbm_to_vmem [thread:$0]  %s4, 7680, %s70, [#allocation9], 128, 128, 8
    $region21: #{tpu_custom_call.1} parent=1 // pred_fallthru
      _
    // Predicated region
    $region22: #{tpu_custom_call.1} parent=1 // pred_check
      _
    $region23: #{tpu_custom_call.1} parent=1 // pred_check_branch
      %77 = sbr.rel (0) target = $region25
    $region24: #{tpu_custom_call.1} parent=1 // pred_region
      %s79 = ssub.s32 2048, 2048
      %80 = vsyncadd [#allocation12], %s79
      %s81 = sshll.u32 [#allocation11], 4
      %s82 = int_to_ptr.vmem [resolvable:$true] %s81
      %87 = dma.hbm_to_vmem [thread:$0]  %s5, 2048, %s82, [#allocation12], 128, 128, 8
    $region25: #{tpu_custom_call.1} parent=1 // pred_fallthru
      _
    // Predicated region
    $region26: #{tpu_custom_call.1} parent=1 // pred_check
      _
    $region27: #{tpu_custom_call.1} parent=1 // pred_check_branch
      %89 = sbr.rel (0) target = $region29
    $region28: #{tpu_custom_call.1} parent=1 // pred_region
      %90 = dma.done [#allocation3], 512
    $region29: #{tpu_custom_call.1} parent=1 // pred_fallthru
      _
    // Predicated region
    $region30: #{tpu_custom_call.1} parent=1 // pred_check
      _
    $region31: #{tpu_custom_call.1} parent=1 // pred_check_branch
      %92 = sbr.rel (0) target = $region33
    $region32: #{tpu_custom_call.1} parent=1 // pred_region
      %93 = dma.done [#allocation6], 1536
    $region33: #{tpu_custom_call.1} parent=1 // pred_fallthru
      _
    // Predicated region
    $region34: #{tpu_custom_call.1} parent=1 // pred_check
      _
    $region35: #{tpu_custom_call.1} parent=1 // pred_check_branch
      %95 = sbr.rel (0) target = $region37
    $region36: #{tpu_custom_call.1} parent=1 // pred_region
      %96 = dma.done [#allocation6], 2048
    $region37: #{tpu_custom_call.1} parent=1 // pred_fallthru
      _
    // Predicated region
    $region38: #{tpu_custom_call.1} parent=1 // pred_check
      _
    $region39: #{tpu_custom_call.1} parent=1 // pred_check_branch
      %98 = sbr.rel (0) target = $region41
    $region40: #{tpu_custom_call.1} parent=1 // pred_region
      %99 = dma.done [#allocation9], 384
    $region41: #{tpu_custom_call.1} parent=1 // pred_fallthru
      _
    // Predicated region
    $region42: #{tpu_custom_call.1} parent=1 // pred_check
      _
    $region43: #{tpu_custom_call.1} parent=1 // pred_check_branch
      %101 = sbr.rel (0) target = $region45
    $region44: #{tpu_custom_call.1} parent=1 // pred_region
      %102 = dma.done [#allocation9], 7680
    $region45: #{tpu_custom_call.1} parent=1 // pred_fallthru
      _
    // Predicated region
    $region46: #{tpu_custom_call.1} parent=1 // pred_check
      _
    $region47: #{tpu_custom_call.1} parent=1 // pred_check_branch
      %104 = sbr.rel (0) target = $region49
    $region48: #{tpu_custom_call.1} parent=1 // pred_region
      %105 = dma.done [#allocation12], 2048
    $region49: #{tpu_custom_call.1} parent=1 // pred_fallthru
      _
    %v107 = vld [vmem:[#allocation2] sm:$0xff]
    %v108 = vld [vmem:[#allocation2 + $0x8] sm:$0xff]
    %v109 = vld [vmem:[#allocation2 + $0x10] sm:$0xff]
    %v110 = vld [vmem:[#allocation2 + $0x18] sm:$0xff]
    %v111 = vld [vmem:[#allocation8] sm:$0x1]
    %v112 = vld [vmem:[#allocation8 + $0x1] sm:$0x1]
    %vm113 = vcmask 261120
    %v114 = vsel %vm113, %v107, 0.0
    %115 = vadd.xlane.f32.xlu0 %v114
    %v116 = vpop.xlane.xlu0 %115
    %v117 = vsel %vm113, %v108, 0.0
    %118 = vadd.xlane.f32.xlu0 %v117
    %v119 = vpop.xlane.xlu0 %118
    %v120 = vsel %vm113, %v109, 0.0
    %121 = vadd.xlane.f32.xlu0 %v120
    %v122 = vpop.xlane.xlu0 %121
    %v123 = vsel %vm113, %v110, 0.0
    %124 = vadd.xlane.f32.xlu0 %v123
    %v125 = vpop.xlane.xlu0 %124
    %v126 = vrcp.pop 32.0
    %v127 = vmul.f32 %v116, %v126
    %v128 = vmul.f32 %v119, %v126
    %v129 = vmul.f32 %v122, %v126
    %v130 = vmul.f32 %v125, %v126
    %v131 = vsub.f32 %v107, %v127
    %v132 = vsub.f32 %v108, %v128
    %v133 = vsub.f32 %v109, %v129
    %v134 = vsub.f32 %v110, %v130
    %v135 = vmul.f32 %v131, %v131
    %v136 = vmul.f32 %v132, %v132
    %v137 = vmul.f32 %v133, %v133
    %v138 = vmul.f32 %v134, %v134
    %v139 = vsel %vm113, %v135, 0.0
    %140 = vadd.xlane.f32.xlu0 %v139
    %v141 = vpop.xlane.xlu0 %140
    %v142 = vsel %vm113, %v136, 0.0
    %143 = vadd.xlane.f32.xlu0 %v142
    %v144 = vpop.xlane.xlu0 %143
    %v145 = vsel %vm113, %v137, 0.0
    %146 = vadd.xlane.f32.xlu0 %v145
    %v147 = vpop.xlane.xlu0 %146
    %v148 = vsel %vm113, %v138, 0.0
    %149 = vadd.xlane.f32.xlu0 %v148
    %v150 = vpop.xlane.xlu0 %149
    %v151 = vmul.f32 %v141, %v126
    %v152 = vmul.f32 %v144, %v126
    %v153 = vmul.f32 %v147, %v126
    %v154 = vmul.f32 %v150, %v126
    %v155 = vadd.f32 %v151, 1e-05
    %v156 = vadd.f32 %v152, 1e-05
    %v157 = vadd.f32 %v153, 1e-05
    %v158 = vadd.f32 %v154, 1e-05
    %v159 = vrsqrt.pop %v155
    %v160 = vrsqrt.pop %v156
    %v161 = vrsqrt.pop %v157
    %v162 = vrsqrt.pop %v158
    %v163 = vmul.f32 %v131, %v159
    %v164 = vmul.f32 %v132, %v160
    %v165 = vmul.f32 %v133, %v161
    %v166 = vmul.f32 %v134, %v162
    %v167 = vlaneseq
    %v168 = vshrl.u32 %v167, 7
    %v169 = vsub.s32 0, %v168
    %v170 = vrot.slane %v111, %v169
    %v171 = vmul.f32 %v163, %v170
    %v172 = vmul.f32 %v164, %v170
    %v173 = vmul.f32 %v165, %v170
    %v174 = vmul.f32 %v166, %v170
    %v175 = vlaneseq
    %v176 = vshrl.u32 %v175, 7
    %v177 = vsub.s32 0, %v176
    %v178 = vrot.slane %v112, %v177
    %v179 = vadd.f32 %v171, %v178
    %v180 = vadd.f32 %v172, %v178
    %v181 = vadd.f32 %v173, %v178
    %v182 = vadd.f32 %v174, %v178
    %v183 = vpack.c.bf16 %v180, %v179
    %v184 = vpack.c.bf16 %v182, %v181
    %v185 = vld [vmem:[#allocation5] sm:$0xf]
    %v186 = vld [vmem:[#allocation5 + $0x18] sm:$0xf]
    %v187 = vld [vmem:[#allocation5 + $0x30] sm:$0xf]
    %v188 = vld [vmem:[#allocation5 + $0x48] sm:$0xf]
    %v189 = vld [vmem:[#allocation8 + $0x2] sm:$0x1]
    %v190 = vlaneseq
    %v191 = vshrl.u32 %v190, 7
    %v192 = vsub.s32 0, %v191
    %v193 = vrot.slane %v189, %v192
    %v198 = vunpack.c.l.b16 %v185
    %v199 = vunpack.c.l.b16 %v186
    %v200 = vunpack.c.l.b16 %v187
    %v201 = vunpack.c.l.b16 %v188
    %v202 = vpack.c.b16 %v199, %v198
    %v203 = vpack.c.b16 %v201, %v200
    %v207 = vsel %vm113, %v183, 0
    %v210 = vsel %vm113, %v184, 0
    %212 = vmatprep.subr.bf16.mxu0 0
    %213 = vmatpush1.bf16.msra.mxu0 0
    %214 = vmatprep.subr.bf16.mxu0 0
    %215 = vmatpush1.bf16.msra.mxu0 0
    %216 = vmatprep.subr.bf16.mxu0 0
    %217 = vmatpush1.bf16.msra.mxu0 0
    %218 = vmatprep.subr.bf16.mxu0 0
    %219 = vmatpush1.bf16.msra.mxu0 0
    %220 = vmatprep.subr.bf16.mxu0 0
    %221 = vmatpush1.bf16.msra.mxu0 0
    %222 = vmatprep.subr.bf16.mxu0 0
    %223 = vmatpush1.bf16.msra.mxu0 0
    %224 = vmatprep.subr.bf16.mxu0 0
    %225 = vmatpush1.bf16.msra.mxu0 %v203
    %226 = vmatprep.subr.bf16.mxu0 0
    %227 = vmatpush1.bf16.msra.mxu0 %v202
    %228 = vmatprep.subr.bf16.mxu0 0
    %229 = vmatpush2.bf16.msra.mxu0 0
    %230 = vmatprep.subr.bf16.mxu0 0
    %231 = vmatpush2.bf16.msra.mxu0 0
    %232 = vmatprep.subr.bf16.mxu0 0
    %233 = vmatpush2.bf16.msra.mxu0 0
    %234 = vmatprep.subr.bf16.mxu0 0
    %235 = vmatpush2.bf16.msra.mxu0 0
    %236 = vmatprep.subr.bf16.mxu0 0
    %237 = vmatpush2.bf16.msra.mxu0 0
    %238 = vmatprep.subr.bf16.mxu0 0
    %239 = vmatpush2.bf16.msra.mxu0 0
    %240 = vmatprep.subr.bf16.mxu0 0
    %241 = vmatpush2.bf16.msra.mxu0 0
    %242 = vmatprep.subr.bf16.mxu0 0
    %243 = vmatpush2.bf16.msra.mxu0 0
    %244 = vmatprep.mubr.bf16.mxu0 0
    %245 = vmatmul.mubr.bf16.gmra.mxu0 %v207
    %v246 = vpop.f32.mrf.mxu0
    %v247 = vadd.f32 %v193, %v246
    %v248 = vpop.f32.mrf.mxu0
    %v249 = vpop.f32.mrf.mxu0
    %v250 = vadd.f32 %v193, %v249
    %v251 = vpop.f32.mrf.mxu0
    %252 = vmatprep.mubr.bf16.mxu0 0
    %253 = vmatmul.mubr.bf16.gmra.mxu0 %v210
    %v254 = vpop.f32.mrf.mxu0
    %v255 = vadd.f32 %v193, %v254
    %v256 = vpop.f32.mrf.mxu0
    %v257 = vpop.f32.mrf.mxu0
    %v258 = vadd.f32 %v193, %v257
    %v259 = vpop.f32.mrf.mxu0
    %260 = vdwg.mxu0
    %v261 = vxor.u32 %v247, 2147483648
    %v262 = vxor.u32 %v250, 2147483648
    %v263 = vxor.u32 %v255, 2147483648
    %v264 = vxor.u32 %v258, 2147483648
    %v265 = vmul.f32 %v261, 1.442695
    %v266 = vpow.pop %v265
    %v267 = vmul.f32 %v262, 1.442695
    %v268 = vpow.pop %v267
    %v269 = vmul.f32 %v263, 1.442695
    %v270 = vpow.pop %v269
    %v271 = vmul.f32 %v264, 1.442695
    %v272 = vpow.pop %v271
    %v273 = vadd.f32 %v266, 1.0
    %v274 = vadd.f32 %v268, 1.0
    %v275 = vadd.f32 %v270, 1.0
    %v276 = vadd.f32 %v272, 1.0
    %v277 = vrcp.pop %v273
    %v278 = vmul.f32 1.0, %v277
    %v279 = vrcp.pop %v274
    %v280 = vmul.f32 1.0, %v279
    %v281 = vrcp.pop %v275
    %v282 = vmul.f32 1.0, %v281
    %v283 = vrcp.pop %v276
    %v284 = vmul.f32 1.0, %v283
    %v285 = vmul.f32 %v247, %v278
    %v286 = vmul.f32 %v250, %v280
    %v287 = vmul.f32 %v255, %v282
    %v288 = vmul.f32 %v258, %v284
    %v289 = vpack.c.bf16 %v286, %v285
    %v290 = vpack.c.bf16 %v288, %v287
    %v291 = vld [vmem:[#allocation7] sm:$0xf]
    %v292 = vld [vmem:[#allocation7 + $0x8] sm:$0xf]
    %v293 = vld [vmem:[#allocation7 + $0x10] sm:$0xf]
    %v294 = vld [vmem:[#allocation7 + $0x18] sm:$0xf]
    %v295 = vld [vmem:[#allocation7 + $0x20] sm:$0xf]
    %v296 = vld [vmem:[#allocation7 + $0x28] sm:$0xf]
    %v297 = vld [vmem:[#allocation7 + $0x30] sm:$0xf]
    %v298 = vld [vmem:[#allocation7 + $0x38] sm:$0xf]
    %v299 = vld [vmem:[#allocation7 + $0x40] sm:$0xf]
    %v300 = vld [vmem:[#allocation7 + $0x48] sm:$0xf]
    %v301 = vld [vmem:[#allocation7 + $0x50] sm:$0xf]
    %v302 = vld [vmem:[#allocation7 + $0x58] sm:$0xf]
    %v303 = vld [vmem:[#allocation7 + $0x60] sm:$0xf]
    %v304 = vld [vmem:[#allocation7 + $0x68] sm:$0xf]
    %v305 = vld [vmem:[#allocation7 + $0x70] sm:$0xf]
    %v306 = vld [vmem:[#allocation7 + $0x78] sm:$0xf]
    %v307 = vld [vmem:[#allocation8 + $0x3] sm:$0x1]
    %v308 = vlaneseq
    %v309 = vshrl.u32 %v308, 7
    %v310 = vsub.s32 0, %v309
    %v311 = vrot.slane %v307, %v310
    %v328 = vunpack.c.l.b16 %v291
    %v329 = vunpack.c.l.b16 %v292
    %v330 = vunpack.c.l.b16 %v293
    %v331 = vunpack.c.l.b16 %v294
    %v332 = vunpack.c.l.b16 %v295
    %v333 = vunpack.c.l.b16 %v296
    %v334 = vunpack.c.l.b16 %v297
    %v335 = vunpack.c.l.b16 %v298
    %v336 = vunpack.c.l.b16 %v299
    %v337 = vunpack.c.l.b16 %v300
    %v338 = vunpack.c.l.b16 %v301
    %v339 = vunpack.c.l.b16 %v302
    %v340 = vunpack.c.l.b16 %v303
    %v341 = vunpack.c.l.b16 %v304
    %v342 = vunpack.c.l.b16 %v305
    %v343 = vunpack.c.l.b16 %v306
    %v344 = vpack.c.b16 %v329, %v328
    %v345 = vpack.c.b16 %v331, %v330
    %v346 = vpack.c.b16 %v333, %v332
    %v347 = vpack.c.b16 %v335, %v334
    %v348 = vpack.c.b16 %v337, %v336
    %v349 = vpack.c.b16 %v339, %v338
    %v350 = vpack.c.b16 %v341, %v340
    %v351 = vpack.c.b16 %v343, %v342
    %360 = vmatprep.subr.bf16.mxu0 0
    %361 = vmatpush1.bf16.msra.mxu0 %v351
    %362 = vmatprep.subr.bf16.mxu0 0
    %363 = vmatpush1.bf16.msra.mxu0 %v350
    %364 = vmatprep.subr.bf16.mxu0 0
    %365 = vmatpush1.bf16.msra.mxu0 %v349
    %366 = vmatprep.subr.bf16.mxu0 0
    %367 = vmatpush1.bf16.msra.mxu0 %v348
    %368 = vmatprep.subr.bf16.mxu0 0
    %369 = vmatpush1.bf16.msra.mxu0 %v347
    %370 = vmatprep.subr.bf16.mxu0 0
    %371 = vmatpush1.bf16.msra.mxu0 %v346
    %372 = vmatprep.subr.bf16.mxu0 0
    %373 = vmatpush1.bf16.msra.mxu0 %v345
    %374 = vmatprep.subr.bf16.mxu0 0
    %375 = vmatpush1.bf16.msra.mxu0 %v344
    %376 = vmatprep.subr.bf16.mxu0 0
    %377 = vmatpush2.bf16.msra.mxu0 0
    %378 = vmatprep.subr.bf16.mxu0 0
    %379 = vmatpush2.bf16.msra.mxu0 0
    %380 = vmatprep.subr.bf16.mxu0 0
    %381 = vmatpush2.bf16.msra.mxu0 0
    %382 = vmatprep.subr.bf16.mxu0 0
    %383 = vmatpush2.bf16.msra.mxu0 0
    %384 = vmatprep.subr.bf16.mxu0 0
    %385 = vmatpush2.bf16.msra.mxu0 0
    %386 = vmatprep.subr.bf16.mxu0 0
    %387 = vmatpush2.bf16.msra.mxu0 0
    %388 = vmatprep.subr.bf16.mxu0 0
    %389 = vmatpush2.bf16.msra.mxu0 0
    %390 = vmatprep.subr.bf16.mxu0 0
    %391 = vmatpush2.bf16.msra.mxu0 0
    %392 = vmatprep.mubr.bf16.mxu0 0
    %393 = vmatmul.mubr.bf16.gmra.mxu0 %v289
    %v394 = vpop.f32.mrf.mxu0
    %v395 = vadd.f32 %v311, %v394
    %v396 = vpop.f32.mrf.mxu0
    %v397 = vpop.f32.mrf.mxu0
    %v398 = vadd.f32 %v311, %v397
    %v399 = vpop.f32.mrf.mxu0
    %400 = vmatprep.mubr.bf16.mxu0 0
    %401 = vmatmul.mubr.bf16.gmra.mxu0 %v290
    %v402 = vpop.f32.mrf.mxu0
    %v403 = vadd.f32 %v311, %v402
    %v404 = vpop.f32.mrf.mxu0
    %v405 = vpop.f32.mrf.mxu0
    %v406 = vadd.f32 %v311, %v405
    %v407 = vpop.f32.mrf.mxu0
    %408 = vdwg.mxu0
    %v409 = vmul.f32 %v395, 0.5
    %v410 = vmul.f32 %v398, 0.5
    %v411 = vmul.f32 %v403, 0.5
    %v412 = vmul.f32 %v406, 0.5
    %v413 = vadd.f32 %v107, %v409
    %v414 = vadd.f32 %v108, %v410
    %v415 = vadd.f32 %v109, %v411
    %v416 = vadd.f32 %v110, %v412
    %v417 = vld [vmem:[#allocation8 + $0x4] sm:$0x1]
    %v418 = vld [vmem:[#allocation8 + $0x5] sm:$0x1]
    %v419 = vsel %vm113, %v413, 0.0
    %420 = vadd.xlane.f32.xlu0 %v419
    %v421 = vpop.xlane.xlu0 %420
    %v422 = vsel %vm113, %v414, 0.0
    %423 = vadd.xlane.f32.xlu0 %v422
    %v424 = vpop.xlane.xlu0 %423
    %v425 = vsel %vm113, %v415, 0.0
    %426 = vadd.xlane.f32.xlu0 %v425
    %v427 = vpop.xlane.xlu0 %426
    %v428 = vsel %vm113, %v416, 0.0
    %429 = vadd.xlane.f32.xlu0 %v428
    %v430 = vpop.xlane.xlu0 %429
    %v431 = vmul.f32 %v421, %v126
    %v432 = vmul.f32 %v424, %v126
    %v433 = vmul.f32 %v427, %v126
    %v434 = vmul.f32 %v430, %v126
    %v435 = vsub.f32 %v413, %v431
    %v436 = vsub.f32 %v414, %v432
    %v437 = vsub.f32 %v415, %v433
    %v438 = vsub.f32 %v416, %v434
    %v439 = vmul.f32 %v435, %v435
    %v440 = vmul.f32 %v436, %v436
    %v441 = vmul.f32 %v437, %v437
    %v442 = vmul.f32 %v438, %v438
    %v443 = vsel %vm113, %v439, 0.0
    %444 = vadd.xlane.f32.xlu0 %v443
    %v445 = vpop.xlane.xlu0 %444
    %v446 = vsel %vm113, %v440, 0.0
    %447 = vadd.xlane.f32.xlu0 %v446
    %v448 = vpop.xlane.xlu0 %447
    %v449 = vsel %vm113, %v441, 0.0
    %450 = vadd.xlane.f32.xlu0 %v449
    %v451 = vpop.xlane.xlu0 %450
    %v452 = vsel %vm113, %v442, 0.0
    %453 = vadd.xlane.f32.xlu0 %v452
    %v454 = vpop.xlane.xlu0 %453
    %v455 = vmul.f32 %v445, %v126
    %v456 = vmul.f32 %v448, %v126
    %v457 = vmul.f32 %v451, %v126
    %v458 = vmul.f32 %v454, %v126
    %v459 = vadd.f32 %v455, 1e-05
    %v460 = vadd.f32 %v456, 1e-05
    %v461 = vadd.f32 %v457, 1e-05
    %v462 = vadd.f32 %v458, 1e-05
    %v463 = vrsqrt.pop %v459
    %v464 = vrsqrt.pop %v460
    %v465 = vrsqrt.pop %v461
    %v466 = vrsqrt.pop %v462
    %v467 = vmul.f32 %v435, %v463
    %v468 = vmul.f32 %v436, %v464
    %v469 = vmul.f32 %v437, %v465
    %v470 = vmul.f32 %v438, %v466
    %v471 = vlaneseq
    %v472 = vshrl.u32 %v471, 7
    %v473 = vsub.s32 0, %v472
    %v474 = vrot.slane %v417, %v473
    %v475 = vmul.f32 %v467, %v474
    %v476 = vmul.f32 %v468, %v474
    %v477 = vmul.f32 %v469, %v474
    %v478 = vmul.f32 %v470, %v474
    %v479 = vlaneseq
    %v480 = vshrl.u32 %v479, 7
    %v481 = vsub.s32 0, %v480
    %v482 = vrot.slane %v418, %v481
    %v483 = vadd.f32 %v475, %v482
    %v484 = vadd.f32 %v476, %v482
    %v485 = vadd.f32 %v477, %v482
    %v486 = vadd.f32 %v478, %v482
    %v487 = vpack.c.bf16 %v484, %v483
    %v488 = vpack.c.bf16 %v486, %v485
    %v489 = vld [vmem:[#allocation5 + $0x8] sm:$0xf]
    %v490 = vld [vmem:[#allocation5 + $0x20] sm:$0xf]
    %v491 = vld [vmem:[#allocation5 + $0x38] sm:$0xf]
    %v492 = vld [vmem:[#allocation5 + $0x50] sm:$0xf]
    %v497 = vunpack.c.l.b16 %v489
    %v498 = vunpack.c.l.b16 %v490
    %v499 = vunpack.c.l.b16 %v491
    %v500 = vunpack.c.l.b16 %v492
    %v501 = vpack.c.b16 %v498, %v497
    %v502 = vpack.c.b16 %v500, %v499
    %v506 = vsel %vm113, %v487, 0
    %v509 = vsel %vm113, %v488, 0
    %511 = vmatprep.subr.bf16.mxu0 0
    %512 = vmatpush1.bf16.msra.mxu0 0
    %513 = vmatprep.subr.bf16.mxu0 0
    %514 = vmatpush1.bf16.msra.mxu0 0
    %515 = vmatprep.subr.bf16.mxu0 0
    %516 = vmatpush1.bf16.msra.mxu0 0
    %517 = vmatprep.subr.bf16.mxu0 0
    %518 = vmatpush1.bf16.msra.mxu0 0
    %519 = vmatprep.subr.bf16.mxu0 0
    %520 = vmatpush1.bf16.msra.mxu0 0
    %521 = vmatprep.subr.bf16.mxu0 0
    %522 = vmatpush1.bf16.msra.mxu0 0
    %523 = vmatprep.subr.bf16.mxu0 0
    %524 = vmatpush1.bf16.msra.mxu0 %v502
    %525 = vmatprep.subr.bf16.mxu0 0
    %526 = vmatpush1.bf16.msra.mxu0 %v501
    %527 = vmatprep.subr.bf16.mxu0 0
    %528 = vmatpush2.bf16.msra.mxu0 0
    %529 = vmatprep.subr.bf16.mxu0 0
    %530 = vmatpush2.bf16.msra.mxu0 0
    %531 = vmatprep.subr.bf16.mxu0 0
    %532 = vmatpush2.bf16.msra.mxu0 0
    %533 = vmatprep.subr.bf16.mxu0 0
    %534 = vmatpush2.bf16.msra.mxu0 0
    %535 = vmatprep.subr.bf16.mxu0 0
    %536 = vmatpush2.bf16.msra.mxu0 0
    %537 = vmatprep.subr.bf16.mxu0 0
    %538 = vmatpush2.bf16.msra.mxu0 0
    %539 = vmatprep.subr.bf16.mxu0 0
    %540 = vmatpush2.bf16.msra.mxu0 0
    %541 = vmatprep.subr.bf16.mxu0 0
    %542 = vmatpush2.bf16.msra.mxu0 0
    %543 = vmatprep.mubr.bf16.mxu0 0
    %544 = vmatmul.mubr.bf16.gmra.mxu0 %v506
    %v545 = vpop.f32.mrf.mxu0
    %v546 = vadd.f32 0.0, %v545
    %v547 = vpop.f32.mrf.mxu0
    %v548 = vpop.f32.mrf.mxu0
    %v549 = vadd.f32 0.0, %v548
    %v550 = vpop.f32.mrf.mxu0
    %551 = vmatprep.mubr.bf16.mxu0 0
    %552 = vmatmul.mubr.bf16.gmra.mxu0 %v509
    %v553 = vpop.f32.mrf.mxu0
    %v554 = vadd.f32 0.0, %v553
    %v555 = vpop.f32.mrf.mxu0
    %v556 = vpop.f32.mrf.mxu0
    %v557 = vadd.f32 0.0, %v556
    %v558 = vpop.f32.mrf.mxu0
    %559 = vdwg.mxu0
    %564 = vrot.lane.b32.xlu0 %v546, 96
    %v565 = vpop.permute.xlu0 %564
    %566 = vrot.lane.b32.xlu0 %v549, 96
    %v567 = vpop.permute.xlu0 %566
    %568 = vrot.lane.b32.xlu0 %v554, 96
    %v569 = vpop.permute.xlu0 %568
    %570 = vrot.lane.b32.xlu0 %v557, 96
    %v571 = vpop.permute.xlu0 %570
    %576 = vxpose.xlu0.b32.start [1/16] %v565, 128
    %577 = vxpose.xlu0.b32.cont [2/16] %v567, 128
    %578 = vxpose.xlu0.b32.cont [3/16] %v569, 128
    %579 = vxpose.xlu0.b32.cont [4/16] %v571, 128
    %580 = vxpose.xlu0.b32.cont [5/16] 0.0, 128
    %581 = vxpose.xlu0.b32.cont [6/16] 0.0, 128
    %582 = vxpose.xlu0.b32.cont [7/16] 0.0, 128
    %583 = vxpose.xlu0.b32.cont [8/16] 0.0, 128
    %584 = vxpose.xlu0.b32.cont [9/16] 0.0, 128
    %585 = vxpose.xlu0.b32.cont [10/16] 0.0, 128
    %586 = vxpose.xlu0.b32.cont [11/16] 0.0, 128
    %587 = vxpose.xlu0.b32.cont [12/16] 0.0, 128
    %588 = vxpose.xlu0.b32.cont [13/16] 0.0, 128
    %589 = vxpose.xlu0.b32.cont [14/16] 0.0, 128
    %590 = vxpose.xlu0.b32.cont [15/16] 0.0, 128
    %591 = vxpose.xlu0.b32.end [16/16] 0.0, 128
    %v592 = vpop.trf.xlu0
    %v593 = vpop.trf.xlu0
    %v594 = vpop.trf.xlu0
    %v595 = vpop.trf.xlu0
    %v596 = vpop.trf.xlu0
    %v597 = vpop.trf.xlu0
    %v598 = vpop.trf.xlu0
    %v599 = vpop.trf.xlu0
    %v600 = vpop.trf.xlu0
    %v601 = vpop.trf.xlu0
    %v602 = vpop.trf.xlu0
    %v603 = vpop.trf.xlu0
    %v604 = vpop.trf.xlu0
    %v605 = vpop.trf.xlu0
    %v606 = vpop.trf.xlu0
    %v607 = vpop.trf.xlu0
    %v608 = vpack.c.bf16 %v549, %v546
    %v609 = vpack.c.bf16 %v557, %v554
    %v610 = vpack.c.bf16 %v592, %v592
    %vm611 = vcmask 64512
    %v613 = vsel %vm611, %v608, 0
    %v616 = vsel %vm611, %v609, 0
    %vm618 = vcmask 1043456
    %v620 = vsel %vm618, %v610, 0
    %622 = vmatprep.subr.bf16.mxu0 0
    %623 = vmatpush1.bf16.msra.mxu0 0
    %624 = vmatprep.subr.bf16.mxu0 0
    %625 = vmatpush1.bf16.msra.mxu0 0
    %626 = vmatprep.subr.bf16.mxu0 0
    %627 = vmatpush1.bf16.msra.mxu0 0
    %628 = vmatprep.subr.bf16.mxu0 0
    %629 = vmatpush1.bf16.msra.mxu0 0
    %630 = vmatprep.subr.bf16.mxu0 0
    %631 = vmatpush1.bf16.msra.mxu0 0
    %632 = vmatprep.subr.bf16.mxu0 0
    %633 = vmatpush1.bf16.msra.mxu0 0
    %634 = vmatprep.subr.bf16.mxu0 0
    %635 = vmatpush1.bf16.msra.mxu0 0
    %636 = vmatprep.subr.bf16.mxu0 0
    %637 = vmatpush1.bf16.msra.mxu0 %v620
    %638 = vmatprep.subr.bf16.mxu0 0
    %639 = vmatpush2.bf16.msra.mxu0 0
    %640 = vmatprep.subr.bf16.mxu0 0
    %641 = vmatpush2.bf16.msra.mxu0 0
    %642 = vmatprep.subr.bf16.mxu0 0
    %643 = vmatpush2.bf16.msra.mxu0 0
    %644 = vmatprep.subr.bf16.mxu0 0
    %645 = vmatpush2.bf16.msra.mxu0 0
    %646 = vmatprep.subr.bf16.mxu0 0
    %647 = vmatpush2.bf16.msra.mxu0 0
    %648 = vmatprep.subr.bf16.mxu0 0
    %649 = vmatpush2.bf16.msra.mxu0 0
    %650 = vmatprep.subr.bf16.mxu0 0
    %651 = vmatpush2.bf16.msra.mxu0 0
    %652 = vmatprep.subr.bf16.mxu0 0
    %653 = vmatpush2.bf16.msra.mxu0 0
    %654 = vmatprep.mubr.bf16.mxu0 0
    %655 = vmatmul.mubr.bf16.gmra.mxu0 %v613
    %v656 = vpop.f32.mrf.mxu0
    %v657 = vadd.f32 0.0, %v656
    %v658 = vpop.f32.mrf.mxu0
    %v659 = vpop.f32.mrf.mxu0
    %v660 = vadd.f32 0.0, %v659
    %v661 = vpop.f32.mrf.mxu0
    %662 = vmatprep.mubr.bf16.mxu0 0
    %663 = vmatmul.mubr.bf16.gmra.mxu0 %v616
    %v664 = vpop.f32.mrf.mxu0
    %v665 = vadd.f32 0.0, %v664
    %v666 = vpop.f32.mrf.mxu0
    %v667 = vpop.f32.mrf.mxu0
    %v668 = vadd.f32 0.0, %v667
    %v669 = vpop.f32.mrf.mxu0
    %670 = vdwg.mxu0
    %v671 = vmul.f32 %v657, 0.35355338
    %v672 = vmul.f32 %v660, 0.35355338
    %v673 = vmul.f32 %v665, 0.35355338
    %v674 = vmul.f32 %v668, 0.35355338
    %v675 = vld [vmem:[#allocation11] sm:$0xff]
    %v676 = vld [vmem:[#allocation11 + $0x8] sm:$0xff]
    %v677 = vld [vmem:[#allocation11 + $0x10] sm:$0xff]
    %v678 = vld [vmem:[#allocation11 + $0x18] sm:$0xff]
    %v679 = vadd.f32 %v671, %v675
    %v680 = vadd.f32 %v672, %v676
    %v681 = vadd.f32 %v673, %v677
    %v682 = vadd.f32 %v674, %v678
    %v683 = vsel %vm113, %v679, -inf
    %684 = vmax.xlane.f32.xlu0 %v683
    %v685 = vpop.xlane.xlu0 %684
    %v686 = vsel %vm113, %v680, -inf
    %687 = vmax.xlane.f32.xlu0 %v686
    %v688 = vpop.xlane.xlu0 %687
    %v689 = vsel %vm113, %v681, -inf
    %690 = vmax.xlane.f32.xlu0 %v689
    %v691 = vpop.xlane.xlu0 %690
    %v692 = vsel %vm113, %v682, -inf
    %693 = vmax.xlane.f32.xlu0 %v692
    %v694 = vpop.xlane.xlu0 %693
    %v695 = vsub.f32 %v679, %v685
    %v696 = vsub.f32 %v680, %v688
    %v697 = vsub.f32 %v681, %v691
    %v698 = vsub.f32 %v682, %v694
    %v699 = vmul.f32 %v695, 1.442695
    %v700 = vpow.pop %v699
    %v701 = vmul.f32 %v696, 1.442695
    %v702 = vpow.pop %v701
    %v703 = vmul.f32 %v697, 1.442695
    %v704 = vpow.pop %v703
    %v705 = vmul.f32 %v698, 1.442695
    %v706 = vpow.pop %v705
    %v707 = vsel %vm113, %v700, 0.0
    %708 = vadd.xlane.f32.xlu0 %v707
    %v709 = vpop.xlane.xlu0 %708
    %v710 = vsel %vm113, %v702, 0.0
    %711 = vadd.xlane.f32.xlu0 %v710
    %v712 = vpop.xlane.xlu0 %711
    %v713 = vsel %vm113, %v704, 0.0
    %714 = vadd.xlane.f32.xlu0 %v713
    %v715 = vpop.xlane.xlu0 %714
    %v716 = vsel %vm113, %v706, 0.0
    %717 = vadd.xlane.f32.xlu0 %v716
    %v718 = vpop.xlane.xlu0 %717
    %v719 = vrcp.pop %v709
    %v720 = vrcp.pop %v712
    %v721 = vrcp.pop %v715
    %v722 = vrcp.pop %v718
    %v723 = vmul.f32 %v700, %v719
    %v724 = vmul.f32 %v702, %v720
    %v725 = vmul.f32 %v704, %v721
    %v726 = vmul.f32 %v706, %v722
    %v727 = vpack.c.bf16 %v724, %v723
    %v728 = vpack.c.bf16 %v726, %v725
    %731 = vrot.lane.b32.xlu0 %v608, 64
    %v732 = vpop.permute.xlu0 %731
    %733 = vrot.lane.b32.xlu0 %v609, 64
    %v734 = vpop.permute.xlu0 %733
    %v738 = vsel %vm113, %v727, 0
    %v741 = vsel %vm113, %v728, 0
    %743 = vmatprep.subr.bf16.mxu0 0
    %744 = vmatpush1.bf16.msra.mxu0 0
    %745 = vmatprep.subr.bf16.mxu0 0
    %746 = vmatpush1.bf16.msra.mxu0 0
    %747 = vmatprep.subr.bf16.mxu0 0
    %748 = vmatpush1.bf16.msra.mxu0 0
    %749 = vmatprep.subr.bf16.mxu0 0
    %750 = vmatpush1.bf16.msra.mxu0 0
    %751 = vmatprep.subr.bf16.mxu0 0
    %752 = vmatpush1.bf16.msra.mxu0 0
    %753 = vmatprep.subr.bf16.mxu0 0
    %754 = vmatpush1.bf16.msra.mxu0 0
    %755 = vmatprep.subr.bf16.mxu0 0
    %756 = vmatpush1.bf16.msra.mxu0 %v734
    %757 = vmatprep.subr.bf16.mxu0 0
    %758 = vmatpush1.bf16.msra.mxu0 %v732
    %759 = vmatprep.subr.bf16.mxu0 0
    %760 = vmatpush2.bf16.msra.mxu0 0
    %761 = vmatprep.subr.bf16.mxu0 0
    %762 = vmatpush2.bf16.msra.mxu0 0
    %763 = vmatprep.subr.bf16.mxu0 0
    %764 = vmatpush2.bf16.msra.mxu0 0
    %765 = vmatprep.subr.bf16.mxu0 0
    %766 = vmatpush2.bf16.msra.mxu0 0
    %767 = vmatprep.subr.bf16.mxu0 0
    %768 = vmatpush2.bf16.msra.mxu0 0
    %769 = vmatprep.subr.bf16.mxu0 0
    %770 = vmatpush2.bf16.msra.mxu0 0
    %771 = vmatprep.subr.bf16.mxu0 0
    %772 = vmatpush2.bf16.msra.mxu0 0
    %773 = vmatprep.subr.bf16.mxu0 0
    %774 = vmatpush2.bf16.msra.mxu0 0
    %775 = vmatprep.mubr.bf16.mxu0 0
    %776 = vmatmul.mubr.bf16.gmra.mxu0 %v738
    %v777 = vpop.f32.mrf.mxu0
    %v778 = vadd.f32 0.0, %v777
    %v779 = vpop.f32.mrf.mxu0
    %v780 = vpop.f32.mrf.mxu0
    %v781 = vadd.f32 0.0, %v780
    %v782 = vpop.f32.mrf.mxu0
    %783 = vmatprep.mubr.bf16.mxu0 0
    %784 = vmatmul.mubr.bf16.gmra.mxu0 %v741
    %v785 = vpop.f32.mrf.mxu0
    %v786 = vadd.f32 0.0, %v785
    %v787 = vpop.f32.mrf.mxu0
    %v788 = vpop.f32.mrf.mxu0
    %v789 = vadd.f32 0.0, %v788
    %v790 = vpop.f32.mrf.mxu0
    %791 = vdwg.mxu0
    %v792 = vpack.c.bf16 %v593, %v593
    %793 = vrot.lane.b32.xlu0 %v608, 120
    %v794 = vpop.permute.xlu0 %793
    %795 = vrot.lane.b32.xlu0 %v609, 120
    %v796 = vpop.permute.xlu0 %795
    %v798 = vsel %vm611, %v794, 0
    %v801 = vsel %vm611, %v796, 0
    %v804 = vsel %vm618, %v792, 0
    %806 = vmatprep.subr.bf16.mxu0 0
    %807 = vmatpush1.bf16.msra.mxu0 0
    %808 = vmatprep.subr.bf16.mxu0 0
    %809 = vmatpush1.bf16.msra.mxu0 0
    %810 = vmatprep.subr.bf16.mxu0 0
    %811 = vmatpush1.bf16.msra.mxu0 0
    %812 = vmatprep.subr.bf16.mxu0 0
    %813 = vmatpush1.bf16.msra.mxu0 0
    %814 = vmatprep.subr.bf16.mxu0 0
    %815 = vmatpush1.bf16.msra.mxu0 0
    %816 = vmatprep.subr.bf16.mxu0 0
    %817 = vmatpush1.bf16.msra.mxu0 0
    %818 = vmatprep.subr.bf16.mxu0 0
    %819 = vmatpush1.bf16.msra.mxu0 0
    %820 = vmatprep.subr.bf16.mxu0 0
    %821 = vmatpush1.bf16.msra.mxu0 %v804
    %822 = vmatprep.subr.bf16.mxu0 0
    %823 = vmatpush2.bf16.msra.mxu0 0
    %824 = vmatprep.subr.bf16.mxu0 0
    %825 = vmatpush2.bf16.msra.mxu0 0
    %826 = vmatprep.subr.bf16.mxu0 0
    %827 = vmatpush2.bf16.msra.mxu0 0
    %828 = vmatprep.subr.bf16.mxu0 0
    %829 = vmatpush2.bf16.msra.mxu0 0
    %830 = vmatprep.subr.bf16.mxu0 0
    %831 = vmatpush2.bf16.msra.mxu0 0
    %832 = vmatprep.subr.bf16.mxu0 0
    %833 = vmatpush2.bf16.msra.mxu0 0
    %834 = vmatprep.subr.bf16.mxu0 0
    %835 = vmatpush2.bf16.msra.mxu0 0
    %836 = vmatprep.subr.bf16.mxu0 0
    %837 = vmatpush2.bf16.msra.mxu0 0
    %838 = vmatprep.mubr.bf16.mxu0 0
    %839 = vmatmul.mubr.bf16.gmra.mxu0 %v798
    %v840 = vpop.f32.mrf.mxu0
    %v841 = vadd.f32 0.0, %v840
    %v842 = vpop.f32.mrf.mxu0
    %v843 = vpop.f32.mrf.mxu0
    %v844 = vadd.f32 0.0, %v843
    %v845 = vpop.f32.mrf.mxu0
    %846 = vmatprep.mubr.bf16.mxu0 0
    %847 = vmatmul.mubr.bf16.gmra.mxu0 %v801
    %v848 = vpop.f32.mrf.mxu0
    %v849 = vadd.f32 0.0, %v848
    %v850 = vpop.f32.mrf.mxu0
    %v851 = vpop.f32.mrf.mxu0
    %v852 = vadd.f32 0.0, %v851
    %v853 = vpop.f32.mrf.mxu0
    %854 = vdwg.mxu0
    %v855 = vmul.f32 %v841, 0.35355338
    %v856 = vmul.f32 %v844, 0.35355338
    %v857 = vmul.f32 %v849, 0.35355338
    %v858 = vmul.f32 %v852, 0.35355338
    %s859 = scalar_lea.vmem [#allocation11], 32
    %v860 = vld [vmem:[%s859] sm:$0xff]
    %v861 = vld [vmem:[%s859 + $0x8] sm:$0xff]
    %v862 = vld [vmem:[%s859 + $0x10] sm:$0xff]
    %v863 = vld [vmem:[%s859 + $0x18] sm:$0xff]
    %v864 = vadd.f32 %v855, %v860
    %v865 = vadd.f32 %v856, %v861
    %v866 = vadd.f32 %v857, %v862
    %v867 = vadd.f32 %v858, %v863
    %v868 = vsel %vm113, %v864, -inf
    %869 = vmax.xlane.f32.xlu0 %v868
    %v870 = vpop.xlane.xlu0 %869
    %v871 = vsel %vm113, %v865, -inf
    %872 = vmax.xlane.f32.xlu0 %v871
    %v873 = vpop.xlane.xlu0 %872
    %v874 = vsel %vm113, %v866, -inf
    %875 = vmax.xlane.f32.xlu0 %v874
    %v876 = vpop.xlane.xlu0 %875
    %v877 = vsel %vm113, %v867, -inf
    %878 = vmax.xlane.f32.xlu0 %v877
    %v879 = vpop.xlane.xlu0 %878
    %v880 = vsub.f32 %v864, %v870
    %v881 = vsub.f32 %v865, %v873
    %v882 = vsub.f32 %v866, %v876
    %v883 = vsub.f32 %v867, %v879
    %v884 = vmul.f32 %v880, 1.442695
    %v885 = vpow.pop %v884
    %v886 = vmul.f32 %v881, 1.442695
    %v887 = vpow.pop %v886
    %v888 = vmul.f32 %v882, 1.442695
    %v889 = vpow.pop %v888
    %v890 = vmul.f32 %v883, 1.442695
    %v891 = vpow.pop %v890
    %v892 = vsel %vm113, %v885, 0.0
    %893 = vadd.xlane.f32.xlu0 %v892
    %v894 = vpop.xlane.xlu0 %893
    %v895 = vsel %vm113, %v887, 0.0
    %896 = vadd.xlane.f32.xlu0 %v895
    %v897 = vpop.xlane.xlu0 %896
    %v898 = vsel %vm113, %v889, 0.0
    %899 = vadd.xlane.f32.xlu0 %v898
    %v900 = vpop.xlane.xlu0 %899
    %v901 = vsel %vm113, %v891, 0.0
    %902 = vadd.xlane.f32.xlu0 %v901
    %v903 = vpop.xlane.xlu0 %902
    %v904 = vrcp.pop %v894
    %v905 = vrcp.pop %v897
    %v906 = vrcp.pop %v900
    %v907 = vrcp.pop %v903
    %v908 = vmul.f32 %v885, %v904
    %v909 = vmul.f32 %v887, %v905
    %v910 = vmul.f32 %v889, %v906
    %v911 = vmul.f32 %v891, %v907
    %v912 = vpack.c.bf16 %v909, %v908
    %v913 = vpack.c.bf16 %v911, %v910
    %914 = vrot.lane.b32.xlu0 %v608, 56
    %v915 = vpop.permute.xlu0 %914
    %916 = vrot.lane.b32.xlu0 %v609, 56
    %v917 = vpop.permute.xlu0 %916
    %v921 = vsel %vm113, %v912, 0
    %v924 = vsel %vm113, %v913, 0
    %926 = vmatprep.subr.bf16.mxu0 0
    %927 = vmatpush1.bf16.msra.mxu0 0
    %928 = vmatprep.subr.bf16.mxu0 0
    %929 = vmatpush1.bf16.msra.mxu0 0
    %930 = vmatprep.subr.bf16.mxu0 0
    %931 = vmatpush1.bf16.msra.mxu0 0
    %932 = vmatprep.subr.bf16.mxu0 0
    %933 = vmatpush1.bf16.msra.mxu0 0
    %934 = vmatprep.subr.bf16.mxu0 0
    %935 = vmatpush1.bf16.msra.mxu0 0
    %936 = vmatprep.subr.bf16.mxu0 0
    %937 = vmatpush1.bf16.msra.mxu0 0
    %938 = vmatprep.subr.bf16.mxu0 0
    %939 = vmatpush1.bf16.msra.mxu0 %v917
    %940 = vmatprep.subr.bf16.mxu0 0
    %941 = vmatpush1.bf16.msra.mxu0 %v915
    %942 = vmatprep.subr.bf16.mxu0 0
    %943 = vmatpush2.bf16.msra.mxu0 0
    %944 = vmatprep.subr.bf16.mxu0 0
    %945 = vmatpush2.bf16.msra.mxu0 0
    %946 = vmatprep.subr.bf16.mxu0 0
    %947 = vmatpush2.bf16.msra.mxu0 0
    %948 = vmatprep.subr.bf16.mxu0 0
    %949 = vmatpush2.bf16.msra.mxu0 0
    %950 = vmatprep.subr.bf16.mxu0 0
    %951 = vmatpush2.bf16.msra.mxu0 0
    %952 = vmatprep.subr.bf16.mxu0 0
    %953 = vmatpush2.bf16.msra.mxu0 0
    %954 = vmatprep.subr.bf16.mxu0 0
    %955 = vmatpush2.bf16.msra.mxu0 0
    %956 = vmatprep.subr.bf16.mxu0 0
    %957 = vmatpush2.bf16.msra.mxu0 0
    %958 = vmatprep.mubr.bf16.mxu0 0
    %959 = vmatmul.mubr.bf16.gmra.mxu0 %v921
    %v960 = vpop.f32.mrf.mxu0
    %v961 = vadd.f32 0.0, %v960
    %v962 = vpop.f32.mrf.mxu0
    %v963 = vpop.f32.mrf.mxu0
    %v964 = vadd.f32 0.0, %v963
    %v965 = vpop.f32.mrf.mxu0
    %966 = vmatprep.mubr.bf16.mxu0 0
    %967 = vmatmul.mubr.bf16.gmra.mxu0 %v924
    %v968 = vpop.f32.mrf.mxu0
    %v969 = vadd.f32 0.0, %v968
    %v970 = vpop.f32.mrf.mxu0
    %v971 = vpop.f32.mrf.mxu0
    %v972 = vadd.f32 0.0, %v971
    %v973 = vpop.f32.mrf.mxu0
    %974 = vdwg.mxu0
    %v975 = vpack.c.bf16 %v594, %v594
    %976 = vrot.lane.b32.xlu0 %v608, 112
    %v977 = vpop.permute.xlu0 %976
    %978 = vrot.lane.b32.xlu0 %v609, 112
    %v979 = vpop.permute.xlu0 %978
    %v981 = vsel %vm611, %v977, 0
    %v984 = vsel %vm611, %v979, 0
    %v987 = vsel %vm618, %v975, 0
    %989 = vmatprep.subr.bf16.mxu0 0
    %990 = vmatpush1.bf16.msra.mxu0 0
    %991 = vmatprep.subr.bf16.mxu0 0
    %992 = vmatpush1.bf16.msra.mxu0 0
    %993 = vmatprep.subr.bf16.mxu0 0
    %994 = vmatpush1.bf16.msra.mxu0 0
    %995 = vmatprep.subr.bf16.mxu0 0
    %996 = vmatpush1.bf16.msra.mxu0 0
    %997 = vmatprep.subr.bf16.mxu0 0
    %998 = vmatpush1.bf16.msra.mxu0 0
    %999 = vmatprep.subr.bf16.mxu0 0
    %1000 = vmatpush1.bf16.msra.mxu0 0
    %1001 = vmatprep.subr.bf16.mxu0 0
    %1002 = vmatpush1.bf16.msra.mxu0 0
    %1003 = vmatprep.subr.bf16.mxu0 0
    %1004 = vmatpush1.bf16.msra.mxu0 %v987
    %1005 = vmatprep.subr.bf16.mxu0 0
    %1006 = vmatpush2.bf16.msra.mxu0 0
    %1007 = vmatprep.subr.bf16.mxu0 0
    %1008 = vmatpush2.bf16.msra.mxu0 0
    %1009 = vmatprep.subr.bf16.mxu0 0
    %1010 = vmatpush2.bf16.msra.mxu0 0
    %1011 = vmatprep.subr.bf16.mxu0 0
    %1012 = vmatpush2.bf16.msra.mxu0 0
    %1013 = vmatprep.subr.bf16.mxu0 0
    %1014 = vmatpush2.bf16.msra.mxu0 0
    %1015 = vmatprep.subr.bf16.mxu0 0
    %1016 = vmatpush2.bf16.msra.mxu0 0
    %1017 = vmatprep.subr.bf16.mxu0 0
    %1018 = vmatpush2.bf16.msra.mxu0 0
    %1019 = vmatprep.subr.bf16.mxu0 0
    %1020 = vmatpush2.bf16.msra.mxu0 0
    %1021 = vmatprep.mubr.bf16.mxu0 0
    %1022 = vmatmul.mubr.bf16.gmra.mxu0 %v981
    %v1023 = vpop.f32.mrf.mxu0
    %v1024 = vadd.f32 0.0, %v1023
    %v1025 = vpop.f32.mrf.mxu0
    %v1026 = vpop.f32.mrf.mxu0
    %v1027 = vadd.f32 0.0, %v1026
    %v1028 = vpop.f32.mrf.mxu0
    %1029 = vmatprep.mubr.bf16.mxu0 0
    %1030 = vmatmul.mubr.bf16.gmra.mxu0 %v984
    %v1031 = vpop.f32.mrf.mxu0
    %v1032 = vadd.f32 0.0, %v1031
    %v1033 = vpop.f32.mrf.mxu0
    %v1034 = vpop.f32.mrf.mxu0
    %v1035 = vadd.f32 0.0, %v1034
    %v1036 = vpop.f32.mrf.mxu0
    %1037 = vdwg.mxu0
    %v1038 = vmul.f32 %v1024, 0.35355338
    %v1039 = vmul.f32 %v1027, 0.35355338
    %v1040 = vmul.f32 %v1032, 0.35355338
    %v1041 = vmul.f32 %v1035, 0.35355338
    %s1042 = scalar_lea.vmem [#allocation11], 64
    %v1043 = vld [vmem:[%s1042] sm:$0xff]
    %v1044 = vld [vmem:[%s1042 + $0x8] sm:$0xff]
    %v1045 = vld [vmem:[%s1042 + $0x10] sm:$0xff]
    %v1046 = vld [vmem:[%s1042 + $0x18] sm:$0xff]
    %v1047 = vadd.f32 %v1038, %v1043
    %v1048 = vadd.f32 %v1039, %v1044
    %v1049 = vadd.f32 %v1040, %v1045
    %v1050 = vadd.f32 %v1041, %v1046
    %v1051 = vsel %vm113, %v1047, -inf
    %1052 = vmax.xlane.f32.xlu0 %v1051
    %v1053 = vpop.xlane.xlu0 %1052
    %v1054 = vsel %vm113, %v1048, -inf
    %1055 = vmax.xlane.f32.xlu0 %v1054
    %v1056 = vpop.xlane.xlu0 %1055
    %v1057 = vsel %vm113, %v1049, -inf
    %1058 = vmax.xlane.f32.xlu0 %v1057
    %v1059 = vpop.xlane.xlu0 %1058
    %v1060 = vsel %vm113, %v1050, -inf
    %1061 = vmax.xlane.f32.xlu0 %v1060
    %v1062 = vpop.xlane.xlu0 %1061
    %v1063 = vsub.f32 %v1047, %v1053
    %v1064 = vsub.f32 %v1048, %v1056
    %v1065 = vsub.f32 %v1049, %v1059
    %v1066 = vsub.f32 %v1050, %v1062
    %v1067 = vmul.f32 %v1063, 1.442695
    %v1068 = vpow.pop %v1067
    %v1069 = vmul.f32 %v1064, 1.442695
    %v1070 = vpow.pop %v1069
    %v1071 = vmul.f32 %v1065, 1.442695
    %v1072 = vpow.pop %v1071
    %v1073 = vmul.f32 %v1066, 1.442695
    %v1074 = vpow.pop %v1073
    %v1075 = vsel %vm113, %v1068, 0.0
    %1076 = vadd.xlane.f32.xlu0 %v1075
    %v1077 = vpop.xlane.xlu0 %1076
    %v1078 = vsel %vm113, %v1070, 0.0
    %1079 = vadd.xlane.f32.xlu0 %v1078
    %v1080 = vpop.xlane.xlu0 %1079
    %v1081 = vsel %vm113, %v1072, 0.0
    %1082 = vadd.xlane.f32.xlu0 %v1081
    %v1083 = vpop.xlane.xlu0 %1082
    %v1084 = vsel %vm113, %v1074, 0.0
    %1085 = vadd.xlane.f32.xlu0 %v1084
    %v1086 = vpop.xlane.xlu0 %1085
    %v1087 = vrcp.pop %v1077
    %v1088 = vrcp.pop %v1080
    %v1089 = vrcp.pop %v1083
    %v1090 = vrcp.pop %v1086
    %v1091 = vmul.f32 %v1068, %v1087
    %v1092 = vmul.f32 %v1070, %v1088
    %v1093 = vmul.f32 %v1072, %v1089
    %v1094 = vmul.f32 %v1074, %v1090
    %v1095 = vpack.c.bf16 %v1092, %v1091
    %v1096 = vpack.c.bf16 %v1094, %v1093
    %1097 = vrot.lane.b32.xlu0 %v608, 48
    %v1098 = vpop.permute.xlu0 %1097
    %1099 = vrot.lane.b32.xlu0 %v609, 48
    %v1100 = vpop.permute.xlu0 %1099
    %v1104 = vsel %vm113, %v1095, 0
    %v1107 = vsel %vm113, %v1096, 0
    %1109 = vmatprep.subr.bf16.mxu0 0
    %1110 = vmatpush1.bf16.msra.mxu0 0
    %1111 = vmatprep.subr.bf16.mxu0 0
    %1112 = vmatpush1.bf16.msra.mxu0 0
    %1113 = vmatprep.subr.bf16.mxu0 0
    %1114 = vmatpush1.bf16.msra.mxu0 0
    %1115 = vmatprep.subr.bf16.mxu0 0
    %1116 = vmatpush1.bf16.msra.mxu0 0
    %1117 = vmatprep.subr.bf16.mxu0 0
    %1118 = vmatpush1.bf16.msra.mxu0 0
    %1119 = vmatprep.subr.bf16.mxu0 0
    %1120 = vmatpush1.bf16.msra.mxu0 0
    %1121 = vmatprep.subr.bf16.mxu0 0
    %1122 = vmatpush1.bf16.msra.mxu0 %v1100
    %1123 = vmatprep.subr.bf16.mxu0 0
    %1124 = vmatpush1.bf16.msra.mxu0 %v1098
    %1125 = vmatprep.subr.bf16.mxu0 0
    %1126 = vmatpush2.bf16.msra.mxu0 0
    %1127 = vmatprep.subr.bf16.mxu0 0
    %1128 = vmatpush2.bf16.msra.mxu0 0
    %1129 = vmatprep.subr.bf16.mxu0 0
    %1130 = vmatpush2.bf16.msra.mxu0 0
    %1131 = vmatprep.subr.bf16.mxu0 0
    %1132 = vmatpush2.bf16.msra.mxu0 0
    %1133 = vmatprep.subr.bf16.mxu0 0
    %1134 = vmatpush2.bf16.msra.mxu0 0
    %1135 = vmatprep.subr.bf16.mxu0 0
    %1136 = vmatpush2.bf16.msra.mxu0 0
    %1137 = vmatprep.subr.bf16.mxu0 0
    %1138 = vmatpush2.bf16.msra.mxu0 0
    %1139 = vmatprep.subr.bf16.mxu0 0
    %1140 = vmatpush2.bf16.msra.mxu0 0
    %1141 = vmatprep.mubr.bf16.mxu0 0
    %1142 = vmatmul.mubr.bf16.gmra.mxu0 %v1104
    %v1143 = vpop.f32.mrf.mxu0
    %v1144 = vadd.f32 0.0, %v1143
    %v1145 = vpop.f32.mrf.mxu0
    %v1146 = vpop.f32.mrf.mxu0
    %v1147 = vadd.f32 0.0, %v1146
    %v1148 = vpop.f32.mrf.mxu0
    %1149 = vmatprep.mubr.bf16.mxu0 0
    %1150 = vmatmul.mubr.bf16.gmra.mxu0 %v1107
    %v1151 = vpop.f32.mrf.mxu0
    %v1152 = vadd.f32 0.0, %v1151
    %v1153 = vpop.f32.mrf.mxu0
    %v1154 = vpop.f32.mrf.mxu0
    %v1155 = vadd.f32 0.0, %v1154
    %v1156 = vpop.f32.mrf.mxu0
    %1157 = vdwg.mxu0
    %v1158 = vpack.c.bf16 %v595, %v595
    %1159 = vrot.lane.b32.xlu0 %v608, 104
    %v1160 = vpop.permute.xlu0 %1159
    %1161 = vrot.lane.b32.xlu0 %v609, 104
    %v1162 = vpop.permute.xlu0 %1161
    %v1164 = vsel %vm611, %v1160, 0
    %v1167 = vsel %vm611, %v1162, 0
    %v1170 = vsel %vm618, %v1158, 0
    %1172 = vmatprep.subr.bf16.mxu0 0
    %1173 = vmatpush1.bf16.msra.mxu0 0
    %1174 = vmatprep.subr.bf16.mxu0 0
    %1175 = vmatpush1.bf16.msra.mxu0 0
    %1176 = vmatprep.subr.bf16.mxu0 0
    %1177 = vmatpush1.bf16.msra.mxu0 0
    %1178 = vmatprep.subr.bf16.mxu0 0
    %1179 = vmatpush1.bf16.msra.mxu0 0
    %1180 = vmatprep.subr.bf16.mxu0 0
    %1181 = vmatpush1.bf16.msra.mxu0 0
    %1182 = vmatprep.subr.bf16.mxu0 0
    %1183 = vmatpush1.bf16.msra.mxu0 0
    %1184 = vmatprep.subr.bf16.mxu0 0
    %1185 = vmatpush1.bf16.msra.mxu0 0
    %1186 = vmatprep.subr.bf16.mxu0 0
    %1187 = vmatpush1.bf16.msra.mxu0 %v1170
    %1188 = vmatprep.subr.bf16.mxu0 0
    %1189 = vmatpush2.bf16.msra.mxu0 0
    %1190 = vmatprep.subr.bf16.mxu0 0
    %1191 = vmatpush2.bf16.msra.mxu0 0
    %1192 = vmatprep.subr.bf16.mxu0 0
    %1193 = vmatpush2.bf16.msra.mxu0 0
    %1194 = vmatprep.subr.bf16.mxu0 0
    %1195 = vmatpush2.bf16.msra.mxu0 0
    %1196 = vmatprep.subr.bf16.mxu0 0
    %1197 = vmatpush2.bf16.msra.mxu0 0
    %1198 = vmatprep.subr.bf16.mxu0 0
    %1199 = vmatpush2.bf16.msra.mxu0 0
    %1200 = vmatprep.subr.bf16.mxu0 0
    %1201 = vmatpush2.bf16.msra.mxu0 0
    %1202 = vmatprep.subr.bf16.mxu0 0
    %1203 = vmatpush2.bf16.msra.mxu0 0
    %1204 = vmatprep.mubr.bf16.mxu0 0
    %1205 = vmatmul.mubr.bf16.gmra.mxu0 %v1164
    %v1206 = vpop.f32.mrf.mxu0
    %v1207 = vadd.f32 0.0, %v1206
    %v1208 = vpop.f32.mrf.mxu0
    %v1209 = vpop.f32.mrf.mxu0
    %v1210 = vadd.f32 0.0, %v1209
    %v1211 = vpop.f32.mrf.mxu0
    %1212 = vmatprep.mubr.bf16.mxu0 0
    %1213 = vmatmul.mubr.bf16.gmra.mxu0 %v1167
    %v1214 = vpop.f32.mrf.mxu0
    %v1215 = vadd.f32 0.0, %v1214
    %v1216 = vpop.f32.mrf.mxu0
    %v1217 = vpop.f32.mrf.mxu0
    %v1218 = vadd.f32 0.0, %v1217
    %v1219 = vpop.f32.mrf.mxu0
    %1220 = vdwg.mxu0
    %v1221 = vmul.f32 %v1207, 0.35355338
    %v1222 = vmul.f32 %v1210, 0.35355338
    %v1223 = vmul.f32 %v1215, 0.35355338
    %v1224 = vmul.f32 %v1218, 0.35355338
    %s1225 = scalar_lea.vmem [#allocation11], 96
    %v1226 = vld [vmem:[%s1225] sm:$0xff]
    %v1227 = vld [vmem:[%s1225 + $0x8] sm:$0xff]
    %v1228 = vld [vmem:[%s1225 + $0x10] sm:$0xff]
    %v1229 = vld [vmem:[%s1225 + $0x18] sm:$0xff]
    %v1230 = vadd.f32 %v1221, %v1226
    %v1231 = vadd.f32 %v1222, %v1227
    %v1232 = vadd.f32 %v1223, %v1228
    %v1233 = vadd.f32 %v1224, %v1229
    %v1234 = vsel %vm113, %v1230, -inf
    %1235 = vmax.xlane.f32.xlu0 %v1234
    %v1236 = vpop.xlane.xlu0 %1235
    %v1237 = vsel %vm113, %v1231, -inf
    %1238 = vmax.xlane.f32.xlu0 %v1237
    %v1239 = vpop.xlane.xlu0 %1238
    %v1240 = vsel %vm113, %v1232, -inf
    %1241 = vmax.xlane.f32.xlu0 %v1240
    %v1242 = vpop.xlane.xlu0 %1241
    %v1243 = vsel %vm113, %v1233, -inf
    %1244 = vmax.xlane.f32.xlu0 %v1243
    %v1245 = vpop.xlane.xlu0 %1244
    %v1246 = vsub.f32 %v1230, %v1236
    %v1247 = vsub.f32 %v1231, %v1239
    %v1248 = vsub.f32 %v1232, %v1242
    %v1249 = vsub.f32 %v1233, %v1245
    %v1250 = vmul.f32 %v1246, 1.442695
    %v1251 = vpow.pop %v1250
    %v1252 = vmul.f32 %v1247, 1.442695
    %v1253 = vpow.pop %v1252
    %v1254 = vmul.f32 %v1248, 1.442695
    %v1255 = vpow.pop %v1254
    %v1256 = vmul.f32 %v1249, 1.442695
    %v1257 = vpow.pop %v1256
    %v1258 = vsel %vm113, %v1251, 0.0
    %1259 = vadd.xlane.f32.xlu0 %v1258
    %v1260 = vpop.xlane.xlu0 %1259
    %v1261 = vsel %vm113, %v1253, 0.0
    %1262 = vadd.xlane.f32.xlu0 %v1261
    %v1263 = vpop.xlane.xlu0 %1262
    %v1264 = vsel %vm113, %v1255, 0.0
    %1265 = vadd.xlane.f32.xlu0 %v1264
    %v1266 = vpop.xlane.xlu0 %1265
    %v1267 = vsel %vm113, %v1257, 0.0
    %1268 = vadd.xlane.f32.xlu0 %v1267
    %v1269 = vpop.xlane.xlu0 %1268
    %v1270 = vrcp.pop %v1260
    %v1271 = vrcp.pop %v1263
    %v1272 = vrcp.pop %v1266
    %v1273 = vrcp.pop %v1269
    %v1274 = vmul.f32 %v1251, %v1270
    %v1275 = vmul.f32 %v1253, %v1271
    %v1276 = vmul.f32 %v1255, %v1272
    %v1277 = vmul.f32 %v1257, %v1273
    %v1278 = vpack.c.bf16 %v1275, %v1274
    %v1279 = vpack.c.bf16 %v1277, %v1276
    %1280 = vrot.lane.b32.xlu0 %v608, 40
    %v1281 = vpop.permute.xlu0 %1280
    %1282 = vrot.lane.b32.xlu0 %v609, 40
    %v1283 = vpop.permute.xlu0 %1282
    %v1287 = vsel %vm113, %v1278, 0
    %v1290 = vsel %vm113, %v1279, 0
    %1292 = vmatprep.subr.bf16.mxu0 0
    %1293 = vmatpush1.bf16.msra.mxu0 0
    %1294 = vmatprep.subr.bf16.mxu0 0
    %1295 = vmatpush1.bf16.msra.mxu0 0
    %1296 = vmatprep.subr.bf16.mxu0 0
    %1297 = vmatpush1.bf16.msra.mxu0 0
    %1298 = vmatprep.subr.bf16.mxu0 0
    %1299 = vmatpush1.bf16.msra.mxu0 0
    %1300 = vmatprep.subr.bf16.mxu0 0
    %1301 = vmatpush1.bf16.msra.mxu0 0
    %1302 = vmatprep.subr.bf16.mxu0 0
    %1303 = vmatpush1.bf16.msra.mxu0 0
    %1304 = vmatprep.subr.bf16.mxu0 0
    %1305 = vmatpush1.bf16.msra.mxu0 %v1283
    %1306 = vmatprep.subr.bf16.mxu0 0
    %1307 = vmatpush1.bf16.msra.mxu0 %v1281
    %1308 = vmatprep.subr.bf16.mxu0 0
    %1309 = vmatpush2.bf16.msra.mxu0 0
    %1310 = vmatprep.subr.bf16.mxu0 0
    %1311 = vmatpush2.bf16.msra.mxu0 0
    %1312 = vmatprep.subr.bf16.mxu0 0
    %1313 = vmatpush2.bf16.msra.mxu0 0
    %1314 = vmatprep.subr.bf16.mxu0 0
    %1315 = vmatpush2.bf16.msra.mxu0 0
    %1316 = vmatprep.subr.bf16.mxu0 0
    %1317 = vmatpush2.bf16.msra.mxu0 0
    %1318 = vmatprep.subr.bf16.mxu0 0
    %1319 = vmatpush2.bf16.msra.mxu0 0
    %1320 = vmatprep.subr.bf16.mxu0 0
    %1321 = vmatpush2.bf16.msra.mxu0 0
    %1322 = vmatprep.subr.bf16.mxu0 0
    %1323 = vmatpush2.bf16.msra.mxu0 0
    %1324 = vmatprep.mubr.bf16.mxu0 0
    %1325 = vmatmul.mubr.bf16.gmra.mxu0 %v1287
    %v1326 = vpop.f32.mrf.mxu0
    %v1327 = vadd.f32 0.0, %v1326
    %v1328 = vpop.f32.mrf.mxu0
    %v1329 = vpop.f32.mrf.mxu0
    %v1330 = vadd.f32 0.0, %v1329
    %v1331 = vpop.f32.mrf.mxu0
    %1332 = vmatprep.mubr.bf16.mxu0 0
    %1333 = vmatmul.mubr.bf16.gmra.mxu0 %v1290
    %v1334 = vpop.f32.mrf.mxu0
    %v1335 = vadd.f32 0.0, %v1334
    %v1336 = vpop.f32.mrf.mxu0
    %v1337 = vpop.f32.mrf.mxu0
    %v1338 = vadd.f32 0.0, %v1337
    %v1339 = vpop.f32.mrf.mxu0
    %1340 = vdwg.mxu0
    %1345 = vrot.lane.b32.xlu0 %v961, 8
    %v1346 = vpop.permute.xlu0 %1345
    %1347 = vrot.lane.b32.xlu0 %v964, 8
    %v1348 = vpop.permute.xlu0 %1347
    %1349 = vrot.lane.b32.xlu0 %v969, 8
    %v1350 = vpop.permute.xlu0 %1349
    %1351 = vrot.lane.b32.xlu0 %v972, 8
    %v1352 = vpop.permute.xlu0 %1351
    %1361 = vrot.lane.b32.xlu0 %v1144, 16
    %v1362 = vpop.permute.xlu0 %1361
    %1363 = vrot.lane.b32.xlu0 %v1147, 16
    %v1364 = vpop.permute.xlu0 %1363
    %1365 = vrot.lane.b32.xlu0 %v1152, 16
    %v1366 = vpop.permute.xlu0 %1365
    %1367 = vrot.lane.b32.xlu0 %v1155, 16
    %v1368 = vpop.permute.xlu0 %1367
    %1377 = vrot.lane.b32.xlu0 %v1327, 24
    %v1378 = vpop.permute.xlu0 %1377
    %1379 = vrot.lane.b32.xlu0 %v1330, 24
    %v1380 = vpop.permute.xlu0 %1379
    %1381 = vrot.lane.b32.xlu0 %v1335, 24
    %v1382 = vpop.permute.xlu0 %1381
    %1383 = vrot.lane.b32.xlu0 %v1338, 24
    %v1384 = vpop.permute.xlu0 %1383
    %v1389 = vsel %vm611, %v778, %v1346
    %v1390 = vsel %vm611, %v781, %v1348
    %v1391 = vsel %vm611, %v786, %v1350
    %v1392 = vsel %vm611, %v789, %v1352
    %vm1393 = vcmask 130048
    %v1394 = vsel %vm1393, %v1389, %v1362
    %v1395 = vsel %vm1393, %v1390, %v1364
    %v1396 = vsel %vm1393, %v1391, %v1366
    %v1397 = vsel %vm1393, %v1392, %v1368
    %vm1398 = vcmask 195584
    %v1399 = vsel %vm1398, %v1394, %v1378
    %v1400 = vsel %vm1398, %v1395, %v1380
    %v1401 = vsel %vm1398, %v1396, %v1382
    %v1402 = vsel %vm1398, %v1397, %v1384
    %v1403 = vpack.c.bf16 %v1400, %v1399
    %v1404 = vpack.c.bf16 %v1402, %v1401
    %v1405 = vld [vmem:[#allocation5 + $0xc] sm:$0xf]
    %v1406 = vld [vmem:[#allocation5 + $0x24] sm:$0xf]
    %v1407 = vld [vmem:[#allocation5 + $0x3c] sm:$0xf]
    %v1408 = vld [vmem:[#allocation5 + $0x54] sm:$0xf]
    %v1409 = vld [vmem:[#allocation8 + $0x6] sm:$0x1]
    %v1410 = vlaneseq
    %v1411 = vshrl.u32 %v1410, 7
    %v1412 = vsub.s32 0, %v1411
    %v1413 = vrot.slane %v1409, %v1412
    %v1418 = vunpack.c.l.b16 %v1405
    %v1419 = vunpack.c.l.b16 %v1406
    %v1420 = vunpack.c.l.b16 %v1407
    %v1421 = vunpack.c.l.b16 %v1408
    %v1422 = vpack.c.b16 %v1419, %v1418
    %v1423 = vpack.c.b16 %v1421, %v1420
    %v1427 = vsel %vm113, %v1403, 0
    %v1430 = vsel %vm113, %v1404, 0
    %1432 = vmatprep.subr.bf16.mxu0 0
    %1433 = vmatpush1.bf16.msra.mxu0 0
    %1434 = vmatprep.subr.bf16.mxu0 0
    %1435 = vmatpush1.bf16.msra.mxu0 0
    %1436 = vmatprep.subr.bf16.mxu0 0
    %1437 = vmatpush1.bf16.msra.mxu0 0
    %1438 = vmatprep.subr.bf16.mxu0 0
    %1439 = vmatpush1.bf16.msra.mxu0 0
    %1440 = vmatprep.subr.bf16.mxu0 0
    %1441 = vmatpush1.bf16.msra.mxu0 0
    %1442 = vmatprep.subr.bf16.mxu0 0
    %1443 = vmatpush1.bf16.msra.mxu0 0
    %1444 = vmatprep.subr.bf16.mxu0 0
    %1445 = vmatpush1.bf16.msra.mxu0 %v1423
    %1446 = vmatprep.subr.bf16.mxu0 0
    %1447 = vmatpush1.bf16.msra.mxu0 %v1422
    %1448 = vmatprep.subr.bf16.mxu0 0
    %1449 = vmatpush2.bf16.msra.mxu0 0
    %1450 = vmatprep.subr.bf16.mxu0 0
    %1451 = vmatpush2.bf16.msra.mxu0 0
    %1452 = vmatprep.subr.bf16.mxu0 0
    %1453 = vmatpush2.bf16.msra.mxu0 0
    %1454 = vmatprep.subr.bf16.mxu0 0
    %1455 = vmatpush2.bf16.msra.mxu0 0
    %1456 = vmatprep.subr.bf16.mxu0 0
    %1457 = vmatpush2.bf16.msra.mxu0 0
    %1458 = vmatprep.subr.bf16.mxu0 0
    %1459 = vmatpush2.bf16.msra.mxu0 0
    %1460 = vmatprep.subr.bf16.mxu0 0
    %1461 = vmatpush2.bf16.msra.mxu0 0
    %1462 = vmatprep.subr.bf16.mxu0 0
    %1463 = vmatpush2.bf16.msra.mxu0 0
    %1464 = vmatprep.mubr.bf16.mxu0 0
    %1465 = vmatmul.mubr.bf16.gmra.mxu0 %v1427
    %v1466 = vpop.f32.mrf.mxu0
    %v1467 = vadd.f32 %v1413, %v1466
    %v1468 = vpop.f32.mrf.mxu0
    %v1469 = vpop.f32.mrf.mxu0
    %v1470 = vadd.f32 %v1413, %v1469
    %v1471 = vpop.f32.mrf.mxu0
    %1472 = vmatprep.mubr.bf16.mxu0 0
    %1473 = vmatmul.mubr.bf16.gmra.mxu0 %v1430
    %v1474 = vpop.f32.mrf.mxu0
    %v1475 = vadd.f32 %v1413, %v1474
    %v1476 = vpop.f32.mrf.mxu0
    %v1477 = vpop.f32.mrf.mxu0
    %v1478 = vadd.f32 %v1413, %v1477
    %v1479 = vpop.f32.mrf.mxu0
    %1480 = vdwg.mxu0
    %v1481 = vadd.f32 %v413, %v1467
    %v1482 = vadd.f32 %v414, %v1470
    %v1483 = vadd.f32 %v415, %v1475
    %v1484 = vadd.f32 %v416, %v1478
    %v1485 = vld [vmem:[#allocation8 + $0x7] sm:$0x1]
    %v1486 = vld [vmem:[#allocation8 + $0x8] sm:$0x1]
    %v1487 = vsel %vm113, %v1481, 0.0
    %1488 = vadd.xlane.f32.xlu0 %v1487
    %v1489 = vpop.xlane.xlu0 %1488
    %v1490 = vsel %vm113, %v1482, 0.0
    %1491 = vadd.xlane.f32.xlu0 %v1490
    %v1492 = vpop.xlane.xlu0 %1491
    %v1493 = vsel %vm113, %v1483, 0.0
    %1494 = vadd.xlane.f32.xlu0 %v1493
    %v1495 = vpop.xlane.xlu0 %1494
    %v1496 = vsel %vm113, %v1484, 0.0
    %1497 = vadd.xlane.f32.xlu0 %v1496
    %v1498 = vpop.xlane.xlu0 %1497
    %v1499 = vmul.f32 %v1489, %v126
    %v1500 = vmul.f32 %v1492, %v126
    %v1501 = vmul.f32 %v1495, %v126
    %v1502 = vmul.f32 %v1498, %v126
    %v1503 = vsub.f32 %v1481, %v1499
    %v1504 = vsub.f32 %v1482, %v1500
    %v1505 = vsub.f32 %v1483, %v1501
    %v1506 = vsub.f32 %v1484, %v1502
    %v1507 = vmul.f32 %v1503, %v1503
    %v1508 = vmul.f32 %v1504, %v1504
    %v1509 = vmul.f32 %v1505, %v1505
    %v1510 = vmul.f32 %v1506, %v1506
    %v1511 = vsel %vm113, %v1507, 0.0
    %1512 = vadd.xlane.f32.xlu0 %v1511
    %v1513 = vpop.xlane.xlu0 %1512
    %v1514 = vsel %vm113, %v1508, 0.0
    %1515 = vadd.xlane.f32.xlu0 %v1514
    %v1516 = vpop.xlane.xlu0 %1515
    %v1517 = vsel %vm113, %v1509, 0.0
    %1518 = vadd.xlane.f32.xlu0 %v1517
    %v1519 = vpop.xlane.xlu0 %1518
    %v1520 = vsel %vm113, %v1510, 0.0
    %1521 = vadd.xlane.f32.xlu0 %v1520
    %v1522 = vpop.xlane.xlu0 %1521
    %v1523 = vmul.f32 %v1513, %v126
    %v1524 = vmul.f32 %v1516, %v126
    %v1525 = vmul.f32 %v1519, %v126
    %v1526 = vmul.f32 %v1522, %v126
    %v1527 = vadd.f32 %v1523, 1e-05
    %v1528 = vadd.f32 %v1524, 1e-05
    %v1529 = vadd.f32 %v1525, 1e-05
    %v1530 = vadd.f32 %v1526, 1e-05
    %v1531 = vrsqrt.pop %v1527
    %v1532 = vrsqrt.pop %v1528
    %v1533 = vrsqrt.pop %v1529
    %v1534 = vrsqrt.pop %v1530
    %v1535 = vmul.f32 %v1503, %v1531
    %v1536 = vmul.f32 %v1504, %v1532
    %v1537 = vmul.f32 %v1505, %v1533
    %v1538 = vmul.f32 %v1506, %v1534
    %v1539 = vlaneseq
    %v1540 = vshrl.u32 %v1539, 7
    %v1541 = vsub.s32 0, %v1540
    %v1542 = vrot.slane %v1485, %v1541
    %v1543 = vmul.f32 %v1535, %v1542
    %v1544 = vmul.f32 %v1536, %v1542
    %v1545 = vmul.f32 %v1537, %v1542
    %v1546 = vmul.f32 %v1538, %v1542
    %v1547 = vlaneseq
    %v1548 = vshrl.u32 %v1547, 7
    %v1549 = vsub.s32 0, %v1548
    %v1550 = vrot.slane %v1486, %v1549
    %v1551 = vadd.f32 %v1543, %v1550
    %v1552 = vadd.f32 %v1544, %v1550
    %v1553 = vadd.f32 %v1545, %v1550
    %v1554 = vadd.f32 %v1546, %v1550
    %v1555 = vpack.c.bf16 %v1552, %v1551
    %v1556 = vpack.c.bf16 %v1554, %v1553
    %v1557 = vld [vmem:[#allocation5 + $0x10] sm:$0xf]
    %v1558 = vld [vmem:[#allocation5 + $0x28] sm:$0xf]
    %v1559 = vld [vmem:[#allocation5 + $0x40] sm:$0xf]
    %v1560 = vld [vmem:[#allocation5 + $0x58] sm:$0xf]
    %v1561 = vld [vmem:[#allocation8 + $0x9] sm:$0x1]
    %v1562 = vlaneseq
    %v1563 = vshrl.u32 %v1562, 7
    %v1564 = vsub.s32 0, %v1563
    %v1565 = vrot.slane %v1561, %v1564
    %v1570 = vunpack.c.l.b16 %v1557
    %v1571 = vunpack.c.l.b16 %v1558
    %v1572 = vunpack.c.l.b16 %v1559
    %v1573 = vunpack.c.l.b16 %v1560
    %v1574 = vpack.c.b16 %v1571, %v1570
    %v1575 = vpack.c.b16 %v1573, %v1572
    %v1579 = vsel %vm113, %v1555, 0
    %v1582 = vsel %vm113, %v1556, 0
    %1584 = vmatprep.subr.bf16.mxu0 0
    %1585 = vmatpush1.bf16.msra.mxu0 0
    %1586 = vmatprep.subr.bf16.mxu0 0
    %1587 = vmatpush1.bf16.msra.mxu0 0
    %1588 = vmatprep.subr.bf16.mxu0 0
    %1589 = vmatpush1.bf16.msra.mxu0 0
    %1590 = vmatprep.subr.bf16.mxu0 0
    %1591 = vmatpush1.bf16.msra.mxu0 0
    %1592 = vmatprep.subr.bf16.mxu0 0
    %1593 = vmatpush1.bf16.msra.mxu0 0
    %1594 = vmatprep.subr.bf16.mxu0 0
    %1595 = vmatpush1.bf16.msra.mxu0 0
    %1596 = vmatprep.subr.bf16.mxu0 0
    %1597 = vmatpush1.bf16.msra.mxu0 %v1575
    %1598 = vmatprep.subr.bf16.mxu0 0
    %1599 = vmatpush1.bf16.msra.mxu0 %v1574
    %1600 = vmatprep.subr.bf16.mxu0 0
    %1601 = vmatpush2.bf16.msra.mxu0 0
    %1602 = vmatprep.subr.bf16.mxu0 0
    %1603 = vmatpush2.bf16.msra.mxu0 0
    %1604 = vmatprep.subr.bf16.mxu0 0
    %1605 = vmatpush2.bf16.msra.mxu0 0
    %1606 = vmatprep.subr.bf16.mxu0 0
    %1607 = vmatpush2.bf16.msra.mxu0 0
    %1608 = vmatprep.subr.bf16.mxu0 0
    %1609 = vmatpush2.bf16.msra.mxu0 0
    %1610 = vmatprep.subr.bf16.mxu0 0
    %1611 = vmatpush2.bf16.msra.mxu0 0
    %1612 = vmatprep.subr.bf16.mxu0 0
    %1613 = vmatpush2.bf16.msra.mxu0 0
    %1614 = vmatprep.subr.bf16.mxu0 0
    %1615 = vmatpush2.bf16.msra.mxu0 0
    %1616 = vmatprep.mubr.bf16.mxu0 0
    %1617 = vmatmul.mubr.bf16.gmra.mxu0 %v1579
    %v1618 = vpop.f32.mrf.mxu0
    %v1619 = vadd.f32 %v1565, %v1618
    %v1620 = vpop.f32.mrf.mxu0
    %v1621 = vpop.f32.mrf.mxu0
    %v1622 = vadd.f32 %v1565, %v1621
    %v1623 = vpop.f32.mrf.mxu0
    %1624 = vmatprep.mubr.bf16.mxu0 0
    %1625 = vmatmul.mubr.bf16.gmra.mxu0 %v1582
    %v1626 = vpop.f32.mrf.mxu0
    %v1627 = vadd.f32 %v1565, %v1626
    %v1628 = vpop.f32.mrf.mxu0
    %v1629 = vpop.f32.mrf.mxu0
    %v1630 = vadd.f32 %v1565, %v1629
    %v1631 = vpop.f32.mrf.mxu0
    %1632 = vdwg.mxu0
    %v1633 = vxor.u32 %v1619, 2147483648
    %v1634 = vxor.u32 %v1622, 2147483648
    %v1635 = vxor.u32 %v1627, 2147483648
    %v1636 = vxor.u32 %v1630, 2147483648
    %v1637 = vmul.f32 %v1633, 1.442695
    %v1638 = vpow.pop %v1637
    %v1639 = vmul.f32 %v1634, 1.442695
    %v1640 = vpow.pop %v1639
    %v1641 = vmul.f32 %v1635, 1.442695
    %v1642 = vpow.pop %v1641
    %v1643 = vmul.f32 %v1636, 1.442695
    %v1644 = vpow.pop %v1643
    %v1645 = vadd.f32 %v1638, 1.0
    %v1646 = vadd.f32 %v1640, 1.0
    %v1647 = vadd.f32 %v1642, 1.0
    %v1648 = vadd.f32 %v1644, 1.0
    %v1649 = vrcp.pop %v1645
    %v1650 = vmul.f32 1.0, %v1649
    %v1651 = vrcp.pop %v1646
    %v1652 = vmul.f32 1.0, %v1651
    %v1653 = vrcp.pop %v1647
    %v1654 = vmul.f32 1.0, %v1653
    %v1655 = vrcp.pop %v1648
    %v1656 = vmul.f32 1.0, %v1655
    %1661 = vrot.lane.b32.xlu0 %v1650, 96
    %v1662 = vpop.permute.xlu0 %1661
    %1663 = vrot.lane.b32.xlu0 %v1652, 96
    %v1664 = vpop.permute.xlu0 %1663
    %1665 = vrot.lane.b32.xlu0 %v1654, 96
    %v1666 = vpop.permute.xlu0 %1665
    %1667 = vrot.lane.b32.xlu0 %v1656, 96
    %v1668 = vpop.permute.xlu0 %1667
    %v1673 = vmul.f32 %v1619, %v1662
    %v1674 = vmul.f32 %v1622, %v1664
    %v1675 = vmul.f32 %v1627, %v1666
    %v1676 = vmul.f32 %v1630, %v1668
    %v1677 = vrot.slane %v1673, 1
    %v1678 = vrot.slane %v1674, 1
    %v1679 = vrot.slane %v1675, 1
    %v1680 = vrot.slane %v1676, 1
    %v1681 = vlaneseq
    %v1682 = vshrl.u32 %v1681, 7
    %vm1683 = vcmp.lt.s32.totalorder %v1682, 7
    %v1684 = vsel %vm1683, %v1679, %v1680
    %v1685 = vsel %vm1683, %v1678, %v1679
    %v1686 = vsel %vm1683, %v1677, %v1678
    %v1687 = vsel %vm1683, %v1680, %v1677
    %v1688 = vld [vmem:[#allocation10] sm:$0xff]
    %v1689 = vld [vmem:[#allocation10 + $0x8] sm:$0xff]
    %v1690 = vld [vmem:[#allocation10 + $0x10] sm:$0xff]
    %v1691 = vld [vmem:[#allocation10 + $0x18] sm:$0xff]
    %v1692 = vmul.f32 %v1687, %v1688
    %v1693 = vmul.f32 %v1686, %v1689
    %v1694 = vmul.f32 %v1685, %v1690
    %v1695 = vmul.f32 %v1684, %v1691
    %v1696 = vrot.slane %v1673, 2
    %v1697 = vrot.slane %v1674, 2
    %v1698 = vrot.slane %v1675, 2
    %v1699 = vrot.slane %v1676, 2
    %vm1700 = vcmp.lt.s32.totalorder %v1682, 6
    %v1701 = vsel %vm1700, %v1698, %v1699
    %v1702 = vsel %vm1700, %v1697, %v1698
    %v1703 = vsel %vm1700, %v1696, %v1697
    %v1704 = vsel %vm1700, %v1699, %v1696
    %s1705 = scalar_lea.vmem [#allocation10], 32
    %v1706 = vld [vmem:[%s1705] sm:$0xff]
    %v1707 = vld [vmem:[%s1705 + $0x8] sm:$0xff]
    %v1708 = vld [vmem:[%s1705 + $0x10] sm:$0xff]
    %v1709 = vld [vmem:[%s1705 + $0x18] sm:$0xff]
    %v1710 = vmul.f32 %v1704, %v1706
    %v1711 = vmul.f32 %v1703, %v1707
    %v1712 = vmul.f32 %v1702, %v1708
    %v1713 = vmul.f32 %v1701, %v1709
    %v1714 = vrot.slane %v1673, 3
    %v1715 = vrot.slane %v1674, 3
    %v1716 = vrot.slane %v1675, 3
    %v1717 = vrot.slane %v1676, 3
    %vm1718 = vcmp.lt.s32.totalorder %v1682, 5
    %v1719 = vsel %vm1718, %v1716, %v1717
    %v1720 = vsel %vm1718, %v1715, %v1716
    %v1721 = vsel %vm1718, %v1714, %v1715
    %v1722 = vsel %vm1718, %v1717, %v1714
    %s1723 = scalar_lea.vmem [#allocation10], 64
    %v1724 = vld [vmem:[%s1723] sm:$0xff]
    %v1725 = vld [vmem:[%s1723 + $0x8] sm:$0xff]
    %v1726 = vld [vmem:[%s1723 + $0x10] sm:$0xff]
    %v1727 = vld [vmem:[%s1723 + $0x18] sm:$0xff]
    %v1728 = vmul.f32 %v1722, %v1724
    %v1729 = vmul.f32 %v1721, %v1725
    %v1730 = vmul.f32 %v1720, %v1726
    %v1731 = vmul.f32 %v1719, %v1727
    %v1732 = vrot.slane %v1673, 4
    %v1733 = vrot.slane %v1674, 4
    %v1734 = vrot.slane %v1675, 4
    %v1735 = vrot.slane %v1676, 4
    %vm1736 = vcmp.lt.s32.totalorder %v1682, 4
    %v1737 = vsel %vm1736, %v1734, %v1735
    %v1738 = vsel %vm1736, %v1733, %v1734
    %v1739 = vsel %vm1736, %v1732, %v1733
    %v1740 = vsel %vm1736, %v1735, %v1732
    %s1741 = scalar_lea.vmem [#allocation10], 96
    %v1742 = vld [vmem:[%s1741] sm:$0xff]
    %v1743 = vld [vmem:[%s1741 + $0x8] sm:$0xff]
    %v1744 = vld [vmem:[%s1741 + $0x10] sm:$0xff]
    %v1745 = vld [vmem:[%s1741 + $0x18] sm:$0xff]
    %v1746 = vmul.f32 %v1740, %v1742
    %v1747 = vmul.f32 %v1739, %v1743
    %v1748 = vmul.f32 %v1738, %v1744
    %v1749 = vmul.f32 %v1737, %v1745
    %v1750 = vrot.slane %v1673, 5
    %v1751 = vrot.slane %v1674, 5
    %v1752 = vrot.slane %v1675, 5
    %v1753 = vrot.slane %v1676, 5
    %vm1754 = vcmp.lt.s32.totalorder %v1682, 3
    %v1755 = vsel %vm1754, %v1752, %v1753
    %v1756 = vsel %vm1754, %v1751, %v1752
    %v1757 = vsel %vm1754, %v1750, %v1751
    %v1758 = vsel %vm1754, %v1753, %v1750
    %s1759 = scalar_lea.vmem [#allocation10], 128
    %v1760 = vld [vmem:[%s1759] sm:$0xff]
    %v1761 = vld [vmem:[%s1759 + $0x8] sm:$0xff]
    %v1762 = vld [vmem:[%s1759 + $0x10] sm:$0xff]
    %v1763 = vld [vmem:[%s1759 + $0x18] sm:$0xff]
    %v1764 = vmul.f32 %v1758, %v1760
    %v1765 = vmul.f32 %v1757, %v1761
    %v1766 = vmul.f32 %v1756, %v1762
    %v1767 = vmul.f32 %v1755, %v1763
    %v1768 = vrot.slane %v1673, 6
    %v1769 = vrot.slane %v1674, 6
    %v1770 = vrot.slane %v1675, 6
    %v1771 = vrot.slane %v1676, 6
    %vm1772 = vcmp.lt.s32.totalorder %v1682, 2
    %v1773 = vsel %vm1772, %v1770, %v1771
    %v1774 = vsel %vm1772, %v1769, %v1770
    %v1775 = vsel %vm1772, %v1768, %v1769
    %v1776 = vsel %vm1772, %v1771, %v1768
    %s1777 = scalar_lea.vmem [#allocation10], 160
    %v1778 = vld [vmem:[%s1777] sm:$0xff]
    %v1779 = vld [vmem:[%s1777 + $0x8] sm:$0xff]
    %v1780 = vld [vmem:[%s1777 + $0x10] sm:$0xff]
    %v1781 = vld [vmem:[%s1777 + $0x18] sm:$0xff]
    %v1782 = vmul.f32 %v1776, %v1778
    %v1783 = vmul.f32 %v1775, %v1779
    %v1784 = vmul.f32 %v1774, %v1780
    %v1785 = vmul.f32 %v1773, %v1781
    %v1786 = vrot.slane %v1673, 7
    %v1787 = vrot.slane %v1674, 7
    %v1788 = vrot.slane %v1675, 7
    %v1789 = vrot.slane %v1676, 7
    %vm1790 = vcmp.lt.s32.totalorder %v1682, 1
    %v1791 = vsel %vm1790, %v1788, %v1789
    %v1792 = vsel %vm1790, %v1787, %v1788
    %v1793 = vsel %vm1790, %v1786, %v1787
    %v1794 = vsel %vm1790, %v1789, %v1786
    %s1795 = scalar_lea.vmem [#allocation10], 192
    %v1796 = vld [vmem:[%s1795] sm:$0xff]
    %v1797 = vld [vmem:[%s1795 + $0x8] sm:$0xff]
    %v1798 = vld [vmem:[%s1795 + $0x10] sm:$0xff]
    %v1799 = vld [vmem:[%s1795 + $0x18] sm:$0xff]
    %v1800 = vmul.f32 %v1794, %v1796
    %v1801 = vmul.f32 %v1793, %v1797
    %v1802 = vmul.f32 %v1792, %v1798
    %v1803 = vmul.f32 %v1791, %v1799
    %s1804 = scalar_lea.vmem [#allocation10], 224
    %v1805 = vld [vmem:[%s1804] sm:$0xff]
    %v1806 = vld [vmem:[%s1804 + $0x8] sm:$0xff]
    %v1807 = vld [vmem:[%s1804 + $0x10] sm:$0xff]
    %v1808 = vld [vmem:[%s1804 + $0x18] sm:$0xff]
    %v1809 = vmul.f32 %v1673, %v1805
    %v1810 = vmul.f32 %v1674, %v1806
    %v1811 = vmul.f32 %v1675, %v1807
    %v1812 = vmul.f32 %v1676, %v1808
    %s1813 = scalar_lea.vmem [#allocation10], 256
    %v1814 = vld [vmem:[%s1813] sm:$0xff]
    %v1815 = vld [vmem:[%s1813 + $0x8] sm:$0xff]
    %v1816 = vld [vmem:[%s1813 + $0x10] sm:$0xff]
    %v1817 = vld [vmem:[%s1813 + $0x18] sm:$0xff]
    %v1818 = vmul.f32 %v1686, %v1814
    %v1819 = vmul.f32 %v1685, %v1815
    %v1820 = vmul.f32 %v1684, %v1816
    %v1821 = vmul.f32 %v1687, %v1817
    %s1822 = scalar_lea.vmem [#allocation10], 288
    %v1823 = vld [vmem:[%s1822] sm:$0xff]
    %v1824 = vld [vmem:[%s1822 + $0x8] sm:$0xff]
    %v1825 = vld [vmem:[%s1822 + $0x10] sm:$0xff]
    %v1826 = vld [vmem:[%s1822 + $0x18] sm:$0xff]
    %v1827 = vmul.f32 %v1703, %v1823
    %v1828 = vmul.f32 %v1702, %v1824
    %v1829 = vmul.f32 %v1701, %v1825
    %v1830 = vmul.f32 %v1704, %v1826
    %s1831 = scalar_lea.vmem [#allocation10], 320
    %v1832 = vld [vmem:[%s1831] sm:$0xff]
    %v1833 = vld [vmem:[%s1831 + $0x8] sm:$0xff]
    %v1834 = vld [vmem:[%s1831 + $0x10] sm:$0xff]
    %v1835 = vld [vmem:[%s1831 + $0x18] sm:$0xff]
    %v1836 = vmul.f32 %v1721, %v1832
    %v1837 = vmul.f32 %v1720, %v1833
    %v1838 = vmul.f32 %v1719, %v1834
    %v1839 = vmul.f32 %v1722, %v1835
    %s1840 = scalar_lea.vmem [#allocation10], 352
    %v1841 = vld [vmem:[%s1840] sm:$0xff]
    %v1842 = vld [vmem:[%s1840 + $0x8] sm:$0xff]
    %v1843 = vld [vmem:[%s1840 + $0x10] sm:$0xff]
    %v1844 = vld [vmem:[%s1840 + $0x18] sm:$0xff]
    %v1845 = vmul.f32 %v1739, %v1841
    %v1846 = vmul.f32 %v1738, %v1842
    %v1847 = vmul.f32 %v1737, %v1843
    %v1848 = vmul.f32 %v1740, %v1844
    %s1849 = scalar_lea.vmem [#allocation10], 384
    %v1850 = vld [vmem:[%s1849] sm:$0xff]
    %v1851 = vld [vmem:[%s1849 + $0x8] sm:$0xff]
    %v1852 = vld [vmem:[%s1849 + $0x10] sm:$0xff]
    %v1853 = vld [vmem:[%s1849 + $0x18] sm:$0xff]
    %v1854 = vmul.f32 %v1757, %v1850
    %v1855 = vmul.f32 %v1756, %v1851
    %v1856 = vmul.f32 %v1755, %v1852
    %v1857 = vmul.f32 %v1758, %v1853
    %s1858 = scalar_lea.vmem [#allocation10], 416
    %v1859 = vld [vmem:[%s1858] sm:$0xff]
    %v1860 = vld [vmem:[%s1858 + $0x8] sm:$0xff]
    %v1861 = vld [vmem:[%s1858 + $0x10] sm:$0xff]
    %v1862 = vld [vmem:[%s1858 + $0x18] sm:$0xff]
    %v1863 = vmul.f32 %v1775, %v1859
    %v1864 = vmul.f32 %v1774, %v1860
    %v1865 = vmul.f32 %v1773, %v1861
    %v1866 = vmul.f32 %v1776, %v1862
    %s1867 = scalar_lea.vmem [#allocation10], 448
    %v1868 = vld [vmem:[%s1867] sm:$0xff]
    %v1869 = vld [vmem:[%s1867 + $0x8] sm:$0xff]
    %v1870 = vld [vmem:[%s1867 + $0x10] sm:$0xff]
    %v1871 = vld [vmem:[%s1867 + $0x18] sm:$0xff]
    %v1872 = vmul.f32 %v1793, %v1868
    %v1873 = vmul.f32 %v1792, %v1869
    %v1874 = vmul.f32 %v1791, %v1870
    %v1875 = vmul.f32 %v1794, %v1871
    %v1876 = vadd.f32 %v1692, %v1728
    %v1877 = vadd.f32 %v1693, %v1729
    %v1878 = vadd.f32 %v1694, %v1730
    %v1879 = vadd.f32 %v1695, %v1731
    %v1880 = vadd.f32 %v1876, %v1764
    %v1881 = vadd.f32 %v1877, %v1765
    %v1882 = vadd.f32 %v1878, %v1766
    %v1883 = vadd.f32 %v1879, %v1767
    %v1884 = vadd.f32 %v1880, %v1800
    %v1885 = vadd.f32 %v1881, %v1801
    %v1886 = vadd.f32 %v1882, %v1802
    %v1887 = vadd.f32 %v1883, %v1803
    %v1888 = vadd.f32 %v1884, %v1818
    %v1889 = vadd.f32 %v1885, %v1819
    %v1890 = vadd.f32 %v1886, %v1820
    %v1891 = vadd.f32 %v1887, %v1821
    %v1892 = vadd.f32 %v1888, %v1836
    %v1893 = vadd.f32 %v1889, %v1837
    %v1894 = vadd.f32 %v1890, %v1838
    %v1895 = vadd.f32 %v1891, %v1839
    %v1896 = vadd.f32 %v1892, %v1854
    %v1897 = vadd.f32 %v1893, %v1855
    %v1898 = vadd.f32 %v1894, %v1856
    %v1899 = vadd.f32 %v1895, %v1857
    %v1900 = vadd.f32 %v1896, %v1872
    %v1901 = vadd.f32 %v1897, %v1873
    %v1902 = vadd.f32 %v1898, %v1874
    %v1903 = vadd.f32 %v1899, %v1875
    %v1904 = vadd.f32 %v1710, %v1746
    %v1905 = vadd.f32 %v1711, %v1747
    %v1906 = vadd.f32 %v1712, %v1748
    %v1907 = vadd.f32 %v1713, %v1749
    %v1908 = vadd.f32 %v1904, %v1782
    %v1909 = vadd.f32 %v1905, %v1783
    %v1910 = vadd.f32 %v1906, %v1784
    %v1911 = vadd.f32 %v1907, %v1785
    %v1912 = vadd.f32 %v1908, %v1809
    %v1913 = vadd.f32 %v1909, %v1810
    %v1914 = vadd.f32 %v1910, %v1811
    %v1915 = vadd.f32 %v1911, %v1812
    %v1916 = vadd.f32 %v1912, %v1827
    %v1917 = vadd.f32 %v1913, %v1828
    %v1918 = vadd.f32 %v1914, %v1829
    %v1919 = vadd.f32 %v1915, %v1830
    %v1920 = vadd.f32 %v1916, %v1845
    %v1921 = vadd.f32 %v1917, %v1846
    %v1922 = vadd.f32 %v1918, %v1847
    %v1923 = vadd.f32 %v1919, %v1848
    %v1924 = vadd.f32 %v1920, %v1863
    %v1925 = vadd.f32 %v1921, %v1864
    %v1926 = vadd.f32 %v1922, %v1865
    %v1927 = vadd.f32 %v1923, %v1866
    %v1928 = vadd.f32 %v1900, %v1924
    %v1929 = vadd.f32 %v1901, %v1925
    %v1930 = vadd.f32 %v1902, %v1926
    %v1931 = vadd.f32 %v1903, %v1927
    %v1932 = vld [vmem:[#allocation8 + $0xa] sm:$0x1]
    %v1933 = vlaneseq
    %v1934 = vshrl.u32 %v1933, 7
    %v1935 = vsub.s32 0, %v1934
    %v1936 = vrot.slane %v1932, %v1935
    %v1937 = vadd.f32 %v1928, %v1936
    %v1938 = vadd.f32 %v1929, %v1936
    %v1939 = vadd.f32 %v1930, %v1936
    %v1940 = vadd.f32 %v1931, %v1936
    %v1941 = vld [vmem:[#allocation8 + $0xb] sm:$0x1]
    %v1942 = vld [vmem:[#allocation8 + $0xc] sm:$0x1]
    %v1943 = vsel %vm113, %v1937, 0.0
    %1944 = vadd.xlane.f32.xlu0 %v1943
    %v1945 = vpop.xlane.xlu0 %1944
    %v1946 = vsel %vm113, %v1938, 0.0
    %1947 = vadd.xlane.f32.xlu0 %v1946
    %v1948 = vpop.xlane.xlu0 %1947
    %v1949 = vsel %vm113, %v1939, 0.0
    %1950 = vadd.xlane.f32.xlu0 %v1949
    %v1951 = vpop.xlane.xlu0 %1950
    %v1952 = vsel %vm113, %v1940, 0.0
    %1953 = vadd.xlane.f32.xlu0 %v1952
    %v1954 = vpop.xlane.xlu0 %1953
    %v1955 = vmul.f32 %v1945, %v126
    %v1956 = vmul.f32 %v1948, %v126
    %v1957 = vmul.f32 %v1951, %v126
    %v1958 = vmul.f32 %v1954, %v126
    %v1959 = vsub.f32 %v1937, %v1955
    %v1960 = vsub.f32 %v1938, %v1956
    %v1961 = vsub.f32 %v1939, %v1957
    %v1962 = vsub.f32 %v1940, %v1958
    %v1963 = vmul.f32 %v1959, %v1959
    %v1964 = vmul.f32 %v1960, %v1960
    %v1965 = vmul.f32 %v1961, %v1961
    %v1966 = vmul.f32 %v1962, %v1962
    %v1967 = vsel %vm113, %v1963, 0.0
    %1968 = vadd.xlane.f32.xlu0 %v1967
    %v1969 = vpop.xlane.xlu0 %1968
    %v1970 = vsel %vm113, %v1964, 0.0
    %1971 = vadd.xlane.f32.xlu0 %v1970
    %v1972 = vpop.xlane.xlu0 %1971
    %v1973 = vsel %vm113, %v1965, 0.0
    %1974 = vadd.xlane.f32.xlu0 %v1973
    %v1975 = vpop.xlane.xlu0 %1974
    %v1976 = vsel %vm113, %v1966, 0.0
    %1977 = vadd.xlane.f32.xlu0 %v1976
    %v1978 = vpop.xlane.xlu0 %1977
    %v1979 = vmul.f32 %v1969, %v126
    %v1980 = vmul.f32 %v1972, %v126
    %v1981 = vmul.f32 %v1975, %v126
    %v1982 = vmul.f32 %v1978, %v126
    %v1983 = vadd.f32 %v1979, 1e-05
    %v1984 = vadd.f32 %v1980, 1e-05
    %v1985 = vadd.f32 %v1981, 1e-05
    %v1986 = vadd.f32 %v1982, 1e-05
    %v1987 = vrsqrt.pop %v1983
    %v1988 = vrsqrt.pop %v1984
    %v1989 = vrsqrt.pop %v1985
    %v1990 = vrsqrt.pop %v1986
    %v1991 = vmul.f32 %v1959, %v1987
    %v1992 = vmul.f32 %v1960, %v1988
    %v1993 = vmul.f32 %v1961, %v1989
    %v1994 = vmul.f32 %v1962, %v1990
    %v1995 = vlaneseq
    %v1996 = vshrl.u32 %v1995, 7
    %v1997 = vsub.s32 0, %v1996
    %v1998 = vrot.slane %v1941, %v1997
    %v1999 = vmul.f32 %v1991, %v1998
    %v2000 = vmul.f32 %v1992, %v1998
    %v2001 = vmul.f32 %v1993, %v1998
    %v2002 = vmul.f32 %v1994, %v1998
    %v2003 = vlaneseq
    %v2004 = vshrl.u32 %v2003, 7
    %v2005 = vsub.s32 0, %v2004
    %v2006 = vrot.slane %v1942, %v2005
    %v2007 = vadd.f32 %v1999, %v2006
    %v2008 = vadd.f32 %v2000, %v2006
    %v2009 = vadd.f32 %v2001, %v2006
    %v2010 = vadd.f32 %v2002, %v2006
    %v2011 = vxor.u32 %v2007, 2147483648
    %v2012 = vxor.u32 %v2008, 2147483648
    %v2013 = vxor.u32 %v2009, 2147483648
    %v2014 = vxor.u32 %v2010, 2147483648
    %v2015 = vmul.f32 %v2011, 1.442695
    %v2016 = vpow.pop %v2015
    %v2017 = vmul.f32 %v2012, 1.442695
    %v2018 = vpow.pop %v2017
    %v2019 = vmul.f32 %v2013, 1.442695
    %v2020 = vpow.pop %v2019
    %v2021 = vmul.f32 %v2014, 1.442695
    %v2022 = vpow.pop %v2021
    %v2023 = vadd.f32 %v2016, 1.0
    %v2024 = vadd.f32 %v2018, 1.0
    %v2025 = vadd.f32 %v2020, 1.0
    %v2026 = vadd.f32 %v2022, 1.0
    %v2027 = vrcp.pop %v2023
    %v2028 = vmul.f32 1.0, %v2027
    %v2029 = vrcp.pop %v2024
    %v2030 = vmul.f32 1.0, %v2029
    %v2031 = vrcp.pop %v2025
    %v2032 = vmul.f32 1.0, %v2031
    %v2033 = vrcp.pop %v2026
    %v2034 = vmul.f32 1.0, %v2033
    %v2035 = vmul.f32 %v2007, %v2028
    %v2036 = vmul.f32 %v2008, %v2030
    %v2037 = vmul.f32 %v2009, %v2032
    %v2038 = vmul.f32 %v2010, %v2034
    %v2039 = vpack.c.bf16 %v2036, %v2035
    %v2040 = vpack.c.bf16 %v2038, %v2037
    %v2041 = vld [vmem:[#allocation5 + $0x14] sm:$0xf]
    %v2042 = vld [vmem:[#allocation5 + $0x2c] sm:$0xf]
    %v2043 = vld [vmem:[#allocation5 + $0x44] sm:$0xf]
    %v2044 = vld [vmem:[#allocation5 + $0x5c] sm:$0xf]
    %v2049 = vunpack.c.l.b16 %v2041
    %v2050 = vunpack.c.l.b16 %v2042
    %v2051 = vunpack.c.l.b16 %v2043
    %v2052 = vunpack.c.l.b16 %v2044
    %v2053 = vpack.c.b16 %v2050, %v2049
    %v2054 = vpack.c.b16 %v2052, %v2051
    %v2058 = vsel %vm113, %v2039, 0
    %v2061 = vsel %vm113, %v2040, 0
    %2063 = vmatprep.subr.bf16.mxu0 0
    %2064 = vmatpush1.bf16.msra.mxu0 0
    %2065 = vmatprep.subr.bf16.mxu0 0
    %2066 = vmatpush1.bf16.msra.mxu0 0
    %2067 = vmatprep.subr.bf16.mxu0 0
    %2068 = vmatpush1.bf16.msra.mxu0 0
    %2069 = vmatprep.subr.bf16.mxu0 0
    %2070 = vmatpush1.bf16.msra.mxu0 0
    %2071 = vmatprep.subr.bf16.mxu0 0
    %2072 = vmatpush1.bf16.msra.mxu0 0
    %2073 = vmatprep.subr.bf16.mxu0 0
    %2074 = vmatpush1.bf16.msra.mxu0 0
    %2075 = vmatprep.subr.bf16.mxu0 0
    %2076 = vmatpush1.bf16.msra.mxu0 %v2054
    %2077 = vmatprep.subr.bf16.mxu0 0
    %2078 = vmatpush1.bf16.msra.mxu0 %v2053
    %2079 = vmatprep.subr.bf16.mxu0 0
    %2080 = vmatpush2.bf16.msra.mxu0 0
    %2081 = vmatprep.subr.bf16.mxu0 0
    %2082 = vmatpush2.bf16.msra.mxu0 0
    %2083 = vmatprep.subr.bf16.mxu0 0
    %2084 = vmatpush2.bf16.msra.mxu0 0
    %2085 = vmatprep.subr.bf16.mxu0 0
    %2086 = vmatpush2.bf16.msra.mxu0 0
    %2087 = vmatprep.subr.bf16.mxu0 0
    %2088 = vmatpush2.bf16.msra.mxu0 0
    %2089 = vmatprep.subr.bf16.mxu0 0
    %2090 = vmatpush2.bf16.msra.mxu0 0
    %2091 = vmatprep.subr.bf16.mxu0 0
    %2092 = vmatpush2.bf16.msra.mxu0 0
    %2093 = vmatprep.subr.bf16.mxu0 0
    %2094 = vmatpush2.bf16.msra.mxu0 0
    %2095 = vmatprep.mubr.bf16.mxu0 0
    %2096 = vmatmul.mubr.bf16.gmra.mxu0 %v2058
    %v2097 = vpop.f32.mrf.mxu0
    %v2098 = vadd.f32 0.0, %v2097
    %v2099 = vpop.f32.mrf.mxu0
    %v2100 = vpop.f32.mrf.mxu0
    %v2101 = vadd.f32 0.0, %v2100
    %v2102 = vpop.f32.mrf.mxu0
    %2103 = vmatprep.mubr.bf16.mxu0 0
    %2104 = vmatmul.mubr.bf16.gmra.mxu0 %v2061
    %v2105 = vpop.f32.mrf.mxu0
    %v2106 = vadd.f32 0.0, %v2105
    %v2107 = vpop.f32.mrf.mxu0
    %v2108 = vpop.f32.mrf.mxu0
    %v2109 = vadd.f32 0.0, %v2108
    %v2110 = vpop.f32.mrf.mxu0
    %2111 = vdwg.mxu0
    %v2112 = vadd.f32 %v1481, %v2098
    %v2113 = vadd.f32 %v1482, %v2101
    %v2114 = vadd.f32 %v1483, %v2106
    %v2115 = vadd.f32 %v1484, %v2109
    %v2116 = vld [vmem:[#allocation8 + $0xd] sm:$0x1]
    %v2117 = vlaneseq
    %v2118 = vshrl.u32 %v2117, 7
    %v2119 = vsub.s32 0, %v2118
    %v2120 = vrot.slane %v2116, %v2119
    %v2121 = vadd.f32 %v2112, %v2120
    %v2122 = vadd.f32 %v2113, %v2120
    %v2123 = vadd.f32 %v2114, %v2120
    %v2124 = vadd.f32 %v2115, %v2120
    %v2125 = vld [vmem:[#allocation8 + $0xe] sm:$0x1]
    %v2126 = vld [vmem:[#allocation8 + $0xf] sm:$0x1]
    %v2127 = vsel %vm113, %v2121, 0.0
    %2128 = vadd.xlane.f32.xlu0 %v2127
    %v2129 = vpop.xlane.xlu0 %2128
    %v2130 = vsel %vm113, %v2122, 0.0
    %2131 = vadd.xlane.f32.xlu0 %v2130
    %v2132 = vpop.xlane.xlu0 %2131
    %v2133 = vsel %vm113, %v2123, 0.0
    %2134 = vadd.xlane.f32.xlu0 %v2133
    %v2135 = vpop.xlane.xlu0 %2134
    %v2136 = vsel %vm113, %v2124, 0.0
    %2137 = vadd.xlane.f32.xlu0 %v2136
    %v2138 = vpop.xlane.xlu0 %2137
    %v2139 = vmul.f32 %v2129, %v126
    %v2140 = vmul.f32 %v2132, %v126
    %v2141 = vmul.f32 %v2135, %v126
    %v2142 = vmul.f32 %v2138, %v126
    %v2143 = vsub.f32 %v2121, %v2139
    %v2144 = vsub.f32 %v2122, %v2140
    %v2145 = vsub.f32 %v2123, %v2141
    %v2146 = vsub.f32 %v2124, %v2142
    %v2147 = vmul.f32 %v2143, %v2143
    %v2148 = vmul.f32 %v2144, %v2144
    %v2149 = vmul.f32 %v2145, %v2145
    %v2150 = vmul.f32 %v2146, %v2146
    %v2151 = vsel %vm113, %v2147, 0.0
    %2152 = vadd.xlane.f32.xlu0 %v2151
    %v2153 = vpop.xlane.xlu0 %2152
    %v2154 = vsel %vm113, %v2148, 0.0
    %2155 = vadd.xlane.f32.xlu0 %v2154
    %v2156 = vpop.xlane.xlu0 %2155
    %v2157 = vsel %vm113, %v2149, 0.0
    %2158 = vadd.xlane.f32.xlu0 %v2157
    %v2159 = vpop.xlane.xlu0 %2158
    %v2160 = vsel %vm113, %v2150, 0.0
    %2161 = vadd.xlane.f32.xlu0 %v2160
    %v2162 = vpop.xlane.xlu0 %2161
    %v2163 = vmul.f32 %v2153, %v126
    %v2164 = vmul.f32 %v2156, %v126
    %v2165 = vmul.f32 %v2159, %v126
    %v2166 = vmul.f32 %v2162, %v126
    %v2167 = vadd.f32 %v2163, 1e-05
    %v2168 = vadd.f32 %v2164, 1e-05
    %v2169 = vadd.f32 %v2165, 1e-05
    %v2170 = vadd.f32 %v2166, 1e-05
    %v2171 = vrsqrt.pop %v2167
    %v2172 = vrsqrt.pop %v2168
    %v2173 = vrsqrt.pop %v2169
    %v2174 = vrsqrt.pop %v2170
    %v2175 = vmul.f32 %v2143, %v2171
    %v2176 = vmul.f32 %v2144, %v2172
    %v2177 = vmul.f32 %v2145, %v2173
    %v2178 = vmul.f32 %v2146, %v2174
    %v2179 = vlaneseq
    %v2180 = vshrl.u32 %v2179, 7
    %v2181 = vsub.s32 0, %v2180
    %v2182 = vrot.slane %v2125, %v2181
    %v2183 = vmul.f32 %v2175, %v2182
    %v2184 = vmul.f32 %v2176, %v2182
    %v2185 = vmul.f32 %v2177, %v2182
    %v2186 = vmul.f32 %v2178, %v2182
    %v2187 = vlaneseq
    %v2188 = vshrl.u32 %v2187, 7
    %v2189 = vsub.s32 0, %v2188
    %v2190 = vrot.slane %v2126, %v2189
    %v2191 = vadd.f32 %v2183, %v2190
    %v2192 = vadd.f32 %v2184, %v2190
    %v2193 = vadd.f32 %v2185, %v2190
    %v2194 = vadd.f32 %v2186, %v2190
    %v2195 = vpack.c.bf16 %v2192, %v2191
    %v2196 = vpack.c.bf16 %v2194, %v2193
    %v2197 = vld [vmem:[#allocation5 + $0x4] sm:$0xf]
    %v2198 = vld [vmem:[#allocation5 + $0x1c] sm:$0xf]
    %v2199 = vld [vmem:[#allocation5 + $0x34] sm:$0xf]
    %v2200 = vld [vmem:[#allocation5 + $0x4c] sm:$0xf]
    %v2201 = vld [vmem:[#allocation8 + $0x10] sm:$0x1]
    %v2202 = vlaneseq
    %v2203 = vshrl.u32 %v2202, 7
    %v2204 = vsub.s32 0, %v2203
    %v2205 = vrot.slane %v2201, %v2204
    %v2210 = vunpack.c.l.b16 %v2197
    %v2211 = vunpack.c.l.b16 %v2198
    %v2212 = vunpack.c.l.b16 %v2199
    %v2213 = vunpack.c.l.b16 %v2200
    %v2214 = vpack.c.b16 %v2211, %v2210
    %v2215 = vpack.c.b16 %v2213, %v2212
    %v2219 = vsel %vm113, %v2195, 0
    %v2222 = vsel %vm113, %v2196, 0
    %2224 = vmatprep.subr.bf16.mxu0 0
    %2225 = vmatpush1.bf16.msra.mxu0 0
    %2226 = vmatprep.subr.bf16.mxu0 0
    %2227 = vmatpush1.bf16.msra.mxu0 0
    %2228 = vmatprep.subr.bf16.mxu0 0
    %2229 = vmatpush1.bf16.msra.mxu0 0
    %2230 = vmatprep.subr.bf16.mxu0 0
    %2231 = vmatpush1.bf16.msra.mxu0 0
    %2232 = vmatprep.subr.bf16.mxu0 0
    %2233 = vmatpush1.bf16.msra.mxu0 0
    %2234 = vmatprep.subr.bf16.mxu0 0
    %2235 = vmatpush1.bf16.msra.mxu0 0
    %2236 = vmatprep.subr.bf16.mxu0 0
    %2237 = vmatpush1.bf16.msra.mxu0 %v2215
    %2238 = vmatprep.subr.bf16.mxu0 0
    %2239 = vmatpush1.bf16.msra.mxu0 %v2214
    %2240 = vmatprep.subr.bf16.mxu0 0
    %2241 = vmatpush2.bf16.msra.mxu0 0
    %2242 = vmatprep.subr.bf16.mxu0 0
    %2243 = vmatpush2.bf16.msra.mxu0 0
    %2244 = vmatprep.subr.bf16.mxu0 0
    %2245 = vmatpush2.bf16.msra.mxu0 0
    %2246 = vmatprep.subr.bf16.mxu0 0
    %2247 = vmatpush2.bf16.msra.mxu0 0
    %2248 = vmatprep.subr.bf16.mxu0 0
    %2249 = vmatpush2.bf16.msra.mxu0 0
    %2250 = vmatprep.subr.bf16.mxu0 0
    %2251 = vmatpush2.bf16.msra.mxu0 0
    %2252 = vmatprep.subr.bf16.mxu0 0
    %2253 = vmatpush2.bf16.msra.mxu0 0
    %2254 = vmatprep.subr.bf16.mxu0 0
    %2255 = vmatpush2.bf16.msra.mxu0 0
    %2256 = vmatprep.mubr.bf16.mxu0 0
    %2257 = vmatmul.mubr.bf16.gmra.mxu0 %v2219
    %v2258 = vpop.f32.mrf.mxu0
    %v2259 = vadd.f32 %v2205, %v2258
    %v2260 = vpop.f32.mrf.mxu0
    %v2261 = vpop.f32.mrf.mxu0
    %v2262 = vadd.f32 %v2205, %v2261
    %v2263 = vpop.f32.mrf.mxu0
    %2264 = vmatprep.mubr.bf16.mxu0 0
    %2265 = vmatmul.mubr.bf16.gmra.mxu0 %v2222
    %v2266 = vpop.f32.mrf.mxu0
    %v2267 = vadd.f32 %v2205, %v2266
    %v2268 = vpop.f32.mrf.mxu0
    %v2269 = vpop.f32.mrf.mxu0
    %v2270 = vadd.f32 %v2205, %v2269
    %v2271 = vpop.f32.mrf.mxu0
    %2272 = vdwg.mxu0
    %v2273 = vxor.u32 %v2259, 2147483648
    %v2274 = vxor.u32 %v2262, 2147483648
    %v2275 = vxor.u32 %v2267, 2147483648
    %v2276 = vxor.u32 %v2270, 2147483648
    %v2277 = vmul.f32 %v2273, 1.442695
    %v2278 = vpow.pop %v2277
    %v2279 = vmul.f32 %v2274, 1.442695
    %v2280 = vpow.pop %v2279
    %v2281 = vmul.f32 %v2275, 1.442695
    %v2282 = vpow.pop %v2281
    %v2283 = vmul.f32 %v2276, 1.442695
    %v2284 = vpow.pop %v2283
    %v2285 = vadd.f32 %v2278, 1.0
    %v2286 = vadd.f32 %v2280, 1.0
    %v2287 = vadd.f32 %v2282, 1.0
    %v2288 = vadd.f32 %v2284, 1.0
    %v2289 = vrcp.pop %v2285
    %v2290 = vmul.f32 1.0, %v2289
    %v2291 = vrcp.pop %v2286
    %v2292 = vmul.f32 1.0, %v2291
    %v2293 = vrcp.pop %v2287
    %v2294 = vmul.f32 1.0, %v2293
    %v2295 = vrcp.pop %v2288
    %v2296 = vmul.f32 1.0, %v2295
    %v2297 = vmul.f32 %v2259, %v2290
    %v2298 = vmul.f32 %v2262, %v2292
    %v2299 = vmul.f32 %v2267, %v2294
    %v2300 = vmul.f32 %v2270, %v2296
    %v2301 = vpack.c.bf16 %v2298, %v2297
    %v2302 = vpack.c.bf16 %v2300, %v2299
    %v2303 = vld [vmem:[#allocation7 + $0x4] sm:$0xf]
    %v2304 = vld [vmem:[#allocation7 + $0xc] sm:$0xf]
    %v2305 = vld [vmem:[#allocation7 + $0x14] sm:$0xf]
    %v2306 = vld [vmem:[#allocation7 + $0x1c] sm:$0xf]
    %v2307 = vld [vmem:[#allocation7 + $0x24] sm:$0xf]
    %v2308 = vld [vmem:[#allocation7 + $0x2c] sm:$0xf]
    %v2309 = vld [vmem:[#allocation7 + $0x34] sm:$0xf]
    %v2310 = vld [vmem:[#allocation7 + $0x3c] sm:$0xf]
    %v2311 = vld [vmem:[#allocation7 + $0x44] sm:$0xf]
    %v2312 = vld [vmem:[#allocation7 + $0x4c] sm:$0xf]
    %v2313 = vld [vmem:[#allocation7 + $0x54] sm:$0xf]
    %v2314 = vld [vmem:[#allocation7 + $0x5c] sm:$0xf]
    %v2315 = vld [vmem:[#allocation7 + $0x64] sm:$0xf]
    %v2316 = vld [vmem:[#allocation7 + $0x6c] sm:$0xf]
    %v2317 = vld [vmem:[#allocation7 + $0x74] sm:$0xf]
    %v2318 = vld [vmem:[#allocation7 + $0x7c] sm:$0xf]
    %v2319 = vld [vmem:[#allocation8 + $0x11] sm:$0x1]
    %v2320 = vlaneseq
    %v2321 = vshrl.u32 %v2320, 7
    %v2322 = vsub.s32 0, %v2321
    %v2323 = vrot.slane %v2319, %v2322
    %v2340 = vunpack.c.l.b16 %v2303
    %v2341 = vunpack.c.l.b16 %v2304
    %v2342 = vunpack.c.l.b16 %v2305
    %v2343 = vunpack.c.l.b16 %v2306
    %v2344 = vunpack.c.l.b16 %v2307
    %v2345 = vunpack.c.l.b16 %v2308
    %v2346 = vunpack.c.l.b16 %v2309
    %v2347 = vunpack.c.l.b16 %v2310
    %v2348 = vunpack.c.l.b16 %v2311
    %v2349 = vunpack.c.l.b16 %v2312
    %v2350 = vunpack.c.l.b16 %v2313
    %v2351 = vunpack.c.l.b16 %v2314
    %v2352 = vunpack.c.l.b16 %v2315
    %v2353 = vunpack.c.l.b16 %v2316
    %v2354 = vunpack.c.l.b16 %v2317
    %v2355 = vunpack.c.l.b16 %v2318
    %v2356 = vpack.c.b16 %v2341, %v2340
    %v2357 = vpack.c.b16 %v2343, %v2342
    %v2358 = vpack.c.b16 %v2345, %v2344
    %v2359 = vpack.c.b16 %v2347, %v2346
    %v2360 = vpack.c.b16 %v2349, %v2348
    %v2361 = vpack.c.b16 %v2351, %v2350
    %v2362 = vpack.c.b16 %v2353, %v2352
    %v2363 = vpack.c.b16 %v2355, %v2354
    %2372 = vmatprep.subr.bf16.mxu0 0
    %2373 = vmatpush1.bf16.msra.mxu0 %v2363
    %2374 = vmatprep.subr.bf16.mxu0 0
    %2375 = vmatpush1.bf16.msra.mxu0 %v2362
    %2376 = vmatprep.subr.bf16.mxu0 0
    %2377 = vmatpush1.bf16.msra.mxu0 %v2361
    %2378 = vmatprep.subr.bf16.mxu0 0
    %2379 = vmatpush1.bf16.msra.mxu0 %v2360
    %2380 = vmatprep.subr.bf16.mxu0 0
    %2381 = vmatpush1.bf16.msra.mxu0 %v2359
    %2382 = vmatprep.subr.bf16.mxu0 0
    %2383 = vmatpush1.bf16.msra.mxu0 %v2358
    %2384 = vmatprep.subr.bf16.mxu0 0
    %2385 = vmatpush1.bf16.msra.mxu0 %v2357
    %2386 = vmatprep.subr.bf16.mxu0 0
    %2387 = vmatpush1.bf16.msra.mxu0 %v2356
    %2388 = vmatprep.subr.bf16.mxu0 0
    %2389 = vmatpush2.bf16.msra.mxu0 0
    %2390 = vmatprep.subr.bf16.mxu0 0
    %2391 = vmatpush2.bf16.msra.mxu0 0
    %2392 = vmatprep.subr.bf16.mxu0 0
    %2393 = vmatpush2.bf16.msra.mxu0 0
    %2394 = vmatprep.subr.bf16.mxu0 0
    %2395 = vmatpush2.bf16.msra.mxu0 0
    %2396 = vmatprep.subr.bf16.mxu0 0
    %2397 = vmatpush2.bf16.msra.mxu0 0
    %2398 = vmatprep.subr.bf16.mxu0 0
    %2399 = vmatpush2.bf16.msra.mxu0 0
    %2400 = vmatprep.subr.bf16.mxu0 0
    %2401 = vmatpush2.bf16.msra.mxu0 0
    %2402 = vmatprep.subr.bf16.mxu0 0
    %2403 = vmatpush2.bf16.msra.mxu0 0
    %2404 = vmatprep.mubr.bf16.mxu0 0
    %2405 = vmatmul.mubr.bf16.gmra.mxu0 %v2301
    %v2406 = vpop.f32.mrf.mxu0
    %v2407 = vadd.f32 %v2323, %v2406
    %v2408 = vpop.f32.mrf.mxu0
    %v2409 = vpop.f32.mrf.mxu0
    %v2410 = vadd.f32 %v2323, %v2409
    %v2411 = vpop.f32.mrf.mxu0
    %2412 = vmatprep.mubr.bf16.mxu0 0
    %2413 = vmatmul.mubr.bf16.gmra.mxu0 %v2302
    %v2414 = vpop.f32.mrf.mxu0
    %v2415 = vadd.f32 %v2323, %v2414
    %v2416 = vpop.f32.mrf.mxu0
    %v2417 = vpop.f32.mrf.mxu0
    %v2418 = vadd.f32 %v2323, %v2417
    %v2419 = vpop.f32.mrf.mxu0
    %2420 = vdwg.mxu0
    %v2421 = vmul.f32 %v2407, 0.5
    %v2422 = vmul.f32 %v2410, 0.5
    %v2423 = vmul.f32 %v2415, 0.5
    %v2424 = vmul.f32 %v2418, 0.5
    %v2425 = vadd.f32 %v2121, %v2421
    %v2426 = vadd.f32 %v2122, %v2422
    %v2427 = vadd.f32 %v2123, %v2423
    %v2428 = vadd.f32 %v2124, %v2424
    %v2429 = vld [vmem:[#allocation8 + $0x12] sm:$0x1]
    %v2430 = vld [vmem:[#allocation8 + $0x13] sm:$0x1]
    %v2431 = vsel %vm113, %v2425, 0.0
    %2432 = vadd.xlane.f32.xlu0 %v2431
    %v2433 = vpop.xlane.xlu0 %2432
    %v2434 = vsel %vm113, %v2426, 0.0
    %2435 = vadd.xlane.f32.xlu0 %v2434
    %v2436 = vpop.xlane.xlu0 %2435
    %v2437 = vsel %vm113, %v2427, 0.0
    %2438 = vadd.xlane.f32.xlu0 %v2437
    %v2439 = vpop.xlane.xlu0 %2438
    %v2440 = vsel %vm113, %v2428, 0.0
    %2441 = vadd.xlane.f32.xlu0 %v2440
    %v2442 = vpop.xlane.xlu0 %2441
    %v2443 = vmul.f32 %v2433, %v126
    %v2444 = vmul.f32 %v2436, %v126
    %v2445 = vmul.f32 %v2439, %v126
    %v2446 = vmul.f32 %v2442, %v126
    %v2447 = vsub.f32 %v2425, %v2443
    %v2448 = vsub.f32 %v2426, %v2444
    %v2449 = vsub.f32 %v2427, %v2445
    %v2450 = vsub.f32 %v2428, %v2446
    %v2451 = vmul.f32 %v2447, %v2447
    %v2452 = vmul.f32 %v2448, %v2448
    %v2453 = vmul.f32 %v2449, %v2449
    %v2454 = vmul.f32 %v2450, %v2450
    %v2455 = vsel %vm113, %v2451, 0.0
    %2456 = vadd.xlane.f32.xlu0 %v2455
    %v2457 = vpop.xlane.xlu0 %2456
    %v2458 = vsel %vm113, %v2452, 0.0
    %2459 = vadd.xlane.f32.xlu0 %v2458
    %v2460 = vpop.xlane.xlu0 %2459
    %v2461 = vsel %vm113, %v2453, 0.0
    %2462 = vadd.xlane.f32.xlu0 %v2461
    %v2463 = vpop.xlane.xlu0 %2462
    %v2464 = vsel %vm113, %v2454, 0.0
    %2465 = vadd.xlane.f32.xlu0 %v2464
    %v2466 = vpop.xlane.xlu0 %2465
    %v2467 = vmul.f32 %v2457, %v126
    %v2468 = vmul.f32 %v2460, %v126
    %v2469 = vmul.f32 %v2463, %v126
    %v2470 = vmul.f32 %v2466, %v126
    %v2471 = vadd.f32 %v2467, 1e-05
    %v2472 = vadd.f32 %v2468, 1e-05
    %v2473 = vadd.f32 %v2469, 1e-05
    %v2474 = vadd.f32 %v2470, 1e-05
    %v2475 = vrsqrt.pop %v2471
    %v2476 = vrsqrt.pop %v2472
    %v2477 = vrsqrt.pop %v2473
    %v2478 = vrsqrt.pop %v2474
    %v2479 = vmul.f32 %v2447, %v2475
    %v2480 = vmul.f32 %v2448, %v2476
    %v2481 = vmul.f32 %v2449, %v2477
    %v2482 = vmul.f32 %v2450, %v2478
    %v2483 = vlaneseq
    %v2484 = vshrl.u32 %v2483, 7
    %v2485 = vsub.s32 0, %v2484
    %v2486 = vrot.slane %v2429, %v2485
    %v2487 = vmul.f32 %v2479, %v2486
    %v2488 = vmul.f32 %v2480, %v2486
    %v2489 = vmul.f32 %v2481, %v2486
    %v2490 = vmul.f32 %v2482, %v2486
    %v2491 = vlaneseq
    %v2492 = vshrl.u32 %v2491, 7
    %v2493 = vsub.s32 0, %v2492
    %v2494 = vrot.slane %v2430, %v2493
    %v2495 = vadd.f32 %v2487, %v2494
    %v2496 = vadd.f32 %v2488, %v2494
    %v2497 = vadd.f32 %v2489, %v2494
    %v2498 = vadd.f32 %v2490, %v2494
    %2499 = vst.msk [vmem:[#allocation13] sm:$0xff] %vm113, %v2495
    %2500 = vst.msk [vmem:[#allocation13 + $0x8] sm:$0xff] %vm113, %v2496
    %2501 = vst.msk [vmem:[#allocation13 + $0x10] sm:$0xff] %vm113, %v2497
    %2502 = vst.msk [vmem:[#allocation13 + $0x18] sm:$0xff] %vm113, %v2498
    // Predicated region
    $region50: #{tpu_custom_call.1} parent=1 // pred_check
      _
    $region51: #{tpu_custom_call.1} parent=1 // pred_check_branch
      %2504 = sbr.rel (0) target = $region53
    $region52: #{tpu_custom_call.1} parent=1 // pred_region
      %s2506 = ssub.s32 512, 512
      %2507 = vsyncadd [#allocation4], %s2506
      %s2508 = sshll.u32 [#allocation13], 4
      %s2509 = int_to_ptr.vmem [resolvable:$true] %s2508
      %2514 = dma.vmem_to_hbm [thread:$0]  %s2509, 512, %s6, [#allocation4], 128, 128, 8
    $region53: #{tpu_custom_call.1} parent=1 // pred_fallthru
      _
    // Predicated region
    $region54: #{tpu_custom_call.1} parent=1 // pred_check
      _
    $region55: #{tpu_custom_call.1} parent=1 // pred_check_branch
      %2516 = sbr.rel (0) target = $region57
    $region56: #{tpu_custom_call.1} parent=1 // pred_region
      %2517 = dma.done [#allocation4], 512
    $region57: #{tpu_custom_call.1} parent=1 // pred_fallthru
      _
    %2518 = vsyncpa [#allocation3], 1
    %2519 = vsyncpa [#allocation6], 1
    %2520 = vsyncpa [#allocation9], 1
    %2521 = vsyncpa [#allocation12], 1
    %2522 = vsyncpa [#allocation4], 1

</llo_original>
